<compile_context>
chip_gen: v7x
topology: tpu7x:2x2x1
jax: 0.10.0
libtpu: 0.0.40
codegen_flags: <defaults>
</compile_context>

<pallas_src>
import jax
import jax.numpy as jnp
import numpy as np
from jax import lax
from jax.experimental import pallas as pl
from jax.experimental.pallas import tpu as pltpu

_PAD_VALUE = 3.0e4   # padded j rows: |diff| ~ 3e4 -> exp(-C*3e4) == 0 exactly


def _round_up(x, m):
    return ((x + m - 1) // m) * m


def _mbd_kernel_factory(tm, tj, bcp, out_features, n_j_tiles, ew_dtype, dot_precision):
    """Kernel for one i-row tile: acc[i, t*B+o] = sum_jt exp(-norm(i, jt*TJ+t, o))."""
    accw = tj * out_features

    def kernel(mat_i_ref, mat_full_ref, s_neg_ref, o_ref):
        # i-tile of mat, replicated TJ times along lanes (loop-invariant, hoisted).
        mat_i = mat_i_ref[...].astype(ew_dtype)                           # (TM, BCp)
        mat_tiled = (jnp.concatenate([mat_i] * tj, axis=1)
                     if tj > 1 else mat_i)                                # (TM, TJ*BCp)
        s_neg = s_neg_ref[...]                                            # (TJ*BCp, TJ*B)

        def body(jt, acc):
            start = jt * tj                      # multiple of TJ by construction
            rows = mat_full_ref[pl.ds(start, tj), :].astype(ew_dtype)     # (TJ, BCp)
            if tj > 1:
                # Sublane-broadcast each of the TJ rows, stacked along lanes
                # (lane-aligned concat since BCp % 128 == 0).
                rows_b = jnp.concatenate(
                    [jnp.broadcast_to(rows[t:t + 1, :], (tm, bcp))
                     for t in range(tj)], axis=1)                         # (TM, TJ*BCp)
            else:
                rows_b = jnp.broadcast_to(rows, (tm, bcp))
            diff = jnp.abs(mat_tiled - rows_b)                            # VPU (bf16 on v6e/v7x)
            # Signed block-diagonal group-sum on the MXU: yields -norm directly.
            neg_norm = jnp.dot(diff, s_neg, precision=dot_precision,
                               preferred_element_type=jnp.float32)        # (TM, TJ*B)
            return acc + jnp.exp(neg_norm)                                # EUP, lane-dense

        acc = lax.fori_loop(0, n_j_tiles, body,
                            jnp.zeros((tm, accw), jnp.float32), unroll=2)
        o_ref[...] = acc

    return kernel


def minibatch_discrimination(x, T_flat, out_features, kernel_dims, mean=False,
                             use_bf16=True, tj=4):
    """Forward of MinibatchDiscrimination.

    x:      (N, in_features) float32
    T_flat: (in_features, out_features*kernel_dims) float32
            (column order o*kernel_dims + k, i.e. T.view(in_features, -1))
    Returns (N, in_features + out_features) float32 == concat([x, o_b], axis=1).

    use_bf16: bf16 elementwise + bf16 MXU operands (f32 accumulation) -- the fast
              path on all generations.  f32 path kept for tight accuracy.
    tj:       j rows processed per inner step (sweep; 4 is a good default for B=16;
              larger values inflate MXU MACs of the block-diagonal reduction).
    """
    n, in_features = x.shape
    b, c = out_features, kernel_dims
    bc = b * c
    assert T_flat.shape == (in_features, bc)
    assert tj in (1, 2, 4, 8), "tj must be a power of two <= 8"

    ew_dtype = jnp.bfloat16 if use_bf16 else jnp.float32
    ew_bytes = 2 if use_bf16 else 4
    dot_precision = None if use_bf16 else lax.Precision.HIGHEST
    bcp = _round_up(bc, 128)        # lane-align the per-row feature slab
    accw = tj * b                   # lane width of the accumulator / kernel output

    # ---- pick the i (row) tile size against a ~24 MiB VMEM working-set budget ----
    n8 = _round_up(max(n, 8), 8)
    fixed0 = 2 * n8 * bcp * 4                               # resident full mat (x2 safety)
    tm, per_bytes = 8, 0
    for cand in (512, 256, 128, 64, 32, 16, 8):
        cand = min(cand, n8)
        per = (2 * cand * bcp * 4                           # double-buffered i tile
               + 3 * cand * accw * 4                        # out double buffer + f32 acc
               + 3 * cand * tj * bcp * ew_bytes)            # mat_tiled / rows_b / diff slabs
        tm, per_bytes = cand, per
        if fixed0 + per <= (24 << 20):
            break
    n_pad = _round_up(max(n, tm), tm)                       # multiple of tm (and of tj)
    n_j_tiles = n_pad // tj
    vmem_est = 2 * n_pad * bcp * 4 + per_bytes
    vmem_limit = int(min(64 << 20, max(32 << 20, 2 * vmem_est)))   # v7x: 64 MiB physical

    # ---- prologue in XLA: mat = x @ T (kept f32 / HIGHEST for accuracy) ----------
    mat = jnp.dot(x.astype(jnp.float32), T_flat.astype(jnp.float32),
                  precision=lax.Precision.HIGHEST,
                  preferred_element_type=jnp.float32)               # (N, BC)
    if bcp > bc:
        mat = jnp.pad(mat, ((0, 0), (0, bcp - bc)))                 # zero cols: L1-neutral
    if n_pad > n:
        mat = jnp.pad(mat, ((0, n_pad - n), (0, 0)),
                      constant_values=_PAD_VALUE)                   # padded j rows -> exp -> 0

    # ---- signed block-diagonal group-sum matrix (constant input) -----------------
    q = np.arange(tj * bcp)
    col = np.arange(accw)
    same_block = (q[:, None] // bcp) == (col[None, :] // b)
    same_group = ((q[:, None] % bcp) // c) == (col[None, :] % b)    # padded q -> no group
    s_neg = jnp.asarray(-(same_block & same_group).astype(np.float32), dtype=ew_dtype)

    kernel = _mbd_kernel_factory(tm, tj, bcp, b, n_j_tiles, ew_dtype, dot_precision)

    cost = pl.CostEstimate(
        flops=int(2 * n_pad * n_pad * tj * bcp * b + 2 * n_pad * n_pad * bcp),
        transcendentals=int(n_pad * n_pad * b),
        bytes_accessed=int(4 * (2 * n_pad * bcp + n_pad * accw)),
    )

    acc = pl.pallas_call(
        kernel,
        out_shape=jax.ShapeDtypeStruct((n_pad, accw), jnp.float32),
        grid=(n_pad // tm,),
        in_specs=[
            pl.BlockSpec((tm, bcp), lambda i: (i, 0)),          # i tile of mat
            pl.BlockSpec((n_pad, bcp), lambda i: (0, 0)),       # full mat (resident, j reads)
            pl.BlockSpec((tj * bcp, accw), lambda i: (0, 0)),   # signed group-sum matrix
        ],
        out_specs=pl.BlockSpec((tm, accw), lambda i: (i, 0)),
        compiler_params=pltpu.CompilerParams(
            dimension_semantics=("parallel",),
            vmem_limit_bytes=vmem_limit),
        cost_estimate=cost,
    )(mat, mat, s_neg)

    # ---- epilogue in XLA: fold TJ lane groups, -1, mean scale, concat with x ----
    o_b = acc[:n].reshape(n, tj, b).sum(axis=1) - 1.0
    if mean and n > 1:
        # NOTE: PyTorch divides by (N-1) unconditionally (inf for N==1); we skip
        # the degenerate N==1 case.
        o_b = o_b * (1.0 / float(n - 1))
    return jnp.concatenate([x.astype(o_b.dtype), o_b], axis=1)


def _reference_np(x, T_flat, out_features, kernel_dims, mean=False):
    xn = np.asarray(x, dtype=np.float64)
    tn = np.asarray(T_flat, dtype=np.float64)
    n = xn.shape[0]
    mat = (xn @ tn).reshape(n, out_features, kernel_dims)
    norm = np.abs(mat[None] - mat[:, None]).sum(-1)   # (N, N, B)
    o_b = np.exp(-norm).sum(0) - 1.0
    if mean:
        o_b = o_b / (n - 1)
    return np.concatenate([xn, o_b], axis=1)


if __name__ == "__main__":
    # Shapes consistent with the module's forward (x is 2-D: (N, in_features)).
    N, IN_FEATURES, OUT_FEATURES, KERNEL_DIMS = 8, 32, 16, 8

    keys = jax.random.split(jax.random.PRNGKey(0), 4)
    # Scaled so pairwise L1 norms are O(1) and o_b is numerically meaningful.
    x = 0.25 * jax.random.normal(keys[0], (N, IN_FEATURES), dtype=jnp.float32)
    T_flat = 0.25 * jax.random.normal(
        keys[1], (IN_FEATURES, OUT_FEATURES * KERNEL_DIMS), dtype=jnp.float32)

    ref = _reference_np(x, T_flat, OUT_FEATURES, KERNEL_DIMS, mean=False)

    # f32 path (tight tolerance).
    out_f32 = jax.block_until_ready(
        minibatch_discrimination(x, T_flat, OUT_FEATURES, KERNEL_DIMS,
                                 mean=False, use_bf16=False))
    assert out_f32.shape == (N, IN_FEATURES + OUT_FEATURES)
    assert np.allclose(np.asarray(out_f32), ref, rtol=1e-3, atol=5e-4)

    # bf16 elementwise + bf16 MXU operands (v5e/v6e/v7x fast path), looser tolerance.
    out_bf16 = jax.block_until_ready(
        minibatch_discrimination(x, T_flat, OUT_FEATURES, KERNEL_DIMS,
                                 mean=False, use_bf16=True))
    assert out_bf16.shape == (N, IN_FEATURES + OUT_FEATURES)
    assert np.allclose(np.asarray(out_bf16), ref, rtol=5e-2, atol=2e-2)

    # mean=True semantics check (f32 path).
    out_mean = jax.block_until_ready(
        minibatch_discrimination(x, T_flat, OUT_FEATURES, KERNEL_DIMS,
                                 mean=True, use_bf16=False))
    ref_mean = _reference_np(x, T_flat, OUT_FEATURES, KERNEL_DIMS, mean=True)
    assert np.allclose(np.asarray(out_mean), ref_mean, rtol=1e-3, atol=5e-4)

    # N not a multiple of the row tile / TJ (exercises the PAD_VALUE row padding).
    N2 = 11
    x2 = 0.25 * jax.random.normal(keys[2], (N2, IN_FEATURES), dtype=jnp.float32)
    ref2 = _reference_np(x2, T_flat, OUT_FEATURES, KERNEL_DIMS, mean=False)
    out2 = jax.block_until_ready(
        minibatch_discrimination(x2, T_flat, OUT_FEATURES, KERNEL_DIMS,
                                 mean=False, use_bf16=False))
    assert out2.shape == (N2, IN_FEATURES + OUT_FEATURES)
    assert np.allclose(np.asarray(out2), ref2, rtol=1e-3, atol=5e-4)

    # Non-128-aligned group shape (exercises the BC -> 128 lane padding).
    B2, C2 = 5, 3
    T2 = 0.25 * jax.random.normal(keys[3], (IN_FEATURES, B2 * C2), dtype=jnp.float32)
    ref3 = _reference_np(x2, T2, B2, C2, mean=False)
    out3 = jax.block_until_ready(
        minibatch_discrimination(x2, T2, B2, C2, mean=False, use_bf16=False))
    assert out3.shape == (N2, IN_FEATURES + B2)
    assert np.allclose(np.asarray(out3), ref3, rtol=1e-3, atol=5e-4)

    print("KERNEL_OK")
</pallas_src>

<mosaic_0001>
module attributes {stable_mosaic.version = 11 : i64} {
  func.func @kernel(%arg0: i32, %arg1: memref<8x128xf32, #tpu.memory_space<vmem>>, %arg2: memref<8x128xf32, #tpu.memory_space<vmem>>, %arg3: memref<512x64xf32, #tpu.memory_space<vmem>>, %arg4: memref<8x64xf32, #tpu.memory_space<vmem>>) attributes {dimension_semantics = [#tpu.dimension_semantics<parallel>], iteration_bounds = array<i64: 1>, scalar_prefetch = 0 : i64, scratch_operands = 0 : i64, tpu.core_type = #tpu.core_type<tc>, window_params = [{transform_indices = @transform_0, window_bounds = array<i64: 8, 128>}, {pipeline_mode = #tpu.pipeline_mode<synchronous>, transform_indices = @transform_1, window_bounds = array<i64: 8, 128>}, {pipeline_mode = #tpu.pipeline_mode<synchronous>, transform_indices = @transform_2, window_bounds = array<i64: 512, 64>}, {transform_indices = @transform_3, window_bounds = array<i64: 8, 64>}]} {
    %c0 = arith.constant 0 : index
    %c0_0 = arith.constant 0 : index
    %0 = vector.load %arg1[%c0, %c0_0] : memref<8x128xf32, #tpu.memory_space<vmem>>, vector<8x128xf32>
    %1 = tpu.concatenate %0, %0, %0, %0 in 1 : vector<8x128xf32>, vector<8x128xf32>, vector<8x128xf32>, vector<8x128xf32> -> vector<8x512xf32>
    %c0_1 = arith.constant 0 : index
    %c0_2 = arith.constant 0 : index
    %2 = vector.load %arg3[%c0_1, %c0_2] : memref<512x64xf32, #tpu.memory_space<vmem>>, vector<512x64xf32>
    %cst = arith.constant 0.000000e+00 : f32
    %3 = vector.broadcast %cst : f32 to vector<8x64xf32>
    %c0_i32 = arith.constant 0 : i32
    %c4_i32 = arith.constant 4 : i32
    %4 = arith.muli %c0_i32, %c4_i32 : i32
    %5 = arith.index_cast %4 : i32 to index
    %c0_3 = arith.constant 0 : index
    %6 = vector.load %arg2[%5, %c0_3] : memref<8x128xf32, #tpu.memory_space<vmem>>, vector<4x128xf32>
    %7 = vector.extract_strided_slice %6 {offsets = [0, 0], sizes = [1, 128], strides = [1, 1]} : vector<4x128xf32> to vector<1x128xf32>
    %8 = vector.shape_cast %7 : vector<1x128xf32> to vector<1x128xf32>
    %9 = vector.broadcast %8 : vector<1x128xf32> to vector<8x128xf32>
    %10 = vector.extract_strided_slice %6 {offsets = [1, 0], sizes = [1, 128], strides = [1, 1]} : vector<4x128xf32> to vector<1x128xf32>
    %11 = vector.shape_cast %10 : vector<1x128xf32> to vector<1x128xf32>
    %12 = vector.broadcast %11 : vector<1x128xf32> to vector<8x128xf32>
    %13 = vector.extract_strided_slice %6 {offsets = [2, 0], sizes = [1, 128], strides = [1, 1]} : vector<4x128xf32> to vector<1x128xf32>
    %14 = vector.shape_cast %13 : vector<1x128xf32> to vector<1x128xf32>
    %15 = vector.broadcast %14 : vector<1x128xf32> to vector<8x128xf32>
    %16 = vector.extract_strided_slice %6 {offsets = [3, 0], sizes = [1, 128], strides = [1, 1]} : vector<4x128xf32> to vector<1x128xf32>
    %17 = vector.shape_cast %16 : vector<1x128xf32> to vector<1x128xf32>
    %18 = vector.broadcast %17 : vector<1x128xf32> to vector<8x128xf32>
    %19 = tpu.concatenate %9, %12, %15, %18 in 1 : vector<8x128xf32>, vector<8x128xf32>, vector<8x128xf32>, vector<8x128xf32> -> vector<8x512xf32>
    %20 = arith.subf %1, %19 : vector<8x512xf32>
    %21 = math.absf %20 : vector<8x512xf32>
    %cst_4 = arith.constant dense<0.000000e+00> : vector<8x64xf32>
    %22 = tpu.matmul %21, %2, %cst_4 {dimension_numbers = #tpu.dot_dimension_numbers<[1], [0], [0], [1], [0, 0, 1, 1], [], []>, precision = #tpu.contract_precision<fp32>} : vector<8x512xf32>, vector<512x64xf32>, vector<8x64xf32> -> vector<8x64xf32>
    %23 = math.exp %22 : vector<8x64xf32>
    %24 = arith.addf %3, %23 : vector<8x64xf32>
    %c1_i32 = arith.constant 1 : i32
    %c4_i32_5 = arith.constant 4 : i32
    %25 = arith.muli %c1_i32, %c4_i32_5 : i32
    %26 = arith.index_cast %25 : i32 to index
    %c0_6 = arith.constant 0 : index
    %27 = vector.load %arg2[%26, %c0_6] : memref<8x128xf32, #tpu.memory_space<vmem>>, vector<4x128xf32>
    %28 = vector.extract_strided_slice %27 {offsets = [0, 0], sizes = [1, 128], strides = [1, 1]} : vector<4x128xf32> to vector<1x128xf32>
    %29 = vector.shape_cast %28 : vector<1x128xf32> to vector<1x128xf32>
    %30 = vector.broadcast %29 : vector<1x128xf32> to vector<8x128xf32>
    %31 = vector.extract_strided_slice %27 {offsets = [1, 0], sizes = [1, 128], strides = [1, 1]} : vector<4x128xf32> to vector<1x128xf32>
    %32 = vector.shape_cast %31 : vector<1x128xf32> to vector<1x128xf32>
    %33 = vector.broadcast %32 : vector<1x128xf32> to vector<8x128xf32>
    %34 = vector.extract_strided_slice %27 {offsets = [2, 0], sizes = [1, 128], strides = [1, 1]} : vector<4x128xf32> to vector<1x128xf32>
    %35 = vector.shape_cast %34 : vector<1x128xf32> to vector<1x128xf32>
    %36 = vector.broadcast %35 : vector<1x128xf32> to vector<8x128xf32>
    %37 = vector.extract_strided_slice %27 {offsets = [3, 0], sizes = [1, 128], strides = [1, 1]} : vector<4x128xf32> to vector<1x128xf32>
    %38 = vector.shape_cast %37 : vector<1x128xf32> to vector<1x128xf32>
    %39 = vector.broadcast %38 : vector<1x128xf32> to vector<8x128xf32>
    %40 = tpu.concatenate %30, %33, %36, %39 in 1 : vector<8x128xf32>, vector<8x128xf32>, vector<8x128xf32>, vector<8x128xf32> -> vector<8x512xf32>
    %41 = arith.subf %1, %40 : vector<8x512xf32>
    %42 = math.absf %41 : vector<8x512xf32>
    %cst_7 = arith.constant dense<0.000000e+00> : vector<8x64xf32>
    %43 = tpu.matmul %42, %2, %cst_7 {dimension_numbers = #tpu.dot_dimension_numbers<[1], [0], [0], [1], [0, 0, 1, 1], [], []>, precision = #tpu.contract_precision<fp32>} : vector<8x512xf32>, vector<512x64xf32>, vector<8x64xf32> -> vector<8x64xf32>
    %44 = math.exp %43 : vector<8x64xf32>
    %45 = arith.addf %24, %44 : vector<8x64xf32>
    %c2_i32 = arith.constant 2 : i32
    %c0_8 = arith.constant 0 : index
    %c0_9 = arith.constant 0 : index
    %46 = vector.load %arg4[%c0_8, %c0_9] : memref<8x64xf32, #tpu.memory_space<vmem>>, vector<8x64xf32>
    tpu.vector_store %arg4[%c0_8, %c0_9], %45 {strides = array<i32>} : memref<8x64xf32, #tpu.memory_space<vmem>>, vector<8x64xf32>,
    return
  }
  func.func @transform_0(%arg0: i32) -> (i32, i32) {
    %c0_i32 = arith.constant 0 : i32
    %c0_i32_0 = arith.constant 0 : i32
    return %arg0, %c0_i32 : i32, i32
  }
  func.func @transform_1(%arg0: i32) -> (i32, i32) {
    %c0_i32 = arith.constant 0 : i32
    %c0_i32_0 = arith.constant 0 : i32
    %c0_i32_1 = arith.constant 0 : i32
    return %c0_i32, %c0_i32_0 : i32, i32
  }
  func.func @transform_2(%arg0: i32) -> (i32, i32) {
    %c0_i32 = arith.constant 0 : i32
    %c0_i32_0 = arith.constant 0 : i32
    %c0_i32_1 = arith.constant 0 : i32
    return %c0_i32, %c0_i32_0 : i32, i32
  }
  func.func @transform_3(%arg0: i32) -> (i32, i32) {
    %c0_i32 = arith.constant 0 : i32
    %c0_i32_0 = arith.constant 0 : i32
    return %arg0, %c0_i32 : i32, i32
  }
}

</mosaic_0001>

<llo_original>
// kernel: tpu_custom_call.1
$region0: #{tpu_custom_call.1}
  #allocation0 [shape = 'u32[]', space=smem, size = 0x4, offset = 0x4, fixed_abs, tag = 'smem constant byte address 0x4 - core index']
  #allocation1 [shape = 'u32[144,128]{1,0:T(1,128)}', space=vmem, size = 0x12000, scoped, tag = 'internal scratch']
  %s0 = inlined_call_operand.vmem [shape: f32[8,128], index: 0, kind: input, shape index: {}]
  %s1 = inlined_call_operand.vmem [shape: f32[8,128], index: 1, kind: input, shape index: {}]
  %s2 = inlined_call_operand.vmem [shape: f32[512,64], index: 2, kind: input, shape index: {}]
  %s3 = inlined_call_operand.hbm [shape: f32[8,64], index: 3, kind: output, shape index: {}]
  %s4 = sld [smem:[#allocation0]]
  $region22: #{tpu_custom_call.1} parent=0
    _
  %s6 = ssub.s32 1, %s4
  %s7 = scalar_select 0, %s6, %s4
  $region1: #{tpu_custom_call.1} parent=0
    #allocation2 [shape = 'u8[4096]{0}', space=vmem, size = 0x1000, scoped, tag = 'output window, operand 0, single buffered']
    #allocation3 [shape = 's32[1]{0}', space=sflag, size = 0x4, scoped, tag = 'scoped memory for tpu_custom_call.1']
    %8 = vsyncpa [#allocation3], 0
    // Predicated region
    $region2: #{tpu_custom_call.1} parent=1 // pred_check
      _
    $region3: #{tpu_custom_call.1} parent=1 // pred_check_branch
      %10 = sbr.rel (0) target = $region5
    $region4: #{tpu_custom_call.1} parent=1 // pred_region
      _
    $region5: #{tpu_custom_call.1} parent=1 // pred_fallthru
      _
    // Predicated region
    $region6: #{tpu_custom_call.1} parent=1 // pred_check
      _
    $region7: #{tpu_custom_call.1} parent=1 // pred_check_branch
      %12 = sbr.rel (0) target = $region9
    $region8: #{tpu_custom_call.1} parent=1 // pred_region
      _
    $region9: #{tpu_custom_call.1} parent=1 // pred_fallthru
      _
    // Predicated region
    $region10: #{tpu_custom_call.1} parent=1 // pred_check
      _
    $region11: #{tpu_custom_call.1} parent=1 // pred_check_branch
      %14 = sbr.rel (0) target = $region13
    $region12: #{tpu_custom_call.1} parent=1 // pred_region
      _
    $region13: #{tpu_custom_call.1} parent=1 // pred_fallthru
      _
    %v15 = vld [vmem:[%s0] sm:$0xff]
    %v16 = vld [vmem:[%s2] sm:$0xff]
    %v17 = vld [vmem:[%s2 + $0x8] sm:$0xff]
    %v18 = vld [vmem:[%s2 + $0x10] sm:$0xff]
    %v19 = vld [vmem:[%s2 + $0x18] sm:$0xff]
    %v20 = vld [vmem:[%s2 + $0x20] sm:$0xff]
    %v21 = vld [vmem:[%s2 + $0x28] sm:$0xff]
    %v22 = vld [vmem:[%s2 + $0x30] sm:$0xff]
    %v23 = vld [vmem:[%s2 + $0x38] sm:$0xff]
    %v24 = vld [vmem:[%s2 + $0x40] sm:$0xff]
    %v25 = vld [vmem:[%s2 + $0x48] sm:$0xff]
    %v26 = vld [vmem:[%s2 + $0x50] sm:$0xff]
    %v27 = vld [vmem:[%s2 + $0x58] sm:$0xff]
    %v28 = vld [vmem:[%s2 + $0x60] sm:$0xff]
    %v29 = vld [vmem:[%s2 + $0x68] sm:$0xff]
    %v30 = vld [vmem:[%s2 + $0x70] sm:$0xff]
    %v31 = vld [vmem:[%s2 + $0x78] sm:$0xff]
    %v32 = vld [vmem:[%s2 + $0x80] sm:$0xff]
    %v33 = vld [vmem:[%s2 + $0x88] sm:$0xff]
    %v34 = vld [vmem:[%s2 + $0x90] sm:$0xff]
    %v35 = vld [vmem:[%s2 + $0x98] sm:$0xff]
    %v36 = vld [vmem:[%s2 + $0xa0] sm:$0xff]
    %v37 = vld [vmem:[%s2 + $0xa8] sm:$0xff]
    %v38 = vld [vmem:[%s2 + $0xb0] sm:$0xff]
    %v39 = vld [vmem:[%s2 + $0xb8] sm:$0xff]
    %v40 = vld [vmem:[%s2 + $0xc0] sm:$0xff]
    %v41 = vld [vmem:[%s2 + $0xc8] sm:$0xff]
    %v42 = vld [vmem:[%s2 + $0xd0] sm:$0xff]
    %v43 = vld [vmem:[%s2 + $0xd8] sm:$0xff]
    %v44 = vld [vmem:[%s2 + $0xe0] sm:$0xff]
    %v45 = vld [vmem:[%s2 + $0xe8] sm:$0xff]
    %v46 = vld [vmem:[%s2 + $0xf0] sm:$0xff]
    %v47 = vld [vmem:[%s2 + $0xf8] sm:$0xff]
    %v48 = vld [vmem:[%s2 + $0x100] sm:$0xff]
    %v49 = vld [vmem:[%s2 + $0x108] sm:$0xff]
    %v50 = vld [vmem:[%s2 + $0x110] sm:$0xff]
    %v51 = vld [vmem:[%s2 + $0x118] sm:$0xff]
    %v52 = vld [vmem:[%s2 + $0x120] sm:$0xff]
    %v53 = vld [vmem:[%s2 + $0x128] sm:$0xff]
    %v54 = vld [vmem:[%s2 + $0x130] sm:$0xff]
    %v55 = vld [vmem:[%s2 + $0x138] sm:$0xff]
    %v56 = vld [vmem:[%s2 + $0x140] sm:$0xff]
    %v57 = vld [vmem:[%s2 + $0x148] sm:$0xff]
    %v58 = vld [vmem:[%s2 + $0x150] sm:$0xff]
    %v59 = vld [vmem:[%s2 + $0x158] sm:$0xff]
    %v60 = vld [vmem:[%s2 + $0x160] sm:$0xff]
    %v61 = vld [vmem:[%s2 + $0x168] sm:$0xff]
    %v62 = vld [vmem:[%s2 + $0x170] sm:$0xff]
    %v63 = vld [vmem:[%s2 + $0x178] sm:$0xff]
    %v64 = vld [vmem:[%s2 + $0x180] sm:$0xff]
    %v65 = vld [vmem:[%s2 + $0x188] sm:$0xff]
    %v66 = vld [vmem:[%s2 + $0x190] sm:$0xff]
    %v67 = vld [vmem:[%s2 + $0x198] sm:$0xff]
    %v68 = vld [vmem:[%s2 + $0x1a0] sm:$0xff]
    %v69 = vld [vmem:[%s2 + $0x1a8] sm:$0xff]
    %v70 = vld [vmem:[%s2 + $0x1b0] sm:$0xff]
    %v71 = vld [vmem:[%s2 + $0x1b8] sm:$0xff]
    %v72 = vld [vmem:[%s2 + $0x1c0] sm:$0xff]
    %v73 = vld [vmem:[%s2 + $0x1c8] sm:$0xff]
    %v74 = vld [vmem:[%s2 + $0x1d0] sm:$0xff]
    %v75 = vld [vmem:[%s2 + $0x1d8] sm:$0xff]
    %v76 = vld [vmem:[%s2 + $0x1e0] sm:$0xff]
    %v77 = vld [vmem:[%s2 + $0x1e8] sm:$0xff]
    %v78 = vld [vmem:[%s2 + $0x1f0] sm:$0xff]
    %v79 = vld [vmem:[%s2 + $0x1f8] sm:$0xff]
    %v80 = vld [vmem:[%s1] sm:$0xf]
    %v81 = vlaneseq
    %v82 = vshrl.u32 %v81, 7
    %v83 = vsub.s32 0, %v82
    %v84 = vrot.slane %v80, %v83
    %v85 = vlaneseq
    %v86 = vshrl.u32 %v85, 7
    %v87 = vsub.s32 1, %v86
    %v88 = vrot.slane %v80, %v87
    %v89 = vlaneseq
    %v90 = vshrl.u32 %v89, 7
    %v91 = vsub.s32 2, %v90
    %v92 = vrot.slane %v80, %v91
    %v93 = vlaneseq
    %v94 = vshrl.u32 %v93, 7
    %v95 = vsub.s32 3, %v94
    %v96 = vrot.slane %v80, %v95
    %v97 = vsub.f32 %v15, %v84
    %v98 = vsub.f32 %v15, %v88
    %v99 = vsub.f32 %v15, %v92
    %v100 = vsub.f32 %v15, %v96
    %v101 = vand.u32 2147483647, %v97
    %v102 = vand.u32 2147483647, %v98
    %v103 = vand.u32 2147483647, %v99
    %v104 = vand.u32 2147483647, %v100
    %105 = vmatprep.subr.mxu0 0.0
    %v106 = vand.u32 %v16, 4294901760
    %107 = vmatpush1.msra.mxu0 %v106
    %108 = vmatprep.subr.mxu0 0.0
    %v109 = vand.u32 %v17, 4294901760
    %110 = vmatpush1.msra.mxu0 %v109
    %111 = vmatprep.subr.mxu0 0.0
    %v112 = vand.u32 %v18, 4294901760
    %113 = vmatpush1.msra.mxu0 %v112
    %114 = vmatprep.subr.mxu0 0.0
    %v115 = vand.u32 %v19, 4294901760
    %116 = vmatpush1.msra.mxu0 %v115
    %117 = vmatprep.subr.mxu0 0.0
    %v118 = vand.u32 %v20, 4294901760
    %119 = vmatpush1.msra.mxu0 %v118
    %120 = vmatprep.subr.mxu0 0.0
    %v121 = vand.u32 %v21, 4294901760
    %122 = vmatpush1.msra.mxu0 %v121
    %123 = vmatprep.subr.mxu0 0.0
    %v124 = vand.u32 %v22, 4294901760
    %125 = vmatpush1.msra.mxu0 %v124
    %126 = vmatprep.subr.mxu0 0.0
    %v127 = vand.u32 %v23, 4294901760
    %128 = vmatpush1.msra.mxu0 %v127
    %129 = vmatprep.subr.mxu0 0.0
    %v130 = vand.u32 %v24, 4294901760
    %131 = vmatpush1.msra.mxu0 %v130
    %132 = vmatprep.subr.mxu0 0.0
    %v133 = vand.u32 %v25, 4294901760
    %134 = vmatpush1.msra.mxu0 %v133
    %135 = vmatprep.subr.mxu0 0.0
    %v136 = vand.u32 %v26, 4294901760
    %137 = vmatpush1.msra.mxu0 %v136
    %138 = vmatprep.subr.mxu0 0.0
    %v139 = vand.u32 %v27, 4294901760
    %140 = vmatpush1.msra.mxu0 %v139
    %141 = vmatprep.subr.mxu0 0.0
    %v142 = vand.u32 %v28, 4294901760
    %143 = vmatpush1.msra.mxu0 %v142
    %144 = vmatprep.subr.mxu0 0.0
    %v145 = vand.u32 %v29, 4294901760
    %146 = vmatpush1.msra.mxu0 %v145
    %147 = vmatprep.subr.mxu0 0.0
    %v148 = vand.u32 %v30, 4294901760
    %149 = vmatpush1.msra.mxu0 %v148
    %150 = vmatprep.subr.mxu0 0.0
    %v151 = vand.u32 %v31, 4294901760
    %152 = vmatpush1.msra.mxu0 %v151
    %153 = vmatprep.subr.mxu0 0.0
    %v154 = vand.u32 %v32, 4294901760
    %155 = vmatpush1.msra.mxu0 %v154
    %156 = vmatprep.subr.mxu0 0.0
    %v157 = vand.u32 %v33, 4294901760
    %158 = vmatpush1.msra.mxu0 %v157
    %159 = vmatprep.subr.mxu0 0.0
    %v160 = vand.u32 %v34, 4294901760
    %161 = vmatpush1.msra.mxu0 %v160
    %162 = vmatprep.subr.mxu0 0.0
    %v163 = vand.u32 %v35, 4294901760
    %164 = vmatpush1.msra.mxu0 %v163
    %165 = vmatprep.subr.mxu0 0.0
    %v166 = vand.u32 %v36, 4294901760
    %167 = vmatpush1.msra.mxu0 %v166
    %168 = vmatprep.subr.mxu0 0.0
    %v169 = vand.u32 %v37, 4294901760
    %170 = vmatpush1.msra.mxu0 %v169
    %171 = vmatprep.subr.mxu0 0.0
    %v172 = vand.u32 %v38, 4294901760
    %173 = vmatpush1.msra.mxu0 %v172
    %174 = vmatprep.subr.mxu0 0.0
    %v175 = vand.u32 %v39, 4294901760
    %176 = vmatpush1.msra.mxu0 %v175
    %177 = vmatprep.subr.mxu0 0.0
    %v178 = vand.u32 %v40, 4294901760
    %179 = vmatpush1.msra.mxu0 %v178
    %180 = vmatprep.subr.mxu0 0.0
    %v181 = vand.u32 %v41, 4294901760
    %182 = vmatpush1.msra.mxu0 %v181
    %183 = vmatprep.subr.mxu0 0.0
    %v184 = vand.u32 %v42, 4294901760
    %185 = vmatpush1.msra.mxu0 %v184
    %186 = vmatprep.subr.mxu0 0.0
    %v187 = vand.u32 %v43, 4294901760
    %188 = vmatpush1.msra.mxu0 %v187
    %189 = vmatprep.subr.mxu0 0.0
    %v190 = vand.u32 %v44, 4294901760
    %191 = vmatpush1.msra.mxu0 %v190
    %192 = vmatprep.subr.mxu0 0.0
    %v193 = vand.u32 %v45, 4294901760
    %194 = vmatpush1.msra.mxu0 %v193
    %195 = vmatprep.subr.mxu0 0.0
    %v196 = vand.u32 %v46, 4294901760
    %197 = vmatpush1.msra.mxu0 %v196
    %198 = vmatprep.subr.mxu0 0.0
    %v199 = vand.u32 %v47, 4294901760
    %200 = vmatpush1.msra.mxu0 %v199
    %v201 = vand.u32 %v102, 4294901760
    %v202 = vsub.f32 %v102, %v201
    %v203 = vand.u32 %v202, 4294901760
    %v204 = vsub.f32 %v202, %v203
    %v205 = vand.u32 %v204, 4294901760
    %206 = vmatprep.mubr.f32.mxu0 %v205
    %v207 = vand.u32 %v101, 4294901760
    %v208 = vsub.f32 %v101, %v207
    %v209 = vand.u32 %v208, 4294901760
    %v210 = vsub.f32 %v208, %v209
    %v211 = vand.u32 %v210, 4294901760
    %212 = vmatmul.mubr.f32.gmra.mrb[0].mxu0 %v211
    %v213 = vpop.f32.mrb[0].mxu0
    %v214 = vadd.f32 0.0, %v213
    %v215 = vpop.f32.mrb[0].mxu0
    %216 = vdwg.mxu0
    %217 = vmatprep.subr.mxu0 0.0
    %v218 = vand.u32 %v16, 4294901760
    %v219 = vsub.f32 %v16, %v218
    %v220 = vand.u32 %v219, 4294901760
    %v221 = vsub.f32 %v219, %v220
    %v222 = vand.u32 %v221, 4294901760
    %223 = vmatpush1.msra.mxu0 %v222
    %224 = vmatprep.subr.mxu0 0.0
    %v225 = vand.u32 %v17, 4294901760
    %v226 = vsub.f32 %v17, %v225
    %v227 = vand.u32 %v226, 4294901760
    %v228 = vsub.f32 %v226, %v227
    %v229 = vand.u32 %v228, 4294901760
    %230 = vmatpush1.msra.mxu0 %v229
    %231 = vmatprep.subr.mxu0 0.0
    %v232 = vand.u32 %v18, 4294901760
    %v233 = vsub.f32 %v18, %v232
    %v234 = vand.u32 %v233, 4294901760
    %v235 = vsub.f32 %v233, %v234
    %v236 = vand.u32 %v235, 4294901760
    %237 = vmatpush1.msra.mxu0 %v236
    %238 = vmatprep.subr.mxu0 0.0
    %v239 = vand.u32 %v19, 4294901760
    %v240 = vsub.f32 %v19, %v239
    %v241 = vand.u32 %v240, 4294901760
    %v242 = vsub.f32 %v240, %v241
    %v243 = vand.u32 %v242, 4294901760
    %244 = vmatpush1.msra.mxu0 %v243
    %245 = vmatprep.subr.mxu0 0.0
    %v246 = vand.u32 %v20, 4294901760
    %v247 = vsub.f32 %v20, %v246
    %v248 = vand.u32 %v247, 4294901760
    %v249 = vsub.f32 %v247, %v248
    %v250 = vand.u32 %v249, 4294901760
    %251 = vmatpush1.msra.mxu0 %v250
    %252 = vmatprep.subr.mxu0 0.0
    %v253 = vand.u32 %v21, 4294901760
    %v254 = vsub.f32 %v21, %v253
    %v255 = vand.u32 %v254, 4294901760
    %v256 = vsub.f32 %v254, %v255
    %v257 = vand.u32 %v256, 4294901760
    %258 = vmatpush1.msra.mxu0 %v257
    %259 = vmatprep.subr.mxu0 0.0
    %v260 = vand.u32 %v22, 4294901760
    %v261 = vsub.f32 %v22, %v260
    %v262 = vand.u32 %v261, 4294901760
    %v263 = vsub.f32 %v261, %v262
    %v264 = vand.u32 %v263, 4294901760
    %265 = vmatpush1.msra.mxu0 %v264
    %266 = vmatprep.subr.mxu0 0.0
    %v267 = vand.u32 %v23, 4294901760
    %v268 = vsub.f32 %v23, %v267
    %v269 = vand.u32 %v268, 4294901760
    %v270 = vsub.f32 %v268, %v269
    %v271 = vand.u32 %v270, 4294901760
    %272 = vmatpush1.msra.mxu0 %v271
    %273 = vmatprep.subr.mxu0 0.0
    %v274 = vand.u32 %v24, 4294901760
    %v275 = vsub.f32 %v24, %v274
    %v276 = vand.u32 %v275, 4294901760
    %v277 = vsub.f32 %v275, %v276
    %v278 = vand.u32 %v277, 4294901760
    %279 = vmatpush1.msra.mxu0 %v278
    %280 = vmatprep.subr.mxu0 0.0
    %v281 = vand.u32 %v25, 4294901760
    %v282 = vsub.f32 %v25, %v281
    %v283 = vand.u32 %v282, 4294901760
    %v284 = vsub.f32 %v282, %v283
    %v285 = vand.u32 %v284, 4294901760
    %286 = vmatpush1.msra.mxu0 %v285
    %287 = vmatprep.subr.mxu0 0.0
    %v288 = vand.u32 %v26, 4294901760
    %v289 = vsub.f32 %v26, %v288
    %v290 = vand.u32 %v289, 4294901760
    %v291 = vsub.f32 %v289, %v290
    %v292 = vand.u32 %v291, 4294901760
    %293 = vmatpush1.msra.mxu0 %v292
    %294 = vmatprep.subr.mxu0 0.0
    %v295 = vand.u32 %v27, 4294901760
    %v296 = vsub.f32 %v27, %v295
    %v297 = vand.u32 %v296, 4294901760
    %v298 = vsub.f32 %v296, %v297
    %v299 = vand.u32 %v298, 4294901760
    %300 = vmatpush1.msra.mxu0 %v299
    %301 = vmatprep.subr.mxu0 0.0
    %v302 = vand.u32 %v28, 4294901760
    %v303 = vsub.f32 %v28, %v302
    %v304 = vand.u32 %v303, 4294901760
    %v305 = vsub.f32 %v303, %v304
    %v306 = vand.u32 %v305, 4294901760
    %307 = vmatpush1.msra.mxu0 %v306
    %308 = vmatprep.subr.mxu0 0.0
    %v309 = vand.u32 %v29, 4294901760
    %v310 = vsub.f32 %v29, %v309
    %v311 = vand.u32 %v310, 4294901760
    %v312 = vsub.f32 %v310, %v311
    %v313 = vand.u32 %v312, 4294901760
    %314 = vmatpush1.msra.mxu0 %v313
    %315 = vmatprep.subr.mxu0 0.0
    %v316 = vand.u32 %v30, 4294901760
    %v317 = vsub.f32 %v30, %v316
    %v318 = vand.u32 %v317, 4294901760
    %v319 = vsub.f32 %v317, %v318
    %v320 = vand.u32 %v319, 4294901760
    %321 = vmatpush1.msra.mxu0 %v320
    %322 = vmatprep.subr.mxu0 0.0
    %v323 = vand.u32 %v31, 4294901760
    %v324 = vsub.f32 %v31, %v323
    %v325 = vand.u32 %v324, 4294901760
    %v326 = vsub.f32 %v324, %v325
    %v327 = vand.u32 %v326, 4294901760
    %328 = vmatpush1.msra.mxu0 %v327
    %329 = vmatprep.subr.mxu0 0.0
    %v330 = vand.u32 %v32, 4294901760
    %v331 = vsub.f32 %v32, %v330
    %v332 = vand.u32 %v331, 4294901760
    %v333 = vsub.f32 %v331, %v332
    %v334 = vand.u32 %v333, 4294901760
    %335 = vmatpush1.msra.mxu0 %v334
    %336 = vmatprep.subr.mxu0 0.0
    %v337 = vand.u32 %v33, 4294901760
    %v338 = vsub.f32 %v33, %v337
    %v339 = vand.u32 %v338, 4294901760
    %v340 = vsub.f32 %v338, %v339
    %v341 = vand.u32 %v340, 4294901760
    %342 = vmatpush1.msra.mxu0 %v341
    %343 = vmatprep.subr.mxu0 0.0
    %v344 = vand.u32 %v34, 4294901760
    %v345 = vsub.f32 %v34, %v344
    %v346 = vand.u32 %v345, 4294901760
    %v347 = vsub.f32 %v345, %v346
    %v348 = vand.u32 %v347, 4294901760
    %349 = vmatpush1.msra.mxu0 %v348
    %350 = vmatprep.subr.mxu0 0.0
    %v351 = vand.u32 %v35, 4294901760
    %v352 = vsub.f32 %v35, %v351
    %v353 = vand.u32 %v352, 4294901760
    %v354 = vsub.f32 %v352, %v353
    %v355 = vand.u32 %v354, 4294901760
    %356 = vmatpush1.msra.mxu0 %v355
    %357 = vmatprep.subr.mxu0 0.0
    %v358 = vand.u32 %v36, 4294901760
    %v359 = vsub.f32 %v36, %v358
    %v360 = vand.u32 %v359, 4294901760
    %v361 = vsub.f32 %v359, %v360
    %v362 = vand.u32 %v361, 4294901760
    %363 = vmatpush1.msra.mxu0 %v362
    %364 = vmatprep.subr.mxu0 0.0
    %v365 = vand.u32 %v37, 4294901760
    %v366 = vsub.f32 %v37, %v365
    %v367 = vand.u32 %v366, 4294901760
    %v368 = vsub.f32 %v366, %v367
    %v369 = vand.u32 %v368, 4294901760
    %370 = vmatpush1.msra.mxu0 %v369
    %371 = vmatprep.subr.mxu0 0.0
    %v372 = vand.u32 %v38, 4294901760
    %v373 = vsub.f32 %v38, %v372
    %v374 = vand.u32 %v373, 4294901760
    %v375 = vsub.f32 %v373, %v374
    %v376 = vand.u32 %v375, 4294901760
    %377 = vmatpush1.msra.mxu0 %v376
    %378 = vmatprep.subr.mxu0 0.0
    %v379 = vand.u32 %v39, 4294901760
    %v380 = vsub.f32 %v39, %v379
    %v381 = vand.u32 %v380, 4294901760
    %v382 = vsub.f32 %v380, %v381
    %v383 = vand.u32 %v382, 4294901760
    %384 = vmatpush1.msra.mxu0 %v383
    %385 = vmatprep.subr.mxu0 0.0
    %v386 = vand.u32 %v40, 4294901760
    %v387 = vsub.f32 %v40, %v386
    %v388 = vand.u32 %v387, 4294901760
    %v389 = vsub.f32 %v387, %v388
    %v390 = vand.u32 %v389, 4294901760
    %391 = vmatpush1.msra.mxu0 %v390
    %392 = vmatprep.subr.mxu0 0.0
    %v393 = vand.u32 %v41, 4294901760
    %v394 = vsub.f32 %v41, %v393
    %v395 = vand.u32 %v394, 4294901760
    %v396 = vsub.f32 %v394, %v395
    %v397 = vand.u32 %v396, 4294901760
    %398 = vmatpush1.msra.mxu0 %v397
    %399 = vmatprep.subr.mxu0 0.0
    %v400 = vand.u32 %v42, 4294901760
    %v401 = vsub.f32 %v42, %v400
    %v402 = vand.u32 %v401, 4294901760
    %v403 = vsub.f32 %v401, %v402
    %v404 = vand.u32 %v403, 4294901760
    %405 = vmatpush1.msra.mxu0 %v404
    %406 = vmatprep.subr.mxu0 0.0
    %v407 = vand.u32 %v43, 4294901760
    %v408 = vsub.f32 %v43, %v407
    %v409 = vand.u32 %v408, 4294901760
    %v410 = vsub.f32 %v408, %v409
    %v411 = vand.u32 %v410, 4294901760
    %412 = vmatpush1.msra.mxu0 %v411
    %413 = vmatprep.subr.mxu0 0.0
    %v414 = vand.u32 %v44, 4294901760
    %v415 = vsub.f32 %v44, %v414
    %v416 = vand.u32 %v415, 4294901760
    %v417 = vsub.f32 %v415, %v416
    %v418 = vand.u32 %v417, 4294901760
    %419 = vmatpush1.msra.mxu0 %v418
    %420 = vmatprep.subr.mxu0 0.0
    %v421 = vand.u32 %v45, 4294901760
    %v422 = vsub.f32 %v45, %v421
    %v423 = vand.u32 %v422, 4294901760
    %v424 = vsub.f32 %v422, %v423
    %v425 = vand.u32 %v424, 4294901760
    %426 = vmatpush1.msra.mxu0 %v425
    %427 = vmatprep.subr.mxu0 0.0
    %v428 = vand.u32 %v46, 4294901760
    %v429 = vsub.f32 %v46, %v428
    %v430 = vand.u32 %v429, 4294901760
    %v431 = vsub.f32 %v429, %v430
    %v432 = vand.u32 %v431, 4294901760
    %433 = vmatpush1.msra.mxu0 %v432
    %434 = vmatprep.subr.mxu0 0.0
    %v435 = vand.u32 %v47, 4294901760
    %v436 = vsub.f32 %v47, %v435
    %v437 = vand.u32 %v436, 4294901760
    %v438 = vsub.f32 %v436, %v437
    %v439 = vand.u32 %v438, 4294901760
    %440 = vmatpush1.msra.mxu0 %v439
    %v441 = vand.u32 %v102, 4294901760
    %442 = vmatprep.mubr.f32.mxu0 %v441
    %v443 = vand.u32 %v101, 4294901760
    %444 = vmatmul.mubr.f32.gmra.mrb[0].mxu0 %v443
    %v445 = vpop.f32.mrb[0].mxu0
    %v446 = vadd.f32 %v214, %v445
    %v447 = vpop.f32.mrb[0].mxu0
    %448 = vdwg.mxu0
    %449 = vmatprep.subr.mxu0 0.0
    %v450 = vand.u32 %v16, 4294901760
    %v451 = vsub.f32 %v16, %v450
    %452 = vmatpush1.msra.mxu0 %v451
    %453 = vmatprep.subr.mxu0 0.0
    %v454 = vand.u32 %v17, 4294901760
    %v455 = vsub.f32 %v17, %v454
    %456 = vmatpush1.msra.mxu0 %v455
    %457 = vmatprep.subr.mxu0 0.0
    %v458 = vand.u32 %v18, 4294901760
    %v459 = vsub.f32 %v18, %v458
    %460 = vmatpush1.msra.mxu0 %v459
    %461 = vmatprep.subr.mxu0 0.0
    %v462 = vand.u32 %v19, 4294901760
    %v463 = vsub.f32 %v19, %v462
    %464 = vmatpush1.msra.mxu0 %v463
    %465 = vmatprep.subr.mxu0 0.0
    %v466 = vand.u32 %v20, 4294901760
    %v467 = vsub.f32 %v20, %v466
    %468 = vmatpush1.msra.mxu0 %v467
    %469 = vmatprep.subr.mxu0 0.0
    %v470 = vand.u32 %v21, 4294901760
    %v471 = vsub.f32 %v21, %v470
    %472 = vmatpush1.msra.mxu0 %v471
    %473 = vmatprep.subr.mxu0 0.0
    %v474 = vand.u32 %v22, 4294901760
    %v475 = vsub.f32 %v22, %v474
    %476 = vmatpush1.msra.mxu0 %v475
    %477 = vmatprep.subr.mxu0 0.0
    %v478 = vand.u32 %v23, 4294901760
    %v479 = vsub.f32 %v23, %v478
    %480 = vmatpush1.msra.mxu0 %v479
    %481 = vmatprep.subr.mxu0 0.0
    %v482 = vand.u32 %v24, 4294901760
    %v483 = vsub.f32 %v24, %v482
    %484 = vmatpush1.msra.mxu0 %v483
    %485 = vmatprep.subr.mxu0 0.0
    %v486 = vand.u32 %v25, 4294901760
    %v487 = vsub.f32 %v25, %v486
    %488 = vmatpush1.msra.mxu0 %v487
    %489 = vmatprep.subr.mxu0 0.0
    %v490 = vand.u32 %v26, 4294901760
    %v491 = vsub.f32 %v26, %v490
    %492 = vmatpush1.msra.mxu0 %v491
    %493 = vmatprep.subr.mxu0 0.0
    %v494 = vand.u32 %v27, 4294901760
    %v495 = vsub.f32 %v27, %v494
    %496 = vmatpush1.msra.mxu0 %v495
    %497 = vmatprep.subr.mxu0 0.0
    %v498 = vand.u32 %v28, 4294901760
    %v499 = vsub.f32 %v28, %v498
    %500 = vmatpush1.msra.mxu0 %v499
    %501 = vmatprep.subr.mxu0 0.0
    %v502 = vand.u32 %v29, 4294901760
    %v503 = vsub.f32 %v29, %v502
    %504 = vmatpush1.msra.mxu0 %v503
    %505 = vmatprep.subr.mxu0 0.0
    %v506 = vand.u32 %v30, 4294901760
    %v507 = vsub.f32 %v30, %v506
    %508 = vmatpush1.msra.mxu0 %v507
    %509 = vmatprep.subr.mxu0 0.0
    %v510 = vand.u32 %v31, 4294901760
    %v511 = vsub.f32 %v31, %v510
    %512 = vmatpush1.msra.mxu0 %v511
    %513 = vmatprep.subr.mxu0 0.0
    %v514 = vand.u32 %v32, 4294901760
    %v515 = vsub.f32 %v32, %v514
    %516 = vmatpush1.msra.mxu0 %v515
    %517 = vmatprep.subr.mxu0 0.0
    %v518 = vand.u32 %v33, 4294901760
    %v519 = vsub.f32 %v33, %v518
    %520 = vmatpush1.msra.mxu0 %v519
    %521 = vmatprep.subr.mxu0 0.0
    %v522 = vand.u32 %v34, 4294901760
    %v523 = vsub.f32 %v34, %v522
    %524 = vmatpush1.msra.mxu0 %v523
    %525 = vmatprep.subr.mxu0 0.0
    %v526 = vand.u32 %v35, 4294901760
    %v527 = vsub.f32 %v35, %v526
    %528 = vmatpush1.msra.mxu0 %v527
    %529 = vmatprep.subr.mxu0 0.0
    %v530 = vand.u32 %v36, 4294901760
    %v531 = vsub.f32 %v36, %v530
    %532 = vmatpush1.msra.mxu0 %v531
    %533 = vmatprep.subr.mxu0 0.0
    %v534 = vand.u32 %v37, 4294901760
    %v535 = vsub.f32 %v37, %v534
    %536 = vmatpush1.msra.mxu0 %v535
    %537 = vmatprep.subr.mxu0 0.0
    %v538 = vand.u32 %v38, 4294901760
    %v539 = vsub.f32 %v38, %v538
    %540 = vmatpush1.msra.mxu0 %v539
    %541 = vmatprep.subr.mxu0 0.0
    %v542 = vand.u32 %v39, 4294901760
    %v543 = vsub.f32 %v39, %v542
    %544 = vmatpush1.msra.mxu0 %v543
    %545 = vmatprep.subr.mxu0 0.0
    %v546 = vand.u32 %v40, 4294901760
    %v547 = vsub.f32 %v40, %v546
    %548 = vmatpush1.msra.mxu0 %v547
    %549 = vmatprep.subr.mxu0 0.0
    %v550 = vand.u32 %v41, 4294901760
    %v551 = vsub.f32 %v41, %v550
    %552 = vmatpush1.msra.mxu0 %v551
    %553 = vmatprep.subr.mxu0 0.0
    %v554 = vand.u32 %v42, 4294901760
    %v555 = vsub.f32 %v42, %v554
    %556 = vmatpush1.msra.mxu0 %v555
    %557 = vmatprep.subr.mxu0 0.0
    %v558 = vand.u32 %v43, 4294901760
    %v559 = vsub.f32 %v43, %v558
    %560 = vmatpush1.msra.mxu0 %v559
    %561 = vmatprep.subr.mxu0 0.0
    %v562 = vand.u32 %v44, 4294901760
    %v563 = vsub.f32 %v44, %v562
    %564 = vmatpush1.msra.mxu0 %v563
    %565 = vmatprep.subr.mxu0 0.0
    %v566 = vand.u32 %v45, 4294901760
    %v567 = vsub.f32 %v45, %v566
    %568 = vmatpush1.msra.mxu0 %v567
    %569 = vmatprep.subr.mxu0 0.0
    %v570 = vand.u32 %v46, 4294901760
    %v571 = vsub.f32 %v46, %v570
    %572 = vmatpush1.msra.mxu0 %v571
    %573 = vmatprep.subr.mxu0 0.0
    %v574 = vand.u32 %v47, 4294901760
    %v575 = vsub.f32 %v47, %v574
    %576 = vmatpush1.msra.mxu0 %v575
    %v577 = vand.u32 %v102, 4294901760
    %v578 = vsub.f32 %v102, %v577
    %579 = vmatprep.mubr.f32.mxu0 %v578
    %v580 = vand.u32 %v101, 4294901760
    %v581 = vsub.f32 %v101, %v580
    %582 = vmatmul.mubr.f32.gmra.mrb[0].mxu0 %v581
    %v583 = vpop.f32.mrb[0].mxu0
    %v584 = vadd.f32 %v446, %v583
    %v585 = vpop.f32.mrb[0].mxu0
    %586 = vdwg.mxu0
    %587 = vmatprep.subr.mxu0 0.0
    %v588 = vand.u32 %v16, 4294901760
    %589 = vmatpush1.msra.mxu0 %v588
    %590 = vmatprep.subr.mxu0 0.0
    %v591 = vand.u32 %v17, 4294901760
    %592 = vmatpush1.msra.mxu0 %v591
    %593 = vmatprep.subr.mxu0 0.0
    %v594 = vand.u32 %v18, 4294901760
    %595 = vmatpush1.msra.mxu0 %v594
    %596 = vmatprep.subr.mxu0 0.0
    %v597 = vand.u32 %v19, 4294901760
    %598 = vmatpush1.msra.mxu0 %v597
    %599 = vmatprep.subr.mxu0 0.0
    %v600 = vand.u32 %v20, 4294901760
    %601 = vmatpush1.msra.mxu0 %v600
    %602 = vmatprep.subr.mxu0 0.0
    %v603 = vand.u32 %v21, 4294901760
    %604 = vmatpush1.msra.mxu0 %v603
    %605 = vmatprep.subr.mxu0 0.0
    %v606 = vand.u32 %v22, 4294901760
    %607 = vmatpush1.msra.mxu0 %v606
    %608 = vmatprep.subr.mxu0 0.0
    %v609 = vand.u32 %v23, 4294901760
    %610 = vmatpush1.msra.mxu0 %v609
    %611 = vmatprep.subr.mxu0 0.0
    %v612 = vand.u32 %v24, 4294901760
    %613 = vmatpush1.msra.mxu0 %v612
    %614 = vmatprep.subr.mxu0 0.0
    %v615 = vand.u32 %v25, 4294901760
    %616 = vmatpush1.msra.mxu0 %v615
    %617 = vmatprep.subr.mxu0 0.0
    %v618 = vand.u32 %v26, 4294901760
    %619 = vmatpush1.msra.mxu0 %v618
    %620 = vmatprep.subr.mxu0 0.0
    %v621 = vand.u32 %v27, 4294901760
    %622 = vmatpush1.msra.mxu0 %v621
    %623 = vmatprep.subr.mxu0 0.0
    %v624 = vand.u32 %v28, 4294901760
    %625 = vmatpush1.msra.mxu0 %v624
    %626 = vmatprep.subr.mxu0 0.0
    %v627 = vand.u32 %v29, 4294901760
    %628 = vmatpush1.msra.mxu0 %v627
    %629 = vmatprep.subr.mxu0 0.0
    %v630 = vand.u32 %v30, 4294901760
    %631 = vmatpush1.msra.mxu0 %v630
    %632 = vmatprep.subr.mxu0 0.0
    %v633 = vand.u32 %v31, 4294901760
    %634 = vmatpush1.msra.mxu0 %v633
    %635 = vmatprep.subr.mxu0 0.0
    %v636 = vand.u32 %v32, 4294901760
    %637 = vmatpush1.msra.mxu0 %v636
    %638 = vmatprep.subr.mxu0 0.0
    %v639 = vand.u32 %v33, 4294901760
    %640 = vmatpush1.msra.mxu0 %v639
    %641 = vmatprep.subr.mxu0 0.0
    %v642 = vand.u32 %v34, 4294901760
    %643 = vmatpush1.msra.mxu0 %v642
    %644 = vmatprep.subr.mxu0 0.0
    %v645 = vand.u32 %v35, 4294901760
    %646 = vmatpush1.msra.mxu0 %v645
    %647 = vmatprep.subr.mxu0 0.0
    %v648 = vand.u32 %v36, 4294901760
    %649 = vmatpush1.msra.mxu0 %v648
    %650 = vmatprep.subr.mxu0 0.0
    %v651 = vand.u32 %v37, 4294901760
    %652 = vmatpush1.msra.mxu0 %v651
    %653 = vmatprep.subr.mxu0 0.0
    %v654 = vand.u32 %v38, 4294901760
    %655 = vmatpush1.msra.mxu0 %v654
    %656 = vmatprep.subr.mxu0 0.0
    %v657 = vand.u32 %v39, 4294901760
    %658 = vmatpush1.msra.mxu0 %v657
    %659 = vmatprep.subr.mxu0 0.0
    %v660 = vand.u32 %v40, 4294901760
    %661 = vmatpush1.msra.mxu0 %v660
    %662 = vmatprep.subr.mxu0 0.0
    %v663 = vand.u32 %v41, 4294901760
    %664 = vmatpush1.msra.mxu0 %v663
    %665 = vmatprep.subr.mxu0 0.0
    %v666 = vand.u32 %v42, 4294901760
    %667 = vmatpush1.msra.mxu0 %v666
    %668 = vmatprep.subr.mxu0 0.0
    %v669 = vand.u32 %v43, 4294901760
    %670 = vmatpush1.msra.mxu0 %v669
    %671 = vmatprep.subr.mxu0 0.0
    %v672 = vand.u32 %v44, 4294901760
    %673 = vmatpush1.msra.mxu0 %v672
    %674 = vmatprep.subr.mxu0 0.0
    %v675 = vand.u32 %v45, 4294901760
    %676 = vmatpush1.msra.mxu0 %v675
    %677 = vmatprep.subr.mxu0 0.0
    %v678 = vand.u32 %v46, 4294901760
    %679 = vmatpush1.msra.mxu0 %v678
    %680 = vmatprep.subr.mxu0 0.0
    %v681 = vand.u32 %v47, 4294901760
    %682 = vmatpush1.msra.mxu0 %v681
    %v683 = vand.u32 %v102, 4294901760
    %v684 = vsub.f32 %v102, %v683
    %v685 = vand.u32 %v684, 4294901760
    %686 = vmatprep.mubr.f32.mxu0 %v685
    %v687 = vand.u32 %v101, 4294901760
    %v688 = vsub.f32 %v101, %v687
    %v689 = vand.u32 %v688, 4294901760
    %690 = vmatmul.mubr.f32.gmra.mrb[0].mxu0 %v689
    %v691 = vpop.f32.mrb[0].mxu0
    %v692 = vadd.f32 %v584, %v691
    %v693 = vpop.f32.mrb[0].mxu0
    %694 = vdwg.mxu0
    %695 = vmatprep.subr.mxu0 0.0
    %v696 = vand.u32 %v16, 4294901760
    %v697 = vsub.f32 %v16, %v696
    %v698 = vand.u32 %v697, 4294901760
    %699 = vmatpush1.msra.mxu0 %v698
    %700 = vmatprep.subr.mxu0 0.0
    %v701 = vand.u32 %v17, 4294901760
    %v702 = vsub.f32 %v17, %v701
    %v703 = vand.u32 %v702, 4294901760
    %704 = vmatpush1.msra.mxu0 %v703
    %705 = vmatprep.subr.mxu0 0.0
    %v706 = vand.u32 %v18, 4294901760
    %v707 = vsub.f32 %v18, %v706
    %v708 = vand.u32 %v707, 4294901760
    %709 = vmatpush1.msra.mxu0 %v708
    %710 = vmatprep.subr.mxu0 0.0
    %v711 = vand.u32 %v19, 4294901760
    %v712 = vsub.f32 %v19, %v711
    %v713 = vand.u32 %v712, 4294901760
    %714 = vmatpush1.msra.mxu0 %v713
    %715 = vmatprep.subr.mxu0 0.0
    %v716 = vand.u32 %v20, 4294901760
    %v717 = vsub.f32 %v20, %v716
    %v718 = vand.u32 %v717, 4294901760
    %719 = vmatpush1.msra.mxu0 %v718
    %720 = vmatprep.subr.mxu0 0.0
    %v721 = vand.u32 %v21, 4294901760
    %v722 = vsub.f32 %v21, %v721
    %v723 = vand.u32 %v722, 4294901760
    %724 = vmatpush1.msra.mxu0 %v723
    %725 = vmatprep.subr.mxu0 0.0
    %v726 = vand.u32 %v22, 4294901760
    %v727 = vsub.f32 %v22, %v726
    %v728 = vand.u32 %v727, 4294901760
    %729 = vmatpush1.msra.mxu0 %v728
    %730 = vmatprep.subr.mxu0 0.0
    %v731 = vand.u32 %v23, 4294901760
    %v732 = vsub.f32 %v23, %v731
    %v733 = vand.u32 %v732, 4294901760
    %734 = vmatpush1.msra.mxu0 %v733
    %735 = vmatprep.subr.mxu0 0.0
    %v736 = vand.u32 %v24, 4294901760
    %v737 = vsub.f32 %v24, %v736
    %v738 = vand.u32 %v737, 4294901760
    %739 = vmatpush1.msra.mxu0 %v738
    %740 = vmatprep.subr.mxu0 0.0
    %v741 = vand.u32 %v25, 4294901760
    %v742 = vsub.f32 %v25, %v741
    %v743 = vand.u32 %v742, 4294901760
    %744 = vmatpush1.msra.mxu0 %v743
    %745 = vmatprep.subr.mxu0 0.0
    %v746 = vand.u32 %v26, 4294901760
    %v747 = vsub.f32 %v26, %v746
    %v748 = vand.u32 %v747, 4294901760
    %749 = vmatpush1.msra.mxu0 %v748
    %750 = vmatprep.subr.mxu0 0.0
    %v751 = vand.u32 %v27, 4294901760
    %v752 = vsub.f32 %v27, %v751
    %v753 = vand.u32 %v752, 4294901760
    %754 = vmatpush1.msra.mxu0 %v753
    %755 = vmatprep.subr.mxu0 0.0
    %v756 = vand.u32 %v28, 4294901760
    %v757 = vsub.f32 %v28, %v756
    %v758 = vand.u32 %v757, 4294901760
    %759 = vmatpush1.msra.mxu0 %v758
    %760 = vmatprep.subr.mxu0 0.0
    %v761 = vand.u32 %v29, 4294901760
    %v762 = vsub.f32 %v29, %v761
    %v763 = vand.u32 %v762, 4294901760
    %764 = vmatpush1.msra.mxu0 %v763
    %765 = vmatprep.subr.mxu0 0.0
    %v766 = vand.u32 %v30, 4294901760
    %v767 = vsub.f32 %v30, %v766
    %v768 = vand.u32 %v767, 4294901760
    %769 = vmatpush1.msra.mxu0 %v768
    %770 = vmatprep.subr.mxu0 0.0
    %v771 = vand.u32 %v31, 4294901760
    %v772 = vsub.f32 %v31, %v771
    %v773 = vand.u32 %v772, 4294901760
    %774 = vmatpush1.msra.mxu0 %v773
    %775 = vmatprep.subr.mxu0 0.0
    %v776 = vand.u32 %v32, 4294901760
    %v777 = vsub.f32 %v32, %v776
    %v778 = vand.u32 %v777, 4294901760
    %779 = vmatpush1.msra.mxu0 %v778
    %780 = vmatprep.subr.mxu0 0.0
    %v781 = vand.u32 %v33, 4294901760
    %v782 = vsub.f32 %v33, %v781
    %v783 = vand.u32 %v782, 4294901760
    %784 = vmatpush1.msra.mxu0 %v783
    %785 = vmatprep.subr.mxu0 0.0
    %v786 = vand.u32 %v34, 4294901760
    %v787 = vsub.f32 %v34, %v786
    %v788 = vand.u32 %v787, 4294901760
    %789 = vmatpush1.msra.mxu0 %v788
    %790 = vmatprep.subr.mxu0 0.0
    %v791 = vand.u32 %v35, 4294901760
    %v792 = vsub.f32 %v35, %v791
    %v793 = vand.u32 %v792, 4294901760
    %794 = vmatpush1.msra.mxu0 %v793
    %795 = vmatprep.subr.mxu0 0.0
    %v796 = vand.u32 %v36, 4294901760
    %v797 = vsub.f32 %v36, %v796
    %v798 = vand.u32 %v797, 4294901760
    %799 = vmatpush1.msra.mxu0 %v798
    %800 = vmatprep.subr.mxu0 0.0
    %v801 = vand.u32 %v37, 4294901760
    %v802 = vsub.f32 %v37, %v801
    %v803 = vand.u32 %v802, 4294901760
    %804 = vmatpush1.msra.mxu0 %v803
    %805 = vmatprep.subr.mxu0 0.0
    %v806 = vand.u32 %v38, 4294901760
    %v807 = vsub.f32 %v38, %v806
    %v808 = vand.u32 %v807, 4294901760
    %809 = vmatpush1.msra.mxu0 %v808
    %810 = vmatprep.subr.mxu0 0.0
    %v811 = vand.u32 %v39, 4294901760
    %v812 = vsub.f32 %v39, %v811
    %v813 = vand.u32 %v812, 4294901760
    %814 = vmatpush1.msra.mxu0 %v813
    %815 = vmatprep.subr.mxu0 0.0
    %v816 = vand.u32 %v40, 4294901760
    %v817 = vsub.f32 %v40, %v816
    %v818 = vand.u32 %v817, 4294901760
    %819 = vmatpush1.msra.mxu0 %v818
    %820 = vmatprep.subr.mxu0 0.0
    %v821 = vand.u32 %v41, 4294901760
    %v822 = vsub.f32 %v41, %v821
    %v823 = vand.u32 %v822, 4294901760
    %824 = vmatpush1.msra.mxu0 %v823
    %825 = vmatprep.subr.mxu0 0.0
    %v826 = vand.u32 %v42, 4294901760
    %v827 = vsub.f32 %v42, %v826
    %v828 = vand.u32 %v827, 4294901760
    %829 = vmatpush1.msra.mxu0 %v828
    %830 = vmatprep.subr.mxu0 0.0
    %v831 = vand.u32 %v43, 4294901760
    %v832 = vsub.f32 %v43, %v831
    %v833 = vand.u32 %v832, 4294901760
    %834 = vmatpush1.msra.mxu0 %v833
    %835 = vmatprep.subr.mxu0 0.0
    %v836 = vand.u32 %v44, 4294901760
    %v837 = vsub.f32 %v44, %v836
    %v838 = vand.u32 %v837, 4294901760
    %839 = vmatpush1.msra.mxu0 %v838
    %840 = vmatprep.subr.mxu0 0.0
    %v841 = vand.u32 %v45, 4294901760
    %v842 = vsub.f32 %v45, %v841
    %v843 = vand.u32 %v842, 4294901760
    %844 = vmatpush1.msra.mxu0 %v843
    %845 = vmatprep.subr.mxu0 0.0
    %v846 = vand.u32 %v46, 4294901760
    %v847 = vsub.f32 %v46, %v846
    %v848 = vand.u32 %v847, 4294901760
    %849 = vmatpush1.msra.mxu0 %v848
    %850 = vmatprep.subr.mxu0 0.0
    %v851 = vand.u32 %v47, 4294901760
    %v852 = vsub.f32 %v47, %v851
    %v853 = vand.u32 %v852, 4294901760
    %854 = vmatpush1.msra.mxu0 %v853
    %v855 = vand.u32 %v102, 4294901760
    %856 = vmatprep.mubr.f32.mxu0 %v855
    %v857 = vand.u32 %v101, 4294901760
    %858 = vmatmul.mubr.f32.gmra.mrb[0].mxu0 %v857
    %v859 = vpop.f32.mrb[0].mxu0
    %v860 = vadd.f32 %v692, %v859
    %v861 = vpop.f32.mrb[0].mxu0
    %862 = vdwg.mxu0
    %863 = vmatprep.subr.mxu0 0.0
    %v864 = vand.u32 %v16, 4294901760
    %865 = vmatpush1.msra.mxu0 %v864
    %866 = vmatprep.subr.mxu0 0.0
    %v867 = vand.u32 %v17, 4294901760
    %868 = vmatpush1.msra.mxu0 %v867
    %869 = vmatprep.subr.mxu0 0.0
    %v870 = vand.u32 %v18, 4294901760
    %871 = vmatpush1.msra.mxu0 %v870
    %872 = vmatprep.subr.mxu0 0.0
    %v873 = vand.u32 %v19, 4294901760
    %874 = vmatpush1.msra.mxu0 %v873
    %875 = vmatprep.subr.mxu0 0.0
    %v876 = vand.u32 %v20, 4294901760
    %877 = vmatpush1.msra.mxu0 %v876
    %878 = vmatprep.subr.mxu0 0.0
    %v879 = vand.u32 %v21, 4294901760
    %880 = vmatpush1.msra.mxu0 %v879
    %881 = vmatprep.subr.mxu0 0.0
    %v882 = vand.u32 %v22, 4294901760
    %883 = vmatpush1.msra.mxu0 %v882
    %884 = vmatprep.subr.mxu0 0.0
    %v885 = vand.u32 %v23, 4294901760
    %886 = vmatpush1.msra.mxu0 %v885
    %887 = vmatprep.subr.mxu0 0.0
    %v888 = vand.u32 %v24, 4294901760
    %889 = vmatpush1.msra.mxu0 %v888
    %890 = vmatprep.subr.mxu0 0.0
    %v891 = vand.u32 %v25, 4294901760
    %892 = vmatpush1.msra.mxu0 %v891
    %893 = vmatprep.subr.mxu0 0.0
    %v894 = vand.u32 %v26, 4294901760
    %895 = vmatpush1.msra.mxu0 %v894
    %896 = vmatprep.subr.mxu0 0.0
    %v897 = vand.u32 %v27, 4294901760
    %898 = vmatpush1.msra.mxu0 %v897
    %899 = vmatprep.subr.mxu0 0.0
    %v900 = vand.u32 %v28, 4294901760
    %901 = vmatpush1.msra.mxu0 %v900
    %902 = vmatprep.subr.mxu0 0.0
    %v903 = vand.u32 %v29, 4294901760
    %904 = vmatpush1.msra.mxu0 %v903
    %905 = vmatprep.subr.mxu0 0.0
    %v906 = vand.u32 %v30, 4294901760
    %907 = vmatpush1.msra.mxu0 %v906
    %908 = vmatprep.subr.mxu0 0.0
    %v909 = vand.u32 %v31, 4294901760
    %910 = vmatpush1.msra.mxu0 %v909
    %911 = vmatprep.subr.mxu0 0.0
    %v912 = vand.u32 %v32, 4294901760
    %913 = vmatpush1.msra.mxu0 %v912
    %914 = vmatprep.subr.mxu0 0.0
    %v915 = vand.u32 %v33, 4294901760
    %916 = vmatpush1.msra.mxu0 %v915
    %917 = vmatprep.subr.mxu0 0.0
    %v918 = vand.u32 %v34, 4294901760
    %919 = vmatpush1.msra.mxu0 %v918
    %920 = vmatprep.subr.mxu0 0.0
    %v921 = vand.u32 %v35, 4294901760
    %922 = vmatpush1.msra.mxu0 %v921
    %923 = vmatprep.subr.mxu0 0.0
    %v924 = vand.u32 %v36, 4294901760
    %925 = vmatpush1.msra.mxu0 %v924
    %926 = vmatprep.subr.mxu0 0.0
    %v927 = vand.u32 %v37, 4294901760
    %928 = vmatpush1.msra.mxu0 %v927
    %929 = vmatprep.subr.mxu0 0.0
    %v930 = vand.u32 %v38, 4294901760
    %931 = vmatpush1.msra.mxu0 %v930
    %932 = vmatprep.subr.mxu0 0.0
    %v933 = vand.u32 %v39, 4294901760
    %934 = vmatpush1.msra.mxu0 %v933
    %935 = vmatprep.subr.mxu0 0.0
    %v936 = vand.u32 %v40, 4294901760
    %937 = vmatpush1.msra.mxu0 %v936
    %938 = vmatprep.subr.mxu0 0.0
    %v939 = vand.u32 %v41, 4294901760
    %940 = vmatpush1.msra.mxu0 %v939
    %941 = vmatprep.subr.mxu0 0.0
    %v942 = vand.u32 %v42, 4294901760
    %943 = vmatpush1.msra.mxu0 %v942
    %944 = vmatprep.subr.mxu0 0.0
    %v945 = vand.u32 %v43, 4294901760
    %946 = vmatpush1.msra.mxu0 %v945
    %947 = vmatprep.subr.mxu0 0.0
    %v948 = vand.u32 %v44, 4294901760
    %949 = vmatpush1.msra.mxu0 %v948
    %950 = vmatprep.subr.mxu0 0.0
    %v951 = vand.u32 %v45, 4294901760
    %952 = vmatpush1.msra.mxu0 %v951
    %953 = vmatprep.subr.mxu0 0.0
    %v954 = vand.u32 %v46, 4294901760
    %955 = vmatpush1.msra.mxu0 %v954
    %956 = vmatprep.subr.mxu0 0.0
    %v957 = vand.u32 %v47, 4294901760
    %958 = vmatpush1.msra.mxu0 %v957
    %v959 = vand.u32 %v102, 4294901760
    %960 = vmatprep.mubr.f32.mxu0 %v959
    %v961 = vand.u32 %v101, 4294901760
    %962 = vmatmul.mubr.f32.gmra.mrb[0].mxu0 %v961
    %v963 = vpop.f32.mrb[0].mxu0
    %v964 = vadd.f32 %v860, %v963
    %v965 = vpop.f32.mrb[0].mxu0
    %966 = vdwg.mxu0
    %967 = vmatprep.subr.mxu0 0.0
    %v968 = vand.u32 %v48, 4294901760
    %969 = vmatpush1.msra.mxu0 %v968
    %970 = vmatprep.subr.mxu0 0.0
    %v971 = vand.u32 %v49, 4294901760
    %972 = vmatpush1.msra.mxu0 %v971
    %973 = vmatprep.subr.mxu0 0.0
    %v974 = vand.u32 %v50, 4294901760
    %975 = vmatpush1.msra.mxu0 %v974
    %976 = vmatprep.subr.mxu0 0.0
    %v977 = vand.u32 %v51, 4294901760
    %978 = vmatpush1.msra.mxu0 %v977
    %979 = vmatprep.subr.mxu0 0.0
    %v980 = vand.u32 %v52, 4294901760
    %981 = vmatpush1.msra.mxu0 %v980
    %982 = vmatprep.subr.mxu0 0.0
    %v983 = vand.u32 %v53, 4294901760
    %984 = vmatpush1.msra.mxu0 %v983
    %985 = vmatprep.subr.mxu0 0.0
    %v986 = vand.u32 %v54, 4294901760
    %987 = vmatpush1.msra.mxu0 %v986
    %988 = vmatprep.subr.mxu0 0.0
    %v989 = vand.u32 %v55, 4294901760
    %990 = vmatpush1.msra.mxu0 %v989
    %991 = vmatprep.subr.mxu0 0.0
    %v992 = vand.u32 %v56, 4294901760
    %993 = vmatpush1.msra.mxu0 %v992
    %994 = vmatprep.subr.mxu0 0.0
    %v995 = vand.u32 %v57, 4294901760
    %996 = vmatpush1.msra.mxu0 %v995
    %997 = vmatprep.subr.mxu0 0.0
    %v998 = vand.u32 %v58, 4294901760
    %999 = vmatpush1.msra.mxu0 %v998
    %1000 = vmatprep.subr.mxu0 0.0
    %v1001 = vand.u32 %v59, 4294901760
    %1002 = vmatpush1.msra.mxu0 %v1001
    %1003 = vmatprep.subr.mxu0 0.0
    %v1004 = vand.u32 %v60, 4294901760
    %1005 = vmatpush1.msra.mxu0 %v1004
    %1006 = vmatprep.subr.mxu0 0.0
    %v1007 = vand.u32 %v61, 4294901760
    %1008 = vmatpush1.msra.mxu0 %v1007
    %1009 = vmatprep.subr.mxu0 0.0
    %v1010 = vand.u32 %v62, 4294901760
    %1011 = vmatpush1.msra.mxu0 %v1010
    %1012 = vmatprep.subr.mxu0 0.0
    %v1013 = vand.u32 %v63, 4294901760
    %1014 = vmatpush1.msra.mxu0 %v1013
    %1015 = vmatprep.subr.mxu0 0.0
    %v1016 = vand.u32 %v64, 4294901760
    %1017 = vmatpush1.msra.mxu0 %v1016
    %1018 = vmatprep.subr.mxu0 0.0
    %v1019 = vand.u32 %v65, 4294901760
    %1020 = vmatpush1.msra.mxu0 %v1019
    %1021 = vmatprep.subr.mxu0 0.0
    %v1022 = vand.u32 %v66, 4294901760
    %1023 = vmatpush1.msra.mxu0 %v1022
    %1024 = vmatprep.subr.mxu0 0.0
    %v1025 = vand.u32 %v67, 4294901760
    %1026 = vmatpush1.msra.mxu0 %v1025
    %1027 = vmatprep.subr.mxu0 0.0
    %v1028 = vand.u32 %v68, 4294901760
    %1029 = vmatpush1.msra.mxu0 %v1028
    %1030 = vmatprep.subr.mxu0 0.0
    %v1031 = vand.u32 %v69, 4294901760
    %1032 = vmatpush1.msra.mxu0 %v1031
    %1033 = vmatprep.subr.mxu0 0.0
    %v1034 = vand.u32 %v70, 4294901760
    %1035 = vmatpush1.msra.mxu0 %v1034
    %1036 = vmatprep.subr.mxu0 0.0
    %v1037 = vand.u32 %v71, 4294901760
    %1038 = vmatpush1.msra.mxu0 %v1037
    %1039 = vmatprep.subr.mxu0 0.0
    %v1040 = vand.u32 %v72, 4294901760
    %1041 = vmatpush1.msra.mxu0 %v1040
    %1042 = vmatprep.subr.mxu0 0.0
    %v1043 = vand.u32 %v73, 4294901760
    %1044 = vmatpush1.msra.mxu0 %v1043
    %1045 = vmatprep.subr.mxu0 0.0
    %v1046 = vand.u32 %v74, 4294901760
    %1047 = vmatpush1.msra.mxu0 %v1046
    %1048 = vmatprep.subr.mxu0 0.0
    %v1049 = vand.u32 %v75, 4294901760
    %1050 = vmatpush1.msra.mxu0 %v1049
    %1051 = vmatprep.subr.mxu0 0.0
    %v1052 = vand.u32 %v76, 4294901760
    %1053 = vmatpush1.msra.mxu0 %v1052
    %1054 = vmatprep.subr.mxu0 0.0
    %v1055 = vand.u32 %v77, 4294901760
    %1056 = vmatpush1.msra.mxu0 %v1055
    %1057 = vmatprep.subr.mxu0 0.0
    %v1058 = vand.u32 %v78, 4294901760
    %1059 = vmatpush1.msra.mxu0 %v1058
    %1060 = vmatprep.subr.mxu0 0.0
    %v1061 = vand.u32 %v79, 4294901760
    %1062 = vmatpush1.msra.mxu0 %v1061
    %v1063 = vand.u32 %v104, 4294901760
    %v1064 = vsub.f32 %v104, %v1063
    %v1065 = vand.u32 %v1064, 4294901760
    %v1066 = vsub.f32 %v1064, %v1065
    %v1067 = vand.u32 %v1066, 4294901760
    %1068 = vmatprep.mubr.f32.mxu0 %v1067
    %v1069 = vand.u32 %v103, 4294901760
    %v1070 = vsub.f32 %v103, %v1069
    %v1071 = vand.u32 %v1070, 4294901760
    %v1072 = vsub.f32 %v1070, %v1071
    %v1073 = vand.u32 %v1072, 4294901760
    %1074 = vmatmul.mubr.f32.gmra.mrb[0].mxu0 %v1073
    %v1075 = vpop.f32.mrb[0].mxu0
    %v1076 = vadd.f32 %v964, %v1075
    %v1077 = vpop.f32.mrb[0].mxu0
    %1078 = vdwg.mxu0
    %1079 = vmatprep.subr.mxu0 0.0
    %v1080 = vand.u32 %v48, 4294901760
    %v1081 = vsub.f32 %v48, %v1080
    %v1082 = vand.u32 %v1081, 4294901760
    %v1083 = vsub.f32 %v1081, %v1082
    %v1084 = vand.u32 %v1083, 4294901760
    %1085 = vmatpush1.msra.mxu0 %v1084
    %1086 = vmatprep.subr.mxu0 0.0
    %v1087 = vand.u32 %v49, 4294901760
    %v1088 = vsub.f32 %v49, %v1087
    %v1089 = vand.u32 %v1088, 4294901760
    %v1090 = vsub.f32 %v1088, %v1089
    %v1091 = vand.u32 %v1090, 4294901760
    %1092 = vmatpush1.msra.mxu0 %v1091
    %1093 = vmatprep.subr.mxu0 0.0
    %v1094 = vand.u32 %v50, 4294901760
    %v1095 = vsub.f32 %v50, %v1094
    %v1096 = vand.u32 %v1095, 4294901760
    %v1097 = vsub.f32 %v1095, %v1096
    %v1098 = vand.u32 %v1097, 4294901760
    %1099 = vmatpush1.msra.mxu0 %v1098
    %1100 = vmatprep.subr.mxu0 0.0
    %v1101 = vand.u32 %v51, 4294901760
    %v1102 = vsub.f32 %v51, %v1101
    %v1103 = vand.u32 %v1102, 4294901760
    %v1104 = vsub.f32 %v1102, %v1103
    %v1105 = vand.u32 %v1104, 4294901760
    %1106 = vmatpush1.msra.mxu0 %v1105
    %1107 = vmatprep.subr.mxu0 0.0
    %v1108 = vand.u32 %v52, 4294901760
    %v1109 = vsub.f32 %v52, %v1108
    %v1110 = vand.u32 %v1109, 4294901760
    %v1111 = vsub.f32 %v1109, %v1110
    %v1112 = vand.u32 %v1111, 4294901760
    %1113 = vmatpush1.msra.mxu0 %v1112
    %1114 = vmatprep.subr.mxu0 0.0
    %v1115 = vand.u32 %v53, 4294901760
    %v1116 = vsub.f32 %v53, %v1115
    %v1117 = vand.u32 %v1116, 4294901760
    %v1118 = vsub.f32 %v1116, %v1117
    %v1119 = vand.u32 %v1118, 4294901760
    %1120 = vmatpush1.msra.mxu0 %v1119
    %1121 = vmatprep.subr.mxu0 0.0
    %v1122 = vand.u32 %v54, 4294901760
    %v1123 = vsub.f32 %v54, %v1122
    %v1124 = vand.u32 %v1123, 4294901760
    %v1125 = vsub.f32 %v1123, %v1124
    %v1126 = vand.u32 %v1125, 4294901760
    %1127 = vmatpush1.msra.mxu0 %v1126
    %1128 = vmatprep.subr.mxu0 0.0
    %v1129 = vand.u32 %v55, 4294901760
    %v1130 = vsub.f32 %v55, %v1129
    %v1131 = vand.u32 %v1130, 4294901760
    %v1132 = vsub.f32 %v1130, %v1131
    %v1133 = vand.u32 %v1132, 4294901760
    %1134 = vmatpush1.msra.mxu0 %v1133
    %1135 = vmatprep.subr.mxu0 0.0
    %v1136 = vand.u32 %v56, 4294901760
    %v1137 = vsub.f32 %v56, %v1136
    %v1138 = vand.u32 %v1137, 4294901760
    %v1139 = vsub.f32 %v1137, %v1138
    %v1140 = vand.u32 %v1139, 4294901760
    %1141 = vmatpush1.msra.mxu0 %v1140
    %1142 = vmatprep.subr.mxu0 0.0
    %v1143 = vand.u32 %v57, 4294901760
    %v1144 = vsub.f32 %v57, %v1143
    %v1145 = vand.u32 %v1144, 4294901760
    %v1146 = vsub.f32 %v1144, %v1145
    %v1147 = vand.u32 %v1146, 4294901760
    %1148 = vmatpush1.msra.mxu0 %v1147
    %1149 = vmatprep.subr.mxu0 0.0
    %v1150 = vand.u32 %v58, 4294901760
    %v1151 = vsub.f32 %v58, %v1150
    %v1152 = vand.u32 %v1151, 4294901760
    %v1153 = vsub.f32 %v1151, %v1152
    %v1154 = vand.u32 %v1153, 4294901760
    %1155 = vmatpush1.msra.mxu0 %v1154
    %1156 = vmatprep.subr.mxu0 0.0
    %v1157 = vand.u32 %v59, 4294901760
    %v1158 = vsub.f32 %v59, %v1157
    %v1159 = vand.u32 %v1158, 4294901760
    %v1160 = vsub.f32 %v1158, %v1159
    %v1161 = vand.u32 %v1160, 4294901760
    %1162 = vmatpush1.msra.mxu0 %v1161
    %1163 = vmatprep.subr.mxu0 0.0
    %v1164 = vand.u32 %v60, 4294901760
    %v1165 = vsub.f32 %v60, %v1164
    %v1166 = vand.u32 %v1165, 4294901760
    %v1167 = vsub.f32 %v1165, %v1166
    %v1168 = vand.u32 %v1167, 4294901760
    %1169 = vmatpush1.msra.mxu0 %v1168
    %1170 = vmatprep.subr.mxu0 0.0
    %v1171 = vand.u32 %v61, 4294901760
    %v1172 = vsub.f32 %v61, %v1171
    %v1173 = vand.u32 %v1172, 4294901760
    %v1174 = vsub.f32 %v1172, %v1173
    %v1175 = vand.u32 %v1174, 4294901760
    %1176 = vmatpush1.msra.mxu0 %v1175
    %1177 = vmatprep.subr.mxu0 0.0
    %v1178 = vand.u32 %v62, 4294901760
    %v1179 = vsub.f32 %v62, %v1178
    %v1180 = vand.u32 %v1179, 4294901760
    %v1181 = vsub.f32 %v1179, %v1180
    %v1182 = vand.u32 %v1181, 4294901760
    %1183 = vmatpush1.msra.mxu0 %v1182
    %1184 = vmatprep.subr.mxu0 0.0
    %v1185 = vand.u32 %v63, 4294901760
    %v1186 = vsub.f32 %v63, %v1185
    %v1187 = vand.u32 %v1186, 4294901760
    %v1188 = vsub.f32 %v1186, %v1187
    %v1189 = vand.u32 %v1188, 4294901760
    %1190 = vmatpush1.msra.mxu0 %v1189
    %1191 = vmatprep.subr.mxu0 0.0
    %v1192 = vand.u32 %v64, 4294901760
    %v1193 = vsub.f32 %v64, %v1192
    %v1194 = vand.u32 %v1193, 4294901760
    %v1195 = vsub.f32 %v1193, %v1194
    %v1196 = vand.u32 %v1195, 4294901760
    %1197 = vmatpush1.msra.mxu0 %v1196
    %1198 = vmatprep.subr.mxu0 0.0
    %v1199 = vand.u32 %v65, 4294901760
    %v1200 = vsub.f32 %v65, %v1199
    %v1201 = vand.u32 %v1200, 4294901760
    %v1202 = vsub.f32 %v1200, %v1201
    %v1203 = vand.u32 %v1202, 4294901760
    %1204 = vmatpush1.msra.mxu0 %v1203
    %1205 = vmatprep.subr.mxu0 0.0
    %v1206 = vand.u32 %v66, 4294901760
    %v1207 = vsub.f32 %v66, %v1206
    %v1208 = vand.u32 %v1207, 4294901760
    %v1209 = vsub.f32 %v1207, %v1208
    %v1210 = vand.u32 %v1209, 4294901760
    %1211 = vmatpush1.msra.mxu0 %v1210
    %1212 = vmatprep.subr.mxu0 0.0
    %v1213 = vand.u32 %v67, 4294901760
    %v1214 = vsub.f32 %v67, %v1213
    %v1215 = vand.u32 %v1214, 4294901760
    %v1216 = vsub.f32 %v1214, %v1215
    %v1217 = vand.u32 %v1216, 4294901760
    %1218 = vmatpush1.msra.mxu0 %v1217
    %1219 = vmatprep.subr.mxu0 0.0
    %v1220 = vand.u32 %v68, 4294901760
    %v1221 = vsub.f32 %v68, %v1220
    %v1222 = vand.u32 %v1221, 4294901760
    %v1223 = vsub.f32 %v1221, %v1222
    %v1224 = vand.u32 %v1223, 4294901760
    %1225 = vmatpush1.msra.mxu0 %v1224
    %1226 = vmatprep.subr.mxu0 0.0
    %v1227 = vand.u32 %v69, 4294901760
    %v1228 = vsub.f32 %v69, %v1227
    %v1229 = vand.u32 %v1228, 4294901760
    %v1230 = vsub.f32 %v1228, %v1229
    %v1231 = vand.u32 %v1230, 4294901760
    %1232 = vmatpush1.msra.mxu0 %v1231
    %1233 = vmatprep.subr.mxu0 0.0
    %v1234 = vand.u32 %v70, 4294901760
    %v1235 = vsub.f32 %v70, %v1234
    %v1236 = vand.u32 %v1235, 4294901760
    %v1237 = vsub.f32 %v1235, %v1236
    %v1238 = vand.u32 %v1237, 4294901760
    %1239 = vmatpush1.msra.mxu0 %v1238
    %1240 = vmatprep.subr.mxu0 0.0
    %v1241 = vand.u32 %v71, 4294901760
    %v1242 = vsub.f32 %v71, %v1241
    %v1243 = vand.u32 %v1242, 4294901760
    %v1244 = vsub.f32 %v1242, %v1243
    %v1245 = vand.u32 %v1244, 4294901760
    %1246 = vmatpush1.msra.mxu0 %v1245
    %1247 = vmatprep.subr.mxu0 0.0
    %v1248 = vand.u32 %v72, 4294901760
    %v1249 = vsub.f32 %v72, %v1248
    %v1250 = vand.u32 %v1249, 4294901760
    %v1251 = vsub.f32 %v1249, %v1250
    %v1252 = vand.u32 %v1251, 4294901760
    %1253 = vmatpush1.msra.mxu0 %v1252
    %1254 = vmatprep.subr.mxu0 0.0
    %v1255 = vand.u32 %v73, 4294901760
    %v1256 = vsub.f32 %v73, %v1255
    %v1257 = vand.u32 %v1256, 4294901760
    %v1258 = vsub.f32 %v1256, %v1257
    %v1259 = vand.u32 %v1258, 4294901760
    %1260 = vmatpush1.msra.mxu0 %v1259
    %1261 = vmatprep.subr.mxu0 0.0
    %v1262 = vand.u32 %v74, 4294901760
    %v1263 = vsub.f32 %v74, %v1262
    %v1264 = vand.u32 %v1263, 4294901760
    %v1265 = vsub.f32 %v1263, %v1264
    %v1266 = vand.u32 %v1265, 4294901760
    %1267 = vmatpush1.msra.mxu0 %v1266
    %1268 = vmatprep.subr.mxu0 0.0
    %v1269 = vand.u32 %v75, 4294901760
    %v1270 = vsub.f32 %v75, %v1269
    %v1271 = vand.u32 %v1270, 4294901760
    %v1272 = vsub.f32 %v1270, %v1271
    %v1273 = vand.u32 %v1272, 4294901760
    %1274 = vmatpush1.msra.mxu0 %v1273
    %1275 = vmatprep.subr.mxu0 0.0
    %v1276 = vand.u32 %v76, 4294901760
    %v1277 = vsub.f32 %v76, %v1276
    %v1278 = vand.u32 %v1277, 4294901760
    %v1279 = vsub.f32 %v1277, %v1278
    %v1280 = vand.u32 %v1279, 4294901760
    %1281 = vmatpush1.msra.mxu0 %v1280
    %1282 = vmatprep.subr.mxu0 0.0
    %v1283 = vand.u32 %v77, 4294901760
    %v1284 = vsub.f32 %v77, %v1283
    %v1285 = vand.u32 %v1284, 4294901760
    %v1286 = vsub.f32 %v1284, %v1285
    %v1287 = vand.u32 %v1286, 4294901760
    %1288 = vmatpush1.msra.mxu0 %v1287
    %1289 = vmatprep.subr.mxu0 0.0
    %v1290 = vand.u32 %v78, 4294901760
    %v1291 = vsub.f32 %v78, %v1290
    %v1292 = vand.u32 %v1291, 4294901760
    %v1293 = vsub.f32 %v1291, %v1292
    %v1294 = vand.u32 %v1293, 4294901760
    %1295 = vmatpush1.msra.mxu0 %v1294
    %1296 = vmatprep.subr.mxu0 0.0
    %v1297 = vand.u32 %v79, 4294901760
    %v1298 = vsub.f32 %v79, %v1297
    %v1299 = vand.u32 %v1298, 4294901760
    %v1300 = vsub.f32 %v1298, %v1299
    %v1301 = vand.u32 %v1300, 4294901760
    %1302 = vmatpush1.msra.mxu0 %v1301
    %v1303 = vand.u32 %v104, 4294901760
    %1304 = vmatprep.mubr.f32.mxu0 %v1303
    %v1305 = vand.u32 %v103, 4294901760
    %1306 = vmatmul.mubr.f32.gmra.mrb[0].mxu0 %v1305
    %v1307 = vpop.f32.mrb[0].mxu0
    %v1308 = vadd.f32 %v1076, %v1307
    %v1309 = vpop.f32.mrb[0].mxu0
    %1310 = vdwg.mxu0
    %1311 = vmatprep.subr.mxu0 0.0
    %v1312 = vand.u32 %v48, 4294901760
    %v1313 = vsub.f32 %v48, %v1312
    %1314 = vmatpush1.msra.mxu0 %v1313
    %1315 = vmatprep.subr.mxu0 0.0
    %v1316 = vand.u32 %v49, 4294901760
    %v1317 = vsub.f32 %v49, %v1316
    %1318 = vmatpush1.msra.mxu0 %v1317
    %1319 = vmatprep.subr.mxu0 0.0
    %v1320 = vand.u32 %v50, 4294901760
    %v1321 = vsub.f32 %v50, %v1320
    %1322 = vmatpush1.msra.mxu0 %v1321
    %1323 = vmatprep.subr.mxu0 0.0
    %v1324 = vand.u32 %v51, 4294901760
    %v1325 = vsub.f32 %v51, %v1324
    %1326 = vmatpush1.msra.mxu0 %v1325
    %1327 = vmatprep.subr.mxu0 0.0
    %v1328 = vand.u32 %v52, 4294901760
    %v1329 = vsub.f32 %v52, %v1328
    %1330 = vmatpush1.msra.mxu0 %v1329
    %1331 = vmatprep.subr.mxu0 0.0
    %v1332 = vand.u32 %v53, 4294901760
    %v1333 = vsub.f32 %v53, %v1332
    %1334 = vmatpush1.msra.mxu0 %v1333
    %1335 = vmatprep.subr.mxu0 0.0
    %v1336 = vand.u32 %v54, 4294901760
    %v1337 = vsub.f32 %v54, %v1336
    %1338 = vmatpush1.msra.mxu0 %v1337
    %1339 = vmatprep.subr.mxu0 0.0
    %v1340 = vand.u32 %v55, 4294901760
    %v1341 = vsub.f32 %v55, %v1340
    %1342 = vmatpush1.msra.mxu0 %v1341
    %1343 = vmatprep.subr.mxu0 0.0
    %v1344 = vand.u32 %v56, 4294901760
    %v1345 = vsub.f32 %v56, %v1344
    %1346 = vmatpush1.msra.mxu0 %v1345
    %1347 = vmatprep.subr.mxu0 0.0
    %v1348 = vand.u32 %v57, 4294901760
    %v1349 = vsub.f32 %v57, %v1348
    %1350 = vmatpush1.msra.mxu0 %v1349
    %1351 = vmatprep.subr.mxu0 0.0
    %v1352 = vand.u32 %v58, 4294901760
    %v1353 = vsub.f32 %v58, %v1352
    %1354 = vmatpush1.msra.mxu0 %v1353
    %1355 = vmatprep.subr.mxu0 0.0
    %v1356 = vand.u32 %v59, 4294901760
    %v1357 = vsub.f32 %v59, %v1356
    %1358 = vmatpush1.msra.mxu0 %v1357
    %1359 = vmatprep.subr.mxu0 0.0
    %v1360 = vand.u32 %v60, 4294901760
    %v1361 = vsub.f32 %v60, %v1360
    %1362 = vmatpush1.msra.mxu0 %v1361
    %1363 = vmatprep.subr.mxu0 0.0
    %v1364 = vand.u32 %v61, 4294901760
    %v1365 = vsub.f32 %v61, %v1364
    %1366 = vmatpush1.msra.mxu0 %v1365
    %1367 = vmatprep.subr.mxu0 0.0
    %v1368 = vand.u32 %v62, 4294901760
    %v1369 = vsub.f32 %v62, %v1368
    %1370 = vmatpush1.msra.mxu0 %v1369
    %1371 = vmatprep.subr.mxu0 0.0
    %v1372 = vand.u32 %v63, 4294901760
    %v1373 = vsub.f32 %v63, %v1372
    %1374 = vmatpush1.msra.mxu0 %v1373
    %1375 = vmatprep.subr.mxu0 0.0
    %v1376 = vand.u32 %v64, 4294901760
    %v1377 = vsub.f32 %v64, %v1376
    %1378 = vmatpush1.msra.mxu0 %v1377
    %1379 = vmatprep.subr.mxu0 0.0
    %v1380 = vand.u32 %v65, 4294901760
    %v1381 = vsub.f32 %v65, %v1380
    %1382 = vmatpush1.msra.mxu0 %v1381
    %1383 = vmatprep.subr.mxu0 0.0
    %v1384 = vand.u32 %v66, 4294901760
    %v1385 = vsub.f32 %v66, %v1384
    %1386 = vmatpush1.msra.mxu0 %v1385
    %1387 = vmatprep.subr.mxu0 0.0
    %v1388 = vand.u32 %v67, 4294901760
    %v1389 = vsub.f32 %v67, %v1388
    %1390 = vmatpush1.msra.mxu0 %v1389
    %1391 = vmatprep.subr.mxu0 0.0
    %v1392 = vand.u32 %v68, 4294901760
    %v1393 = vsub.f32 %v68, %v1392
    %1394 = vmatpush1.msra.mxu0 %v1393
    %1395 = vmatprep.subr.mxu0 0.0
    %v1396 = vand.u32 %v69, 4294901760
    %v1397 = vsub.f32 %v69, %v1396
    %1398 = vmatpush1.msra.mxu0 %v1397
    %1399 = vmatprep.subr.mxu0 0.0
    %v1400 = vand.u32 %v70, 4294901760
    %v1401 = vsub.f32 %v70, %v1400
    %1402 = vmatpush1.msra.mxu0 %v1401
    %1403 = vmatprep.subr.mxu0 0.0
    %v1404 = vand.u32 %v71, 4294901760
    %v1405 = vsub.f32 %v71, %v1404
    %1406 = vmatpush1.msra.mxu0 %v1405
    %1407 = vmatprep.subr.mxu0 0.0
    %v1408 = vand.u32 %v72, 4294901760
    %v1409 = vsub.f32 %v72, %v1408
    %1410 = vmatpush1.msra.mxu0 %v1409
    %1411 = vmatprep.subr.mxu0 0.0
    %v1412 = vand.u32 %v73, 4294901760
    %v1413 = vsub.f32 %v73, %v1412
    %1414 = vmatpush1.msra.mxu0 %v1413
    %1415 = vmatprep.subr.mxu0 0.0
    %v1416 = vand.u32 %v74, 4294901760
    %v1417 = vsub.f32 %v74, %v1416
    %1418 = vmatpush1.msra.mxu0 %v1417
    %1419 = vmatprep.subr.mxu0 0.0
    %v1420 = vand.u32 %v75, 4294901760
    %v1421 = vsub.f32 %v75, %v1420
    %1422 = vmatpush1.msra.mxu0 %v1421
    %1423 = vmatprep.subr.mxu0 0.0
    %v1424 = vand.u32 %v76, 4294901760
    %v1425 = vsub.f32 %v76, %v1424
    %1426 = vmatpush1.msra.mxu0 %v1425
    %1427 = vmatprep.subr.mxu0 0.0
    %v1428 = vand.u32 %v77, 4294901760
    %v1429 = vsub.f32 %v77, %v1428
    %1430 = vmatpush1.msra.mxu0 %v1429
    %1431 = vmatprep.subr.mxu0 0.0
    %v1432 = vand.u32 %v78, 4294901760
    %v1433 = vsub.f32 %v78, %v1432
    %1434 = vmatpush1.msra.mxu0 %v1433
    %1435 = vmatprep.subr.mxu0 0.0
    %v1436 = vand.u32 %v79, 4294901760
    %v1437 = vsub.f32 %v79, %v1436
    %1438 = vmatpush1.msra.mxu0 %v1437
    %v1439 = vand.u32 %v104, 4294901760
    %v1440 = vsub.f32 %v104, %v1439
    %1441 = vmatprep.mubr.f32.mxu0 %v1440
    %v1442 = vand.u32 %v103, 4294901760
    %v1443 = vsub.f32 %v103, %v1442
    %1444 = vmatmul.mubr.f32.gmra.mrb[0].mxu0 %v1443
    %v1445 = vpop.f32.mrb[0].mxu0
    %v1446 = vadd.f32 %v1308, %v1445
    %v1447 = vpop.f32.mrb[0].mxu0
    %1448 = vdwg.mxu0
    %1449 = vmatprep.subr.mxu0 0.0
    %v1450 = vand.u32 %v48, 4294901760
    %1451 = vmatpush1.msra.mxu0 %v1450
    %1452 = vmatprep.subr.mxu0 0.0
    %v1453 = vand.u32 %v49, 4294901760
    %1454 = vmatpush1.msra.mxu0 %v1453
    %1455 = vmatprep.subr.mxu0 0.0
    %v1456 = vand.u32 %v50, 4294901760
    %1457 = vmatpush1.msra.mxu0 %v1456
    %1458 = vmatprep.subr.mxu0 0.0
    %v1459 = vand.u32 %v51, 4294901760
    %1460 = vmatpush1.msra.mxu0 %v1459
    %1461 = vmatprep.subr.mxu0 0.0
    %v1462 = vand.u32 %v52, 4294901760
    %1463 = vmatpush1.msra.mxu0 %v1462
    %1464 = vmatprep.subr.mxu0 0.0
    %v1465 = vand.u32 %v53, 4294901760
    %1466 = vmatpush1.msra.mxu0 %v1465
    %1467 = vmatprep.subr.mxu0 0.0
    %v1468 = vand.u32 %v54, 4294901760
    %1469 = vmatpush1.msra.mxu0 %v1468
    %1470 = vmatprep.subr.mxu0 0.0
    %v1471 = vand.u32 %v55, 4294901760
    %1472 = vmatpush1.msra.mxu0 %v1471
    %1473 = vmatprep.subr.mxu0 0.0
    %v1474 = vand.u32 %v56, 4294901760
    %1475 = vmatpush1.msra.mxu0 %v1474
    %1476 = vmatprep.subr.mxu0 0.0
    %v1477 = vand.u32 %v57, 4294901760
    %1478 = vmatpush1.msra.mxu0 %v1477
    %1479 = vmatprep.subr.mxu0 0.0
    %v1480 = vand.u32 %v58, 4294901760
    %1481 = vmatpush1.msra.mxu0 %v1480
    %1482 = vmatprep.subr.mxu0 0.0
    %v1483 = vand.u32 %v59, 4294901760
    %1484 = vmatpush1.msra.mxu0 %v1483
    %1485 = vmatprep.subr.mxu0 0.0
    %v1486 = vand.u32 %v60, 4294901760
    %1487 = vmatpush1.msra.mxu0 %v1486
    %1488 = vmatprep.subr.mxu0 0.0
    %v1489 = vand.u32 %v61, 4294901760
    %1490 = vmatpush1.msra.mxu0 %v1489
    %1491 = vmatprep.subr.mxu0 0.0
    %v1492 = vand.u32 %v62, 4294901760
    %1493 = vmatpush1.msra.mxu0 %v1492
    %1494 = vmatprep.subr.mxu0 0.0
    %v1495 = vand.u32 %v63, 4294901760
    %1496 = vmatpush1.msra.mxu0 %v1495
    %1497 = vmatprep.subr.mxu0 0.0
    %v1498 = vand.u32 %v64, 4294901760
    %1499 = vmatpush1.msra.mxu0 %v1498
    %1500 = vmatprep.subr.mxu0 0.0
    %v1501 = vand.u32 %v65, 4294901760
    %1502 = vmatpush1.msra.mxu0 %v1501
    %1503 = vmatprep.subr.mxu0 0.0
    %v1504 = vand.u32 %v66, 4294901760
    %1505 = vmatpush1.msra.mxu0 %v1504
    %1506 = vmatprep.subr.mxu0 0.0
    %v1507 = vand.u32 %v67, 4294901760
    %1508 = vmatpush1.msra.mxu0 %v1507
    %1509 = vmatprep.subr.mxu0 0.0
    %v1510 = vand.u32 %v68, 4294901760
    %1511 = vmatpush1.msra.mxu0 %v1510
    %1512 = vmatprep.subr.mxu0 0.0
    %v1513 = vand.u32 %v69, 4294901760
    %1514 = vmatpush1.msra.mxu0 %v1513
    %1515 = vmatprep.subr.mxu0 0.0
    %v1516 = vand.u32 %v70, 4294901760
    %1517 = vmatpush1.msra.mxu0 %v1516
    %1518 = vmatprep.subr.mxu0 0.0
    %v1519 = vand.u32 %v71, 4294901760
    %1520 = vmatpush1.msra.mxu0 %v1519
    %1521 = vmatprep.subr.mxu0 0.0
    %v1522 = vand.u32 %v72, 4294901760
    %1523 = vmatpush1.msra.mxu0 %v1522
    %1524 = vmatprep.subr.mxu0 0.0
    %v1525 = vand.u32 %v73, 4294901760
    %1526 = vmatpush1.msra.mxu0 %v1525
    %1527 = vmatprep.subr.mxu0 0.0
    %v1528 = vand.u32 %v74, 4294901760
    %1529 = vmatpush1.msra.mxu0 %v1528
    %1530 = vmatprep.subr.mxu0 0.0
    %v1531 = vand.u32 %v75, 4294901760
    %1532 = vmatpush1.msra.mxu0 %v1531
    %1533 = vmatprep.subr.mxu0 0.0
    %v1534 = vand.u32 %v76, 4294901760
    %1535 = vmatpush1.msra.mxu0 %v1534
    %1536 = vmatprep.subr.mxu0 0.0
    %v1537 = vand.u32 %v77, 4294901760
    %1538 = vmatpush1.msra.mxu0 %v1537
    %1539 = vmatprep.subr.mxu0 0.0
    %v1540 = vand.u32 %v78, 4294901760
    %1541 = vmatpush1.msra.mxu0 %v1540
    %1542 = vmatprep.subr.mxu0 0.0
    %v1543 = vand.u32 %v79, 4294901760
    %1544 = vmatpush1.msra.mxu0 %v1543
    %v1545 = vand.u32 %v104, 4294901760
    %v1546 = vsub.f32 %v104, %v1545
    %v1547 = vand.u32 %v1546, 4294901760
    %1548 = vmatprep.mubr.f32.mxu0 %v1547
    %v1549 = vand.u32 %v103, 4294901760
    %v1550 = vsub.f32 %v103, %v1549
    %v1551 = vand.u32 %v1550, 4294901760
    %1552 = vmatmul.mubr.f32.gmra.mrb[0].mxu0 %v1551
    %v1553 = vpop.f32.mrb[0].mxu0
    %v1554 = vadd.f32 %v1446, %v1553
    %v1555 = vpop.f32.mrb[0].mxu0
    %1556 = vdwg.mxu0
    %1557 = vmatprep.subr.mxu0 0.0
    %v1558 = vand.u32 %v48, 4294901760
    %v1559 = vsub.f32 %v48, %v1558
    %v1560 = vand.u32 %v1559, 4294901760
    %1561 = vmatpush1.msra.mxu0 %v1560
    %1562 = vmatprep.subr.mxu0 0.0
    %v1563 = vand.u32 %v49, 4294901760
    %v1564 = vsub.f32 %v49, %v1563
    %v1565 = vand.u32 %v1564, 4294901760
    %1566 = vmatpush1.msra.mxu0 %v1565
    %1567 = vmatprep.subr.mxu0 0.0
    %v1568 = vand.u32 %v50, 4294901760
    %v1569 = vsub.f32 %v50, %v1568
    %v1570 = vand.u32 %v1569, 4294901760
    %1571 = vmatpush1.msra.mxu0 %v1570
    %1572 = vmatprep.subr.mxu0 0.0
    %v1573 = vand.u32 %v51, 4294901760
    %v1574 = vsub.f32 %v51, %v1573
    %v1575 = vand.u32 %v1574, 4294901760
    %1576 = vmatpush1.msra.mxu0 %v1575
    %1577 = vmatprep.subr.mxu0 0.0
    %v1578 = vand.u32 %v52, 4294901760
    %v1579 = vsub.f32 %v52, %v1578
    %v1580 = vand.u32 %v1579, 4294901760
    %1581 = vmatpush1.msra.mxu0 %v1580
    %1582 = vmatprep.subr.mxu0 0.0
    %v1583 = vand.u32 %v53, 4294901760
    %v1584 = vsub.f32 %v53, %v1583
    %v1585 = vand.u32 %v1584, 4294901760
    %1586 = vmatpush1.msra.mxu0 %v1585
    %1587 = vmatprep.subr.mxu0 0.0
    %v1588 = vand.u32 %v54, 4294901760
    %v1589 = vsub.f32 %v54, %v1588
    %v1590 = vand.u32 %v1589, 4294901760
    %1591 = vmatpush1.msra.mxu0 %v1590
    %1592 = vmatprep.subr.mxu0 0.0
    %v1593 = vand.u32 %v55, 4294901760
    %v1594 = vsub.f32 %v55, %v1593
    %v1595 = vand.u32 %v1594, 4294901760
    %1596 = vmatpush1.msra.mxu0 %v1595
    %1597 = vmatprep.subr.mxu0 0.0
    %v1598 = vand.u32 %v56, 4294901760
    %v1599 = vsub.f32 %v56, %v1598
    %v1600 = vand.u32 %v1599, 4294901760
    %1601 = vmatpush1.msra.mxu0 %v1600
    %1602 = vmatprep.subr.mxu0 0.0
    %v1603 = vand.u32 %v57, 4294901760
    %v1604 = vsub.f32 %v57, %v1603
    %v1605 = vand.u32 %v1604, 4294901760
    %1606 = vmatpush1.msra.mxu0 %v1605
    %1607 = vmatprep.subr.mxu0 0.0
    %v1608 = vand.u32 %v58, 4294901760
    %v1609 = vsub.f32 %v58, %v1608
    %v1610 = vand.u32 %v1609, 4294901760
    %1611 = vmatpush1.msra.mxu0 %v1610
    %1612 = vmatprep.subr.mxu0 0.0
    %v1613 = vand.u32 %v59, 4294901760
    %v1614 = vsub.f32 %v59, %v1613
    %v1615 = vand.u32 %v1614, 4294901760
    %1616 = vmatpush1.msra.mxu0 %v1615
    %1617 = vmatprep.subr.mxu0 0.0
    %v1618 = vand.u32 %v60, 4294901760
    %v1619 = vsub.f32 %v60, %v1618
    %v1620 = vand.u32 %v1619, 4294901760
    %1621 = vmatpush1.msra.mxu0 %v1620
    %1622 = vmatprep.subr.mxu0 0.0
    %v1623 = vand.u32 %v61, 4294901760
    %v1624 = vsub.f32 %v61, %v1623
    %v1625 = vand.u32 %v1624, 4294901760
    %1626 = vmatpush1.msra.mxu0 %v1625
    %1627 = vmatprep.subr.mxu0 0.0
    %v1628 = vand.u32 %v62, 4294901760
    %v1629 = vsub.f32 %v62, %v1628
    %v1630 = vand.u32 %v1629, 4294901760
    %1631 = vmatpush1.msra.mxu0 %v1630
    %1632 = vmatprep.subr.mxu0 0.0
    %v1633 = vand.u32 %v63, 4294901760
    %v1634 = vsub.f32 %v63, %v1633
    %v1635 = vand.u32 %v1634, 4294901760
    %1636 = vmatpush1.msra.mxu0 %v1635
    %1637 = vmatprep.subr.mxu0 0.0
    %v1638 = vand.u32 %v64, 4294901760
    %v1639 = vsub.f32 %v64, %v1638
    %v1640 = vand.u32 %v1639, 4294901760
    %1641 = vmatpush1.msra.mxu0 %v1640
    %1642 = vmatprep.subr.mxu0 0.0
    %v1643 = vand.u32 %v65, 4294901760
    %v1644 = vsub.f32 %v65, %v1643
    %v1645 = vand.u32 %v1644, 4294901760
    %1646 = vmatpush1.msra.mxu0 %v1645
    %1647 = vmatprep.subr.mxu0 0.0
    %v1648 = vand.u32 %v66, 4294901760
    %v1649 = vsub.f32 %v66, %v1648
    %v1650 = vand.u32 %v1649, 4294901760
    %1651 = vmatpush1.msra.mxu0 %v1650
    %1652 = vmatprep.subr.mxu0 0.0
    %v1653 = vand.u32 %v67, 4294901760
    %v1654 = vsub.f32 %v67, %v1653
    %v1655 = vand.u32 %v1654, 4294901760
    %1656 = vmatpush1.msra.mxu0 %v1655
    %1657 = vmatprep.subr.mxu0 0.0
    %v1658 = vand.u32 %v68, 4294901760
    %v1659 = vsub.f32 %v68, %v1658
    %v1660 = vand.u32 %v1659, 4294901760
    %1661 = vmatpush1.msra.mxu0 %v1660
    %1662 = vmatprep.subr.mxu0 0.0
    %v1663 = vand.u32 %v69, 4294901760
    %v1664 = vsub.f32 %v69, %v1663
    %v1665 = vand.u32 %v1664, 4294901760
    %1666 = vmatpush1.msra.mxu0 %v1665
    %1667 = vmatprep.subr.mxu0 0.0
    %v1668 = vand.u32 %v70, 4294901760
    %v1669 = vsub.f32 %v70, %v1668
    %v1670 = vand.u32 %v1669, 4294901760
    %1671 = vmatpush1.msra.mxu0 %v1670
    %1672 = vmatprep.subr.mxu0 0.0
    %v1673 = vand.u32 %v71, 4294901760
    %v1674 = vsub.f32 %v71, %v1673
    %v1675 = vand.u32 %v1674, 4294901760
    %1676 = vmatpush1.msra.mxu0 %v1675
    %1677 = vmatprep.subr.mxu0 0.0
    %v1678 = vand.u32 %v72, 4294901760
    %v1679 = vsub.f32 %v72, %v1678
    %v1680 = vand.u32 %v1679, 4294901760
    %1681 = vmatpush1.msra.mxu0 %v1680
    %1682 = vmatprep.subr.mxu0 0.0
    %v1683 = vand.u32 %v73, 4294901760
    %v1684 = vsub.f32 %v73, %v1683
    %v1685 = vand.u32 %v1684, 4294901760
    %1686 = vmatpush1.msra.mxu0 %v1685
    %1687 = vmatprep.subr.mxu0 0.0
    %v1688 = vand.u32 %v74, 4294901760
    %v1689 = vsub.f32 %v74, %v1688
    %v1690 = vand.u32 %v1689, 4294901760
    %1691 = vmatpush1.msra.mxu0 %v1690
    %1692 = vmatprep.subr.mxu0 0.0
    %v1693 = vand.u32 %v75, 4294901760
    %v1694 = vsub.f32 %v75, %v1693
    %v1695 = vand.u32 %v1694, 4294901760
    %1696 = vmatpush1.msra.mxu0 %v1695
    %1697 = vmatprep.subr.mxu0 0.0
    %v1698 = vand.u32 %v76, 4294901760
    %v1699 = vsub.f32 %v76, %v1698
    %v1700 = vand.u32 %v1699, 4294901760
    %1701 = vmatpush1.msra.mxu0 %v1700
    %1702 = vmatprep.subr.mxu0 0.0
    %v1703 = vand.u32 %v77, 4294901760
    %v1704 = vsub.f32 %v77, %v1703
    %v1705 = vand.u32 %v1704, 4294901760
    %1706 = vmatpush1.msra.mxu0 %v1705
    %1707 = vmatprep.subr.mxu0 0.0
    %v1708 = vand.u32 %v78, 4294901760
    %v1709 = vsub.f32 %v78, %v1708
    %v1710 = vand.u32 %v1709, 4294901760
    %1711 = vmatpush1.msra.mxu0 %v1710
    %1712 = vmatprep.subr.mxu0 0.0
    %v1713 = vand.u32 %v79, 4294901760
    %v1714 = vsub.f32 %v79, %v1713
    %v1715 = vand.u32 %v1714, 4294901760
    %1716 = vmatpush1.msra.mxu0 %v1715
    %v1717 = vand.u32 %v104, 4294901760
    %1718 = vmatprep.mubr.f32.mxu0 %v1717
    %v1719 = vand.u32 %v103, 4294901760
    %1720 = vmatmul.mubr.f32.gmra.mrb[0].mxu0 %v1719
    %v1721 = vpop.f32.mrb[0].mxu0
    %v1722 = vadd.f32 %v1554, %v1721
    %v1723 = vpop.f32.mrb[0].mxu0
    %1724 = vdwg.mxu0
    %1725 = vmatprep.subr.mxu0 0.0
    %v1726 = vand.u32 %v48, 4294901760
    %1727 = vmatpush1.msra.mxu0 %v1726
    %1728 = vmatprep.subr.mxu0 0.0
    %v1729 = vand.u32 %v49, 4294901760
    %1730 = vmatpush1.msra.mxu0 %v1729
    %1731 = vmatprep.subr.mxu0 0.0
    %v1732 = vand.u32 %v50, 4294901760
    %1733 = vmatpush1.msra.mxu0 %v1732
    %1734 = vmatprep.subr.mxu0 0.0
    %v1735 = vand.u32 %v51, 4294901760
    %1736 = vmatpush1.msra.mxu0 %v1735
    %1737 = vmatprep.subr.mxu0 0.0
    %v1738 = vand.u32 %v52, 4294901760
    %1739 = vmatpush1.msra.mxu0 %v1738
    %1740 = vmatprep.subr.mxu0 0.0
    %v1741 = vand.u32 %v53, 4294901760
    %1742 = vmatpush1.msra.mxu0 %v1741
    %1743 = vmatprep.subr.mxu0 0.0
    %v1744 = vand.u32 %v54, 4294901760
    %1745 = vmatpush1.msra.mxu0 %v1744
    %1746 = vmatprep.subr.mxu0 0.0
    %v1747 = vand.u32 %v55, 4294901760
    %1748 = vmatpush1.msra.mxu0 %v1747
    %1749 = vmatprep.subr.mxu0 0.0
    %v1750 = vand.u32 %v56, 4294901760
    %1751 = vmatpush1.msra.mxu0 %v1750
    %1752 = vmatprep.subr.mxu0 0.0
    %v1753 = vand.u32 %v57, 4294901760
    %1754 = vmatpush1.msra.mxu0 %v1753
    %1755 = vmatprep.subr.mxu0 0.0
    %v1756 = vand.u32 %v58, 4294901760
    %1757 = vmatpush1.msra.mxu0 %v1756
    %1758 = vmatprep.subr.mxu0 0.0
    %v1759 = vand.u32 %v59, 4294901760
    %1760 = vmatpush1.msra.mxu0 %v1759
    %1761 = vmatprep.subr.mxu0 0.0
    %v1762 = vand.u32 %v60, 4294901760
    %1763 = vmatpush1.msra.mxu0 %v1762
    %1764 = vmatprep.subr.mxu0 0.0
    %v1765 = vand.u32 %v61, 4294901760
    %1766 = vmatpush1.msra.mxu0 %v1765
    %1767 = vmatprep.subr.mxu0 0.0
    %v1768 = vand.u32 %v62, 4294901760
    %1769 = vmatpush1.msra.mxu0 %v1768
    %1770 = vmatprep.subr.mxu0 0.0
    %v1771 = vand.u32 %v63, 4294901760
    %1772 = vmatpush1.msra.mxu0 %v1771
    %1773 = vmatprep.subr.mxu0 0.0
    %v1774 = vand.u32 %v64, 4294901760
    %1775 = vmatpush1.msra.mxu0 %v1774
    %1776 = vmatprep.subr.mxu0 0.0
    %v1777 = vand.u32 %v65, 4294901760
    %1778 = vmatpush1.msra.mxu0 %v1777
    %1779 = vmatprep.subr.mxu0 0.0
    %v1780 = vand.u32 %v66, 4294901760
    %1781 = vmatpush1.msra.mxu0 %v1780
    %1782 = vmatprep.subr.mxu0 0.0
    %v1783 = vand.u32 %v67, 4294901760
    %1784 = vmatpush1.msra.mxu0 %v1783
    %1785 = vmatprep.subr.mxu0 0.0
    %v1786 = vand.u32 %v68, 4294901760
    %1787 = vmatpush1.msra.mxu0 %v1786
    %1788 = vmatprep.subr.mxu0 0.0
    %v1789 = vand.u32 %v69, 4294901760
    %1790 = vmatpush1.msra.mxu0 %v1789
    %1791 = vmatprep.subr.mxu0 0.0
    %v1792 = vand.u32 %v70, 4294901760
    %1793 = vmatpush1.msra.mxu0 %v1792
    %1794 = vmatprep.subr.mxu0 0.0
    %v1795 = vand.u32 %v71, 4294901760
    %1796 = vmatpush1.msra.mxu0 %v1795
    %1797 = vmatprep.subr.mxu0 0.0
    %v1798 = vand.u32 %v72, 4294901760
    %1799 = vmatpush1.msra.mxu0 %v1798
    %1800 = vmatprep.subr.mxu0 0.0
    %v1801 = vand.u32 %v73, 4294901760
    %1802 = vmatpush1.msra.mxu0 %v1801
    %1803 = vmatprep.subr.mxu0 0.0
    %v1804 = vand.u32 %v74, 4294901760
    %1805 = vmatpush1.msra.mxu0 %v1804
    %1806 = vmatprep.subr.mxu0 0.0
    %v1807 = vand.u32 %v75, 4294901760
    %1808 = vmatpush1.msra.mxu0 %v1807
    %1809 = vmatprep.subr.mxu0 0.0
    %v1810 = vand.u32 %v76, 4294901760
    %1811 = vmatpush1.msra.mxu0 %v1810
    %1812 = vmatprep.subr.mxu0 0.0
    %v1813 = vand.u32 %v77, 4294901760
    %1814 = vmatpush1.msra.mxu0 %v1813
    %1815 = vmatprep.subr.mxu0 0.0
    %v1816 = vand.u32 %v78, 4294901760
    %1817 = vmatpush1.msra.mxu0 %v1816
    %1818 = vmatprep.subr.mxu0 0.0
    %v1819 = vand.u32 %v79, 4294901760
    %1820 = vmatpush1.msra.mxu0 %v1819
    %v1821 = vand.u32 %v104, 4294901760
    %1822 = vmatprep.mubr.f32.mxu0 %v1821
    %v1823 = vand.u32 %v103, 4294901760
    %1824 = vmatmul.mubr.f32.gmra.mrb[0].mxu0 %v1823
    %v1825 = vpop.f32.mrb[0].mxu0
    %v1826 = vadd.f32 %v1722, %v1825
    %v1827 = vpop.f32.mrb[0].mxu0
    %1828 = vdwg.mxu0
    %v1829 = vmul.f32 %v1826, 1.442695
    %v1830 = vpow.pop %v1829
    %v1831 = vadd.f32 %v1830, 0.0
    %v1832 = vld [vmem:[%s1 + $0x4] sm:$0xf]
    %v1833 = vlaneseq
    %v1834 = vshrl.u32 %v1833, 7
    %v1835 = vsub.s32 0, %v1834
    %v1836 = vrot.slane %v1832, %v1835
    %v1837 = vlaneseq
    %v1838 = vshrl.u32 %v1837, 7
    %v1839 = vsub.s32 1, %v1838
    %v1840 = vrot.slane %v1832, %v1839
    %v1841 = vlaneseq
    %v1842 = vshrl.u32 %v1841, 7
    %v1843 = vsub.s32 2, %v1842
    %v1844 = vrot.slane %v1832, %v1843
    %v1845 = vlaneseq
    %v1846 = vshrl.u32 %v1845, 7
    %v1847 = vsub.s32 3, %v1846
    %v1848 = vrot.slane %v1832, %v1847
    %v1849 = vsub.f32 %v15, %v1836
    %v1850 = vsub.f32 %v15, %v1840
    %v1851 = vsub.f32 %v15, %v1844
    %v1852 = vsub.f32 %v15, %v1848
    %v1853 = vand.u32 2147483647, %v1849
    %v1854 = vand.u32 2147483647, %v1850
    %v1855 = vand.u32 2147483647, %v1851
    %v1856 = vand.u32 2147483647, %v1852
    %1857 = vmatprep.subr.mxu0 0.0
    %v1858 = vand.u32 %v16, 4294901760
    %1859 = vmatpush1.msra.mxu0 %v1858
    %1860 = vmatprep.subr.mxu0 0.0
    %v1861 = vand.u32 %v17, 4294901760
    %1862 = vmatpush1.msra.mxu0 %v1861
    %1863 = vmatprep.subr.mxu0 0.0
    %v1864 = vand.u32 %v18, 4294901760
    %1865 = vmatpush1.msra.mxu0 %v1864
    %1866 = vmatprep.subr.mxu0 0.0
    %v1867 = vand.u32 %v19, 4294901760
    %1868 = vmatpush1.msra.mxu0 %v1867
    %1869 = vmatprep.subr.mxu0 0.0
    %v1870 = vand.u32 %v20, 4294901760
    %1871 = vmatpush1.msra.mxu0 %v1870
    %1872 = vmatprep.subr.mxu0 0.0
    %v1873 = vand.u32 %v21, 4294901760
    %1874 = vmatpush1.msra.mxu0 %v1873
    %1875 = vmatprep.subr.mxu0 0.0
    %v1876 = vand.u32 %v22, 4294901760
    %1877 = vmatpush1.msra.mxu0 %v1876
    %1878 = vmatprep.subr.mxu0 0.0
    %v1879 = vand.u32 %v23, 4294901760
    %1880 = vmatpush1.msra.mxu0 %v1879
    %1881 = vmatprep.subr.mxu0 0.0
    %v1882 = vand.u32 %v24, 4294901760
    %1883 = vmatpush1.msra.mxu0 %v1882
    %1884 = vmatprep.subr.mxu0 0.0
    %v1885 = vand.u32 %v25, 4294901760
    %1886 = vmatpush1.msra.mxu0 %v1885
    %1887 = vmatprep.subr.mxu0 0.0
    %v1888 = vand.u32 %v26, 4294901760
    %1889 = vmatpush1.msra.mxu0 %v1888
    %1890 = vmatprep.subr.mxu0 0.0
    %v1891 = vand.u32 %v27, 4294901760
    %1892 = vmatpush1.msra.mxu0 %v1891
    %1893 = vmatprep.subr.mxu0 0.0
    %v1894 = vand.u32 %v28, 4294901760
    %1895 = vmatpush1.msra.mxu0 %v1894
    %1896 = vmatprep.subr.mxu0 0.0
    %v1897 = vand.u32 %v29, 4294901760
    %1898 = vmatpush1.msra.mxu0 %v1897
    %1899 = vmatprep.subr.mxu0 0.0
    %v1900 = vand.u32 %v30, 4294901760
    %1901 = vmatpush1.msra.mxu0 %v1900
    %1902 = vmatprep.subr.mxu0 0.0
    %v1903 = vand.u32 %v31, 4294901760
    %1904 = vmatpush1.msra.mxu0 %v1903
    %1905 = vmatprep.subr.mxu0 0.0
    %v1906 = vand.u32 %v32, 4294901760
    %1907 = vmatpush1.msra.mxu0 %v1906
    %1908 = vmatprep.subr.mxu0 0.0
    %v1909 = vand.u32 %v33, 4294901760
    %1910 = vmatpush1.msra.mxu0 %v1909
    %1911 = vmatprep.subr.mxu0 0.0
    %v1912 = vand.u32 %v34, 4294901760
    %1913 = vmatpush1.msra.mxu0 %v1912
    %1914 = vmatprep.subr.mxu0 0.0
    %v1915 = vand.u32 %v35, 4294901760
    %1916 = vmatpush1.msra.mxu0 %v1915
    %1917 = vmatprep.subr.mxu0 0.0
    %v1918 = vand.u32 %v36, 4294901760
    %1919 = vmatpush1.msra.mxu0 %v1918
    %1920 = vmatprep.subr.mxu0 0.0
    %v1921 = vand.u32 %v37, 4294901760
    %1922 = vmatpush1.msra.mxu0 %v1921
    %1923 = vmatprep.subr.mxu0 0.0
    %v1924 = vand.u32 %v38, 4294901760
    %1925 = vmatpush1.msra.mxu0 %v1924
    %1926 = vmatprep.subr.mxu0 0.0
    %v1927 = vand.u32 %v39, 4294901760
    %1928 = vmatpush1.msra.mxu0 %v1927
    %1929 = vmatprep.subr.mxu0 0.0
    %v1930 = vand.u32 %v40, 4294901760
    %1931 = vmatpush1.msra.mxu0 %v1930
    %1932 = vmatprep.subr.mxu0 0.0
    %v1933 = vand.u32 %v41, 4294901760
    %1934 = vmatpush1.msra.mxu0 %v1933
    %1935 = vmatprep.subr.mxu0 0.0
    %v1936 = vand.u32 %v42, 4294901760
    %1937 = vmatpush1.msra.mxu0 %v1936
    %1938 = vmatprep.subr.mxu0 0.0
    %v1939 = vand.u32 %v43, 4294901760
    %1940 = vmatpush1.msra.mxu0 %v1939
    %1941 = vmatprep.subr.mxu0 0.0
    %v1942 = vand.u32 %v44, 4294901760
    %1943 = vmatpush1.msra.mxu0 %v1942
    %1944 = vmatprep.subr.mxu0 0.0
    %v1945 = vand.u32 %v45, 4294901760
    %1946 = vmatpush1.msra.mxu0 %v1945
    %1947 = vmatprep.subr.mxu0 0.0
    %v1948 = vand.u32 %v46, 4294901760
    %1949 = vmatpush1.msra.mxu0 %v1948
    %1950 = vmatprep.subr.mxu0 0.0
    %v1951 = vand.u32 %v47, 4294901760
    %1952 = vmatpush1.msra.mxu0 %v1951
    %v1953 = vand.u32 %v1854, 4294901760
    %v1954 = vsub.f32 %v1854, %v1953
    %v1955 = vand.u32 %v1954, 4294901760
    %v1956 = vsub.f32 %v1954, %v1955
    %v1957 = vand.u32 %v1956, 4294901760
    %1958 = vmatprep.mubr.f32.mxu0 %v1957
    %v1959 = vand.u32 %v1853, 4294901760
    %v1960 = vsub.f32 %v1853, %v1959
    %v1961 = vand.u32 %v1960, 4294901760
    %v1962 = vsub.f32 %v1960, %v1961
    %v1963 = vand.u32 %v1962, 4294901760
    %1964 = vmatmul.mubr.f32.gmra.mrb[0].mxu0 %v1963
    %v1965 = vpop.f32.mrb[0].mxu0
    %v1966 = vadd.f32 0.0, %v1965
    %v1967 = vpop.f32.mrb[0].mxu0
    %1968 = vdwg.mxu0
    %1969 = vmatprep.subr.mxu0 0.0
    %v1970 = vand.u32 %v16, 4294901760
    %v1971 = vsub.f32 %v16, %v1970
    %v1972 = vand.u32 %v1971, 4294901760
    %v1973 = vsub.f32 %v1971, %v1972
    %v1974 = vand.u32 %v1973, 4294901760
    %1975 = vmatpush1.msra.mxu0 %v1974
    %1976 = vmatprep.subr.mxu0 0.0
    %v1977 = vand.u32 %v17, 4294901760
    %v1978 = vsub.f32 %v17, %v1977
    %v1979 = vand.u32 %v1978, 4294901760
    %v1980 = vsub.f32 %v1978, %v1979
    %v1981 = vand.u32 %v1980, 4294901760
    %1982 = vmatpush1.msra.mxu0 %v1981
    %1983 = vmatprep.subr.mxu0 0.0
    %v1984 = vand.u32 %v18, 4294901760
    %v1985 = vsub.f32 %v18, %v1984
    %v1986 = vand.u32 %v1985, 4294901760
    %v1987 = vsub.f32 %v1985, %v1986
    %v1988 = vand.u32 %v1987, 4294901760
    %1989 = vmatpush1.msra.mxu0 %v1988
    %1990 = vmatprep.subr.mxu0 0.0
    %v1991 = vand.u32 %v19, 4294901760
    %v1992 = vsub.f32 %v19, %v1991
    %v1993 = vand.u32 %v1992, 4294901760
    %v1994 = vsub.f32 %v1992, %v1993
    %v1995 = vand.u32 %v1994, 4294901760
    %1996 = vmatpush1.msra.mxu0 %v1995
    %1997 = vmatprep.subr.mxu0 0.0
    %v1998 = vand.u32 %v20, 4294901760
    %v1999 = vsub.f32 %v20, %v1998
    %v2000 = vand.u32 %v1999, 4294901760
    %v2001 = vsub.f32 %v1999, %v2000
    %v2002 = vand.u32 %v2001, 4294901760
    %2003 = vmatpush1.msra.mxu0 %v2002
    %2004 = vmatprep.subr.mxu0 0.0
    %v2005 = vand.u32 %v21, 4294901760
    %v2006 = vsub.f32 %v21, %v2005
    %v2007 = vand.u32 %v2006, 4294901760
    %v2008 = vsub.f32 %v2006, %v2007
    %v2009 = vand.u32 %v2008, 4294901760
    %2010 = vmatpush1.msra.mxu0 %v2009
    %2011 = vmatprep.subr.mxu0 0.0
    %v2012 = vand.u32 %v22, 4294901760
    %v2013 = vsub.f32 %v22, %v2012
    %v2014 = vand.u32 %v2013, 4294901760
    %v2015 = vsub.f32 %v2013, %v2014
    %v2016 = vand.u32 %v2015, 4294901760
    %2017 = vmatpush1.msra.mxu0 %v2016
    %2018 = vmatprep.subr.mxu0 0.0
    %v2019 = vand.u32 %v23, 4294901760
    %v2020 = vsub.f32 %v23, %v2019
    %v2021 = vand.u32 %v2020, 4294901760
    %v2022 = vsub.f32 %v2020, %v2021
    %v2023 = vand.u32 %v2022, 4294901760
    %2024 = vmatpush1.msra.mxu0 %v2023
    %2025 = vmatprep.subr.mxu0 0.0
    %v2026 = vand.u32 %v24, 4294901760
    %v2027 = vsub.f32 %v24, %v2026
    %v2028 = vand.u32 %v2027, 4294901760
    %v2029 = vsub.f32 %v2027, %v2028
    %v2030 = vand.u32 %v2029, 4294901760
    %2031 = vmatpush1.msra.mxu0 %v2030
    %2032 = vmatprep.subr.mxu0 0.0
    %v2033 = vand.u32 %v25, 4294901760
    %v2034 = vsub.f32 %v25, %v2033
    %v2035 = vand.u32 %v2034, 4294901760
    %v2036 = vsub.f32 %v2034, %v2035
    %v2037 = vand.u32 %v2036, 4294901760
    %2038 = vmatpush1.msra.mxu0 %v2037
    %2039 = vmatprep.subr.mxu0 0.0
    %v2040 = vand.u32 %v26, 4294901760
    %v2041 = vsub.f32 %v26, %v2040
    %v2042 = vand.u32 %v2041, 4294901760
    %v2043 = vsub.f32 %v2041, %v2042
    %v2044 = vand.u32 %v2043, 4294901760
    %2045 = vmatpush1.msra.mxu0 %v2044
    %2046 = vmatprep.subr.mxu0 0.0
    %v2047 = vand.u32 %v27, 4294901760
    %v2048 = vsub.f32 %v27, %v2047
    %v2049 = vand.u32 %v2048, 4294901760
    %v2050 = vsub.f32 %v2048, %v2049
    %v2051 = vand.u32 %v2050, 4294901760
    %2052 = vmatpush1.msra.mxu0 %v2051
    %2053 = vmatprep.subr.mxu0 0.0
    %v2054 = vand.u32 %v28, 4294901760
    %v2055 = vsub.f32 %v28, %v2054
    %v2056 = vand.u32 %v2055, 4294901760
    %v2057 = vsub.f32 %v2055, %v2056
    %v2058 = vand.u32 %v2057, 4294901760
    %2059 = vmatpush1.msra.mxu0 %v2058
    %2060 = vmatprep.subr.mxu0 0.0
    %v2061 = vand.u32 %v29, 4294901760
    %v2062 = vsub.f32 %v29, %v2061
    %v2063 = vand.u32 %v2062, 4294901760
    %v2064 = vsub.f32 %v2062, %v2063
    %v2065 = vand.u32 %v2064, 4294901760
    %2066 = vmatpush1.msra.mxu0 %v2065
    %2067 = vmatprep.subr.mxu0 0.0
    %v2068 = vand.u32 %v30, 4294901760
    %v2069 = vsub.f32 %v30, %v2068
    %v2070 = vand.u32 %v2069, 4294901760
    %v2071 = vsub.f32 %v2069, %v2070
    %v2072 = vand.u32 %v2071, 4294901760
    %2073 = vmatpush1.msra.mxu0 %v2072
    %2074 = vmatprep.subr.mxu0 0.0
    %v2075 = vand.u32 %v31, 4294901760
    %v2076 = vsub.f32 %v31, %v2075
    %v2077 = vand.u32 %v2076, 4294901760
    %v2078 = vsub.f32 %v2076, %v2077
    %v2079 = vand.u32 %v2078, 4294901760
    %2080 = vmatpush1.msra.mxu0 %v2079
    %2081 = vmatprep.subr.mxu0 0.0
    %v2082 = vand.u32 %v32, 4294901760
    %v2083 = vsub.f32 %v32, %v2082
    %v2084 = vand.u32 %v2083, 4294901760
    %v2085 = vsub.f32 %v2083, %v2084
    %v2086 = vand.u32 %v2085, 4294901760
    %2087 = vmatpush1.msra.mxu0 %v2086
    %2088 = vmatprep.subr.mxu0 0.0
    %v2089 = vand.u32 %v33, 4294901760
    %v2090 = vsub.f32 %v33, %v2089
    %v2091 = vand.u32 %v2090, 4294901760
    %v2092 = vsub.f32 %v2090, %v2091
    %v2093 = vand.u32 %v2092, 4294901760
    %2094 = vmatpush1.msra.mxu0 %v2093
    %2095 = vmatprep.subr.mxu0 0.0
    %v2096 = vand.u32 %v34, 4294901760
    %v2097 = vsub.f32 %v34, %v2096
    %v2098 = vand.u32 %v2097, 4294901760
    %v2099 = vsub.f32 %v2097, %v2098
    %v2100 = vand.u32 %v2099, 4294901760
    %2101 = vmatpush1.msra.mxu0 %v2100
    %2102 = vmatprep.subr.mxu0 0.0
    %v2103 = vand.u32 %v35, 4294901760
    %v2104 = vsub.f32 %v35, %v2103
    %v2105 = vand.u32 %v2104, 4294901760
    %v2106 = vsub.f32 %v2104, %v2105
    %v2107 = vand.u32 %v2106, 4294901760
    %2108 = vmatpush1.msra.mxu0 %v2107
    %2109 = vmatprep.subr.mxu0 0.0
    %v2110 = vand.u32 %v36, 4294901760
    %v2111 = vsub.f32 %v36, %v2110
    %v2112 = vand.u32 %v2111, 4294901760
    %v2113 = vsub.f32 %v2111, %v2112
    %v2114 = vand.u32 %v2113, 4294901760
    %2115 = vmatpush1.msra.mxu0 %v2114
    %2116 = vmatprep.subr.mxu0 0.0
    %v2117 = vand.u32 %v37, 4294901760
    %v2118 = vsub.f32 %v37, %v2117
    %v2119 = vand.u32 %v2118, 4294901760
    %v2120 = vsub.f32 %v2118, %v2119
    %v2121 = vand.u32 %v2120, 4294901760
    %2122 = vmatpush1.msra.mxu0 %v2121
    %2123 = vmatprep.subr.mxu0 0.0
    %v2124 = vand.u32 %v38, 4294901760
    %v2125 = vsub.f32 %v38, %v2124
    %v2126 = vand.u32 %v2125, 4294901760
    %v2127 = vsub.f32 %v2125, %v2126
    %v2128 = vand.u32 %v2127, 4294901760
    %2129 = vmatpush1.msra.mxu0 %v2128
    %2130 = vmatprep.subr.mxu0 0.0
    %v2131 = vand.u32 %v39, 4294901760
    %v2132 = vsub.f32 %v39, %v2131
    %v2133 = vand.u32 %v2132, 4294901760
    %v2134 = vsub.f32 %v2132, %v2133
    %v2135 = vand.u32 %v2134, 4294901760
    %2136 = vmatpush1.msra.mxu0 %v2135
    %2137 = vmatprep.subr.mxu0 0.0
    %v2138 = vand.u32 %v40, 4294901760
    %v2139 = vsub.f32 %v40, %v2138
    %v2140 = vand.u32 %v2139, 4294901760
    %v2141 = vsub.f32 %v2139, %v2140
    %v2142 = vand.u32 %v2141, 4294901760
    %2143 = vmatpush1.msra.mxu0 %v2142
    %2144 = vmatprep.subr.mxu0 0.0
    %v2145 = vand.u32 %v41, 4294901760
    %v2146 = vsub.f32 %v41, %v2145
    %v2147 = vand.u32 %v2146, 4294901760
    %v2148 = vsub.f32 %v2146, %v2147
    %v2149 = vand.u32 %v2148, 4294901760
    %2150 = vmatpush1.msra.mxu0 %v2149
    %2151 = vmatprep.subr.mxu0 0.0
    %v2152 = vand.u32 %v42, 4294901760
    %v2153 = vsub.f32 %v42, %v2152
    %v2154 = vand.u32 %v2153, 4294901760
    %v2155 = vsub.f32 %v2153, %v2154
    %v2156 = vand.u32 %v2155, 4294901760
    %2157 = vmatpush1.msra.mxu0 %v2156
    %2158 = vmatprep.subr.mxu0 0.0
    %v2159 = vand.u32 %v43, 4294901760
    %v2160 = vsub.f32 %v43, %v2159
    %v2161 = vand.u32 %v2160, 4294901760
    %v2162 = vsub.f32 %v2160, %v2161
    %v2163 = vand.u32 %v2162, 4294901760
    %2164 = vmatpush1.msra.mxu0 %v2163
    %2165 = vmatprep.subr.mxu0 0.0
    %v2166 = vand.u32 %v44, 4294901760
    %v2167 = vsub.f32 %v44, %v2166
    %v2168 = vand.u32 %v2167, 4294901760
    %v2169 = vsub.f32 %v2167, %v2168
    %v2170 = vand.u32 %v2169, 4294901760
    %2171 = vmatpush1.msra.mxu0 %v2170
    %2172 = vmatprep.subr.mxu0 0.0
    %v2173 = vand.u32 %v45, 4294901760
    %v2174 = vsub.f32 %v45, %v2173
    %v2175 = vand.u32 %v2174, 4294901760
    %v2176 = vsub.f32 %v2174, %v2175
    %v2177 = vand.u32 %v2176, 4294901760
    %2178 = vmatpush1.msra.mxu0 %v2177
    %2179 = vmatprep.subr.mxu0 0.0
    %v2180 = vand.u32 %v46, 4294901760
    %v2181 = vsub.f32 %v46, %v2180
    %v2182 = vand.u32 %v2181, 4294901760
    %v2183 = vsub.f32 %v2181, %v2182
    %v2184 = vand.u32 %v2183, 4294901760
    %2185 = vmatpush1.msra.mxu0 %v2184
    %2186 = vmatprep.subr.mxu0 0.0
    %v2187 = vand.u32 %v47, 4294901760
    %v2188 = vsub.f32 %v47, %v2187
    %v2189 = vand.u32 %v2188, 4294901760
    %v2190 = vsub.f32 %v2188, %v2189
    %v2191 = vand.u32 %v2190, 4294901760
    %2192 = vmatpush1.msra.mxu0 %v2191
    %v2193 = vand.u32 %v1854, 4294901760
    %2194 = vmatprep.mubr.f32.mxu0 %v2193
    %v2195 = vand.u32 %v1853, 4294901760
    %2196 = vmatmul.mubr.f32.gmra.mrb[0].mxu0 %v2195
    %v2197 = vpop.f32.mrb[0].mxu0
    %v2198 = vadd.f32 %v1966, %v2197
    %v2199 = vpop.f32.mrb[0].mxu0
    %2200 = vdwg.mxu0
    %2201 = vmatprep.subr.mxu0 0.0
    %v2202 = vand.u32 %v16, 4294901760
    %v2203 = vsub.f32 %v16, %v2202
    %2204 = vmatpush1.msra.mxu0 %v2203
    %2205 = vmatprep.subr.mxu0 0.0
    %v2206 = vand.u32 %v17, 4294901760
    %v2207 = vsub.f32 %v17, %v2206
    %2208 = vmatpush1.msra.mxu0 %v2207
    %2209 = vmatprep.subr.mxu0 0.0
    %v2210 = vand.u32 %v18, 4294901760
    %v2211 = vsub.f32 %v18, %v2210
    %2212 = vmatpush1.msra.mxu0 %v2211
    %2213 = vmatprep.subr.mxu0 0.0
    %v2214 = vand.u32 %v19, 4294901760
    %v2215 = vsub.f32 %v19, %v2214
    %2216 = vmatpush1.msra.mxu0 %v2215
    %2217 = vmatprep.subr.mxu0 0.0
    %v2218 = vand.u32 %v20, 4294901760
    %v2219 = vsub.f32 %v20, %v2218
    %2220 = vmatpush1.msra.mxu0 %v2219
    %2221 = vmatprep.subr.mxu0 0.0
    %v2222 = vand.u32 %v21, 4294901760
    %v2223 = vsub.f32 %v21, %v2222
    %2224 = vmatpush1.msra.mxu0 %v2223
    %2225 = vmatprep.subr.mxu0 0.0
    %v2226 = vand.u32 %v22, 4294901760
    %v2227 = vsub.f32 %v22, %v2226
    %2228 = vmatpush1.msra.mxu0 %v2227
    %2229 = vmatprep.subr.mxu0 0.0
    %v2230 = vand.u32 %v23, 4294901760
    %v2231 = vsub.f32 %v23, %v2230
    %2232 = vmatpush1.msra.mxu0 %v2231
    %2233 = vmatprep.subr.mxu0 0.0
    %v2234 = vand.u32 %v24, 4294901760
    %v2235 = vsub.f32 %v24, %v2234
    %2236 = vmatpush1.msra.mxu0 %v2235
    %2237 = vmatprep.subr.mxu0 0.0
    %v2238 = vand.u32 %v25, 4294901760
    %v2239 = vsub.f32 %v25, %v2238
    %2240 = vmatpush1.msra.mxu0 %v2239
    %2241 = vmatprep.subr.mxu0 0.0
    %v2242 = vand.u32 %v26, 4294901760
    %v2243 = vsub.f32 %v26, %v2242
    %2244 = vmatpush1.msra.mxu0 %v2243
    %2245 = vmatprep.subr.mxu0 0.0
    %v2246 = vand.u32 %v27, 4294901760
    %v2247 = vsub.f32 %v27, %v2246
    %2248 = vmatpush1.msra.mxu0 %v2247
    %2249 = vmatprep.subr.mxu0 0.0
    %v2250 = vand.u32 %v28, 4294901760
    %v2251 = vsub.f32 %v28, %v2250
    %2252 = vmatpush1.msra.mxu0 %v2251
    %2253 = vmatprep.subr.mxu0 0.0
    %v2254 = vand.u32 %v29, 4294901760
    %v2255 = vsub.f32 %v29, %v2254
    %2256 = vmatpush1.msra.mxu0 %v2255
    %2257 = vmatprep.subr.mxu0 0.0
    %v2258 = vand.u32 %v30, 4294901760
    %v2259 = vsub.f32 %v30, %v2258
    %2260 = vmatpush1.msra.mxu0 %v2259
    %2261 = vmatprep.subr.mxu0 0.0
    %v2262 = vand.u32 %v31, 4294901760
    %v2263 = vsub.f32 %v31, %v2262
    %2264 = vmatpush1.msra.mxu0 %v2263
    %2265 = vmatprep.subr.mxu0 0.0
    %v2266 = vand.u32 %v32, 4294901760
    %v2267 = vsub.f32 %v32, %v2266
    %2268 = vmatpush1.msra.mxu0 %v2267
    %2269 = vmatprep.subr.mxu0 0.0
    %v2270 = vand.u32 %v33, 4294901760
    %v2271 = vsub.f32 %v33, %v2270
    %2272 = vmatpush1.msra.mxu0 %v2271
    %2273 = vmatprep.subr.mxu0 0.0
    %v2274 = vand.u32 %v34, 4294901760
    %v2275 = vsub.f32 %v34, %v2274
    %2276 = vmatpush1.msra.mxu0 %v2275
    %2277 = vmatprep.subr.mxu0 0.0
    %v2278 = vand.u32 %v35, 4294901760
    %v2279 = vsub.f32 %v35, %v2278
    %2280 = vmatpush1.msra.mxu0 %v2279
    %2281 = vmatprep.subr.mxu0 0.0
    %v2282 = vand.u32 %v36, 4294901760
    %v2283 = vsub.f32 %v36, %v2282
    %2284 = vmatpush1.msra.mxu0 %v2283
    %2285 = vmatprep.subr.mxu0 0.0
    %v2286 = vand.u32 %v37, 4294901760
    %v2287 = vsub.f32 %v37, %v2286
    %2288 = vmatpush1.msra.mxu0 %v2287
    %2289 = vmatprep.subr.mxu0 0.0
    %v2290 = vand.u32 %v38, 4294901760
    %v2291 = vsub.f32 %v38, %v2290
    %2292 = vmatpush1.msra.mxu0 %v2291
    %2293 = vmatprep.subr.mxu0 0.0
    %v2294 = vand.u32 %v39, 4294901760
    %v2295 = vsub.f32 %v39, %v2294
    %2296 = vmatpush1.msra.mxu0 %v2295
    %2297 = vmatprep.subr.mxu0 0.0
    %v2298 = vand.u32 %v40, 4294901760
    %v2299 = vsub.f32 %v40, %v2298
    %2300 = vmatpush1.msra.mxu0 %v2299
    %2301 = vmatprep.subr.mxu0 0.0
    %v2302 = vand.u32 %v41, 4294901760
    %v2303 = vsub.f32 %v41, %v2302
    %2304 = vmatpush1.msra.mxu0 %v2303
    %2305 = vmatprep.subr.mxu0 0.0
    %v2306 = vand.u32 %v42, 4294901760
    %v2307 = vsub.f32 %v42, %v2306
    %2308 = vmatpush1.msra.mxu0 %v2307
    %2309 = vmatprep.subr.mxu0 0.0
    %v2310 = vand.u32 %v43, 4294901760
    %v2311 = vsub.f32 %v43, %v2310
    %2312 = vmatpush1.msra.mxu0 %v2311
    %2313 = vmatprep.subr.mxu0 0.0
    %v2314 = vand.u32 %v44, 4294901760
    %v2315 = vsub.f32 %v44, %v2314
    %2316 = vmatpush1.msra.mxu0 %v2315
    %2317 = vmatprep.subr.mxu0 0.0
    %v2318 = vand.u32 %v45, 4294901760
    %v2319 = vsub.f32 %v45, %v2318
    %2320 = vmatpush1.msra.mxu0 %v2319
    %2321 = vmatprep.subr.mxu0 0.0
    %v2322 = vand.u32 %v46, 4294901760
    %v2323 = vsub.f32 %v46, %v2322
    %2324 = vmatpush1.msra.mxu0 %v2323
    %2325 = vmatprep.subr.mxu0 0.0
    %v2326 = vand.u32 %v47, 4294901760
    %v2327 = vsub.f32 %v47, %v2326
    %2328 = vmatpush1.msra.mxu0 %v2327
    %v2329 = vand.u32 %v1854, 4294901760
    %v2330 = vsub.f32 %v1854, %v2329
    %2331 = vmatprep.mubr.f32.mxu0 %v2330
    %v2332 = vand.u32 %v1853, 4294901760
    %v2333 = vsub.f32 %v1853, %v2332
    %2334 = vmatmul.mubr.f32.gmra.mrb[0].mxu0 %v2333
    %v2335 = vpop.f32.mrb[0].mxu0
    %v2336 = vadd.f32 %v2198, %v2335
    %v2337 = vpop.f32.mrb[0].mxu0
    %2338 = vdwg.mxu0
    %2339 = vmatprep.subr.mxu0 0.0
    %v2340 = vand.u32 %v16, 4294901760
    %2341 = vmatpush1.msra.mxu0 %v2340
    %2342 = vmatprep.subr.mxu0 0.0
    %v2343 = vand.u32 %v17, 4294901760
    %2344 = vmatpush1.msra.mxu0 %v2343
    %2345 = vmatprep.subr.mxu0 0.0
    %v2346 = vand.u32 %v18, 4294901760
    %2347 = vmatpush1.msra.mxu0 %v2346
    %2348 = vmatprep.subr.mxu0 0.0
    %v2349 = vand.u32 %v19, 4294901760
    %2350 = vmatpush1.msra.mxu0 %v2349
    %2351 = vmatprep.subr.mxu0 0.0
    %v2352 = vand.u32 %v20, 4294901760
    %2353 = vmatpush1.msra.mxu0 %v2352
    %2354 = vmatprep.subr.mxu0 0.0
    %v2355 = vand.u32 %v21, 4294901760
    %2356 = vmatpush1.msra.mxu0 %v2355
    %2357 = vmatprep.subr.mxu0 0.0
    %v2358 = vand.u32 %v22, 4294901760
    %2359 = vmatpush1.msra.mxu0 %v2358
    %2360 = vmatprep.subr.mxu0 0.0
    %v2361 = vand.u32 %v23, 4294901760
    %2362 = vmatpush1.msra.mxu0 %v2361
    %2363 = vmatprep.subr.mxu0 0.0
    %v2364 = vand.u32 %v24, 4294901760
    %2365 = vmatpush1.msra.mxu0 %v2364
    %2366 = vmatprep.subr.mxu0 0.0
    %v2367 = vand.u32 %v25, 4294901760
    %2368 = vmatpush1.msra.mxu0 %v2367
    %2369 = vmatprep.subr.mxu0 0.0
    %v2370 = vand.u32 %v26, 4294901760
    %2371 = vmatpush1.msra.mxu0 %v2370
    %2372 = vmatprep.subr.mxu0 0.0
    %v2373 = vand.u32 %v27, 4294901760
    %2374 = vmatpush1.msra.mxu0 %v2373
    %2375 = vmatprep.subr.mxu0 0.0
    %v2376 = vand.u32 %v28, 4294901760
    %2377 = vmatpush1.msra.mxu0 %v2376
    %2378 = vmatprep.subr.mxu0 0.0
    %v2379 = vand.u32 %v29, 4294901760
    %2380 = vmatpush1.msra.mxu0 %v2379
    %2381 = vmatprep.subr.mxu0 0.0
    %v2382 = vand.u32 %v30, 4294901760
    %2383 = vmatpush1.msra.mxu0 %v2382
    %2384 = vmatprep.subr.mxu0 0.0
    %v2385 = vand.u32 %v31, 4294901760
    %2386 = vmatpush1.msra.mxu0 %v2385
    %2387 = vmatprep.subr.mxu0 0.0
    %v2388 = vand.u32 %v32, 4294901760
    %2389 = vmatpush1.msra.mxu0 %v2388
    %2390 = vmatprep.subr.mxu0 0.0
    %v2391 = vand.u32 %v33, 4294901760
    %2392 = vmatpush1.msra.mxu0 %v2391
    %2393 = vmatprep.subr.mxu0 0.0
    %v2394 = vand.u32 %v34, 4294901760
    %2395 = vmatpush1.msra.mxu0 %v2394
    %2396 = vmatprep.subr.mxu0 0.0
    %v2397 = vand.u32 %v35, 4294901760
    %2398 = vmatpush1.msra.mxu0 %v2397
    %2399 = vmatprep.subr.mxu0 0.0
    %v2400 = vand.u32 %v36, 4294901760
    %2401 = vmatpush1.msra.mxu0 %v2400
    %2402 = vmatprep.subr.mxu0 0.0
    %v2403 = vand.u32 %v37, 4294901760
    %2404 = vmatpush1.msra.mxu0 %v2403
    %2405 = vmatprep.subr.mxu0 0.0
    %v2406 = vand.u32 %v38, 4294901760
    %2407 = vmatpush1.msra.mxu0 %v2406
    %2408 = vmatprep.subr.mxu0 0.0
    %v2409 = vand.u32 %v39, 4294901760
    %2410 = vmatpush1.msra.mxu0 %v2409
    %2411 = vmatprep.subr.mxu0 0.0
    %v2412 = vand.u32 %v40, 4294901760
    %2413 = vmatpush1.msra.mxu0 %v2412
    %2414 = vmatprep.subr.mxu0 0.0
    %v2415 = vand.u32 %v41, 4294901760
    %2416 = vmatpush1.msra.mxu0 %v2415
    %2417 = vmatprep.subr.mxu0 0.0
    %v2418 = vand.u32 %v42, 4294901760
    %2419 = vmatpush1.msra.mxu0 %v2418
    %2420 = vmatprep.subr.mxu0 0.0
    %v2421 = vand.u32 %v43, 4294901760
    %2422 = vmatpush1.msra.mxu0 %v2421
    %2423 = vmatprep.subr.mxu0 0.0
    %v2424 = vand.u32 %v44, 4294901760
    %2425 = vmatpush1.msra.mxu0 %v2424
    %2426 = vmatprep.subr.mxu0 0.0
    %v2427 = vand.u32 %v45, 4294901760
    %2428 = vmatpush1.msra.mxu0 %v2427
    %2429 = vmatprep.subr.mxu0 0.0
    %v2430 = vand.u32 %v46, 4294901760
    %2431 = vmatpush1.msra.mxu0 %v2430
    %2432 = vmatprep.subr.mxu0 0.0
    %v2433 = vand.u32 %v47, 4294901760
    %2434 = vmatpush1.msra.mxu0 %v2433
    %v2435 = vand.u32 %v1854, 4294901760
    %v2436 = vsub.f32 %v1854, %v2435
    %v2437 = vand.u32 %v2436, 4294901760
    %2438 = vmatprep.mubr.f32.mxu0 %v2437
    %v2439 = vand.u32 %v1853, 4294901760
    %v2440 = vsub.f32 %v1853, %v2439
    %v2441 = vand.u32 %v2440, 4294901760
    %2442 = vmatmul.mubr.f32.gmra.mrb[0].mxu0 %v2441
    %v2443 = vpop.f32.mrb[0].mxu0
    %v2444 = vadd.f32 %v2336, %v2443
    %v2445 = vpop.f32.mrb[0].mxu0
    %2446 = vdwg.mxu0
    %2447 = vmatprep.subr.mxu0 0.0
    %v2448 = vand.u32 %v16, 4294901760
    %v2449 = vsub.f32 %v16, %v2448
    %v2450 = vand.u32 %v2449, 4294901760
    %2451 = vmatpush1.msra.mxu0 %v2450
    %2452 = vmatprep.subr.mxu0 0.0
    %v2453 = vand.u32 %v17, 4294901760
    %v2454 = vsub.f32 %v17, %v2453
    %v2455 = vand.u32 %v2454, 4294901760
    %2456 = vmatpush1.msra.mxu0 %v2455
    %2457 = vmatprep.subr.mxu0 0.0
    %v2458 = vand.u32 %v18, 4294901760
    %v2459 = vsub.f32 %v18, %v2458
    %v2460 = vand.u32 %v2459, 4294901760
    %2461 = vmatpush1.msra.mxu0 %v2460
    %2462 = vmatprep.subr.mxu0 0.0
    %v2463 = vand.u32 %v19, 4294901760
    %v2464 = vsub.f32 %v19, %v2463
    %v2465 = vand.u32 %v2464, 4294901760
    %2466 = vmatpush1.msra.mxu0 %v2465
    %2467 = vmatprep.subr.mxu0 0.0
    %v2468 = vand.u32 %v20, 4294901760
    %v2469 = vsub.f32 %v20, %v2468
    %v2470 = vand.u32 %v2469, 4294901760
    %2471 = vmatpush1.msra.mxu0 %v2470
    %2472 = vmatprep.subr.mxu0 0.0
    %v2473 = vand.u32 %v21, 4294901760
    %v2474 = vsub.f32 %v21, %v2473
    %v2475 = vand.u32 %v2474, 4294901760
    %2476 = vmatpush1.msra.mxu0 %v2475
    %2477 = vmatprep.subr.mxu0 0.0
    %v2478 = vand.u32 %v22, 4294901760
    %v2479 = vsub.f32 %v22, %v2478
    %v2480 = vand.u32 %v2479, 4294901760
    %2481 = vmatpush1.msra.mxu0 %v2480
    %2482 = vmatprep.subr.mxu0 0.0
    %v2483 = vand.u32 %v23, 4294901760
    %v2484 = vsub.f32 %v23, %v2483
    %v2485 = vand.u32 %v2484, 4294901760
    %2486 = vmatpush1.msra.mxu0 %v2485
    %2487 = vmatprep.subr.mxu0 0.0
    %v2488 = vand.u32 %v24, 4294901760
    %v2489 = vsub.f32 %v24, %v2488
    %v2490 = vand.u32 %v2489, 4294901760
    %2491 = vmatpush1.msra.mxu0 %v2490
    %2492 = vmatprep.subr.mxu0 0.0
    %v2493 = vand.u32 %v25, 4294901760
    %v2494 = vsub.f32 %v25, %v2493
    %v2495 = vand.u32 %v2494, 4294901760
    %2496 = vmatpush1.msra.mxu0 %v2495
    %2497 = vmatprep.subr.mxu0 0.0
    %v2498 = vand.u32 %v26, 4294901760
    %v2499 = vsub.f32 %v26, %v2498
    %v2500 = vand.u32 %v2499, 4294901760
    %2501 = vmatpush1.msra.mxu0 %v2500
    %2502 = vmatprep.subr.mxu0 0.0
    %v2503 = vand.u32 %v27, 4294901760
    %v2504 = vsub.f32 %v27, %v2503
    %v2505 = vand.u32 %v2504, 4294901760
    %2506 = vmatpush1.msra.mxu0 %v2505
    %2507 = vmatprep.subr.mxu0 0.0
    %v2508 = vand.u32 %v28, 4294901760
    %v2509 = vsub.f32 %v28, %v2508
    %v2510 = vand.u32 %v2509, 4294901760
    %2511 = vmatpush1.msra.mxu0 %v2510
    %2512 = vmatprep.subr.mxu0 0.0
    %v2513 = vand.u32 %v29, 4294901760
    %v2514 = vsub.f32 %v29, %v2513
    %v2515 = vand.u32 %v2514, 4294901760
    %2516 = vmatpush1.msra.mxu0 %v2515
    %2517 = vmatprep.subr.mxu0 0.0
    %v2518 = vand.u32 %v30, 4294901760
    %v2519 = vsub.f32 %v30, %v2518
    %v2520 = vand.u32 %v2519, 4294901760
    %2521 = vmatpush1.msra.mxu0 %v2520
    %2522 = vmatprep.subr.mxu0 0.0
    %v2523 = vand.u32 %v31, 4294901760
    %v2524 = vsub.f32 %v31, %v2523
    %v2525 = vand.u32 %v2524, 4294901760
    %2526 = vmatpush1.msra.mxu0 %v2525
    %2527 = vmatprep.subr.mxu0 0.0
    %v2528 = vand.u32 %v32, 4294901760
    %v2529 = vsub.f32 %v32, %v2528
    %v2530 = vand.u32 %v2529, 4294901760
    %2531 = vmatpush1.msra.mxu0 %v2530
    %2532 = vmatprep.subr.mxu0 0.0
    %v2533 = vand.u32 %v33, 4294901760
    %v2534 = vsub.f32 %v33, %v2533
    %v2535 = vand.u32 %v2534, 4294901760
    %2536 = vmatpush1.msra.mxu0 %v2535
    %2537 = vmatprep.subr.mxu0 0.0
    %v2538 = vand.u32 %v34, 4294901760
    %v2539 = vsub.f32 %v34, %v2538
    %v2540 = vand.u32 %v2539, 4294901760
    %2541 = vmatpush1.msra.mxu0 %v2540
    %2542 = vmatprep.subr.mxu0 0.0
    %v2543 = vand.u32 %v35, 4294901760
    %v2544 = vsub.f32 %v35, %v2543
    %v2545 = vand.u32 %v2544, 4294901760
    %2546 = vmatpush1.msra.mxu0 %v2545
    %2547 = vmatprep.subr.mxu0 0.0
    %v2548 = vand.u32 %v36, 4294901760
    %v2549 = vsub.f32 %v36, %v2548
    %v2550 = vand.u32 %v2549, 4294901760
    %2551 = vmatpush1.msra.mxu0 %v2550
    %2552 = vmatprep.subr.mxu0 0.0
    %v2553 = vand.u32 %v37, 4294901760
    %v2554 = vsub.f32 %v37, %v2553
    %v2555 = vand.u32 %v2554, 4294901760
    %2556 = vmatpush1.msra.mxu0 %v2555
    %2557 = vmatprep.subr.mxu0 0.0
    %v2558 = vand.u32 %v38, 4294901760
    %v2559 = vsub.f32 %v38, %v2558
    %v2560 = vand.u32 %v2559, 4294901760
    %2561 = vmatpush1.msra.mxu0 %v2560
    %2562 = vmatprep.subr.mxu0 0.0
    %v2563 = vand.u32 %v39, 4294901760
    %v2564 = vsub.f32 %v39, %v2563
    %v2565 = vand.u32 %v2564, 4294901760
    %2566 = vmatpush1.msra.mxu0 %v2565
    %2567 = vmatprep.subr.mxu0 0.0
    %v2568 = vand.u32 %v40, 4294901760
    %v2569 = vsub.f32 %v40, %v2568
    %v2570 = vand.u32 %v2569, 4294901760
    %2571 = vmatpush1.msra.mxu0 %v2570
    %2572 = vmatprep.subr.mxu0 0.0
    %v2573 = vand.u32 %v41, 4294901760
    %v2574 = vsub.f32 %v41, %v2573
    %v2575 = vand.u32 %v2574, 4294901760
    %2576 = vmatpush1.msra.mxu0 %v2575
    %2577 = vmatprep.subr.mxu0 0.0
    %v2578 = vand.u32 %v42, 4294901760
    %v2579 = vsub.f32 %v42, %v2578
    %v2580 = vand.u32 %v2579, 4294901760
    %2581 = vmatpush1.msra.mxu0 %v2580
    %2582 = vmatprep.subr.mxu0 0.0
    %v2583 = vand.u32 %v43, 4294901760
    %v2584 = vsub.f32 %v43, %v2583
    %v2585 = vand.u32 %v2584, 4294901760
    %2586 = vmatpush1.msra.mxu0 %v2585
    %2587 = vmatprep.subr.mxu0 0.0
    %v2588 = vand.u32 %v44, 4294901760
    %v2589 = vsub.f32 %v44, %v2588
    %v2590 = vand.u32 %v2589, 4294901760
    %2591 = vmatpush1.msra.mxu0 %v2590
    %2592 = vmatprep.subr.mxu0 0.0
    %v2593 = vand.u32 %v45, 4294901760
    %v2594 = vsub.f32 %v45, %v2593
    %v2595 = vand.u32 %v2594, 4294901760
    %2596 = vmatpush1.msra.mxu0 %v2595
    %2597 = vmatprep.subr.mxu0 0.0
    %v2598 = vand.u32 %v46, 4294901760
    %v2599 = vsub.f32 %v46, %v2598
    %v2600 = vand.u32 %v2599, 4294901760
    %2601 = vmatpush1.msra.mxu0 %v2600
    %2602 = vmatprep.subr.mxu0 0.0
    %v2603 = vand.u32 %v47, 4294901760
    %v2604 = vsub.f32 %v47, %v2603
    %v2605 = vand.u32 %v2604, 4294901760
    %2606 = vmatpush1.msra.mxu0 %v2605
    %v2607 = vand.u32 %v1854, 4294901760
    %2608 = vmatprep.mubr.f32.mxu0 %v2607
    %v2609 = vand.u32 %v1853, 4294901760
    %2610 = vmatmul.mubr.f32.gmra.mrb[0].mxu0 %v2609
    %v2611 = vpop.f32.mrb[0].mxu0
    %v2612 = vadd.f32 %v2444, %v2611
    %v2613 = vpop.f32.mrb[0].mxu0
    %2614 = vdwg.mxu0
    %2615 = vmatprep.subr.mxu0 0.0
    %v2616 = vand.u32 %v16, 4294901760
    %2617 = vmatpush1.msra.mxu0 %v2616
    %2618 = vmatprep.subr.mxu0 0.0
    %v2619 = vand.u32 %v17, 4294901760
    %2620 = vmatpush1.msra.mxu0 %v2619
    %2621 = vmatprep.subr.mxu0 0.0
    %v2622 = vand.u32 %v18, 4294901760
    %2623 = vmatpush1.msra.mxu0 %v2622
    %2624 = vmatprep.subr.mxu0 0.0
    %v2625 = vand.u32 %v19, 4294901760
    %2626 = vmatpush1.msra.mxu0 %v2625
    %2627 = vmatprep.subr.mxu0 0.0
    %v2628 = vand.u32 %v20, 4294901760
    %2629 = vmatpush1.msra.mxu0 %v2628
    %2630 = vmatprep.subr.mxu0 0.0
    %v2631 = vand.u32 %v21, 4294901760
    %2632 = vmatpush1.msra.mxu0 %v2631
    %2633 = vmatprep.subr.mxu0 0.0
    %v2634 = vand.u32 %v22, 4294901760
    %2635 = vmatpush1.msra.mxu0 %v2634
    %2636 = vmatprep.subr.mxu0 0.0
    %v2637 = vand.u32 %v23, 4294901760
    %2638 = vmatpush1.msra.mxu0 %v2637
    %2639 = vmatprep.subr.mxu0 0.0
    %v2640 = vand.u32 %v24, 4294901760
    %2641 = vmatpush1.msra.mxu0 %v2640
    %2642 = vmatprep.subr.mxu0 0.0
    %v2643 = vand.u32 %v25, 4294901760
    %2644 = vmatpush1.msra.mxu0 %v2643
    %2645 = vmatprep.subr.mxu0 0.0
    %v2646 = vand.u32 %v26, 4294901760
    %2647 = vmatpush1.msra.mxu0 %v2646
    %2648 = vmatprep.subr.mxu0 0.0
    %v2649 = vand.u32 %v27, 4294901760
    %2650 = vmatpush1.msra.mxu0 %v2649
    %2651 = vmatprep.subr.mxu0 0.0
    %v2652 = vand.u32 %v28, 4294901760
    %2653 = vmatpush1.msra.mxu0 %v2652
    %2654 = vmatprep.subr.mxu0 0.0
    %v2655 = vand.u32 %v29, 4294901760
    %2656 = vmatpush1.msra.mxu0 %v2655
    %2657 = vmatprep.subr.mxu0 0.0
    %v2658 = vand.u32 %v30, 4294901760
    %2659 = vmatpush1.msra.mxu0 %v2658
    %2660 = vmatprep.subr.mxu0 0.0
    %v2661 = vand.u32 %v31, 4294901760
    %2662 = vmatpush1.msra.mxu0 %v2661
    %2663 = vmatprep.subr.mxu0 0.0
    %v2664 = vand.u32 %v32, 4294901760
    %2665 = vmatpush1.msra.mxu0 %v2664
    %2666 = vmatprep.subr.mxu0 0.0
    %v2667 = vand.u32 %v33, 4294901760
    %2668 = vmatpush1.msra.mxu0 %v2667
    %2669 = vmatprep.subr.mxu0 0.0
    %v2670 = vand.u32 %v34, 4294901760
    %2671 = vmatpush1.msra.mxu0 %v2670
    %2672 = vmatprep.subr.mxu0 0.0
    %v2673 = vand.u32 %v35, 4294901760
    %2674 = vmatpush1.msra.mxu0 %v2673
    %2675 = vmatprep.subr.mxu0 0.0
    %v2676 = vand.u32 %v36, 4294901760
    %2677 = vmatpush1.msra.mxu0 %v2676
    %2678 = vmatprep.subr.mxu0 0.0
    %v2679 = vand.u32 %v37, 4294901760
    %2680 = vmatpush1.msra.mxu0 %v2679
    %2681 = vmatprep.subr.mxu0 0.0
    %v2682 = vand.u32 %v38, 4294901760
    %2683 = vmatpush1.msra.mxu0 %v2682
    %2684 = vmatprep.subr.mxu0 0.0
    %v2685 = vand.u32 %v39, 4294901760
    %2686 = vmatpush1.msra.mxu0 %v2685
    %2687 = vmatprep.subr.mxu0 0.0
    %v2688 = vand.u32 %v40, 4294901760
    %2689 = vmatpush1.msra.mxu0 %v2688
    %2690 = vmatprep.subr.mxu0 0.0
    %v2691 = vand.u32 %v41, 4294901760
    %2692 = vmatpush1.msra.mxu0 %v2691
    %2693 = vmatprep.subr.mxu0 0.0
    %v2694 = vand.u32 %v42, 4294901760
    %2695 = vmatpush1.msra.mxu0 %v2694
    %2696 = vmatprep.subr.mxu0 0.0
    %v2697 = vand.u32 %v43, 4294901760
    %2698 = vmatpush1.msra.mxu0 %v2697
    %2699 = vmatprep.subr.mxu0 0.0
    %v2700 = vand.u32 %v44, 4294901760
    %2701 = vmatpush1.msra.mxu0 %v2700
    %2702 = vmatprep.subr.mxu0 0.0
    %v2703 = vand.u32 %v45, 4294901760
    %2704 = vmatpush1.msra.mxu0 %v2703
    %2705 = vmatprep.subr.mxu0 0.0
    %v2706 = vand.u32 %v46, 4294901760
    %2707 = vmatpush1.msra.mxu0 %v2706
    %2708 = vmatprep.subr.mxu0 0.0
    %v2709 = vand.u32 %v47, 4294901760
    %2710 = vmatpush1.msra.mxu0 %v2709
    %v2711 = vand.u32 %v1854, 4294901760
    %2712 = vmatprep.mubr.f32.mxu0 %v2711
    %v2713 = vand.u32 %v1853, 4294901760
    %2714 = vmatmul.mubr.f32.gmra.mrb[0].mxu0 %v2713
    %v2715 = vpop.f32.mrb[0].mxu0
    %v2716 = vadd.f32 %v2612, %v2715
    %v2717 = vpop.f32.mrb[0].mxu0
    %2718 = vdwg.mxu0
    %2719 = vmatprep.subr.mxu0 0.0
    %v2720 = vand.u32 %v48, 4294901760
    %2721 = vmatpush1.msra.mxu0 %v2720
    %2722 = vmatprep.subr.mxu0 0.0
    %v2723 = vand.u32 %v49, 4294901760
    %2724 = vmatpush1.msra.mxu0 %v2723
    %2725 = vmatprep.subr.mxu0 0.0
    %v2726 = vand.u32 %v50, 4294901760
    %2727 = vmatpush1.msra.mxu0 %v2726
    %2728 = vmatprep.subr.mxu0 0.0
    %v2729 = vand.u32 %v51, 4294901760
    %2730 = vmatpush1.msra.mxu0 %v2729
    %2731 = vmatprep.subr.mxu0 0.0
    %v2732 = vand.u32 %v52, 4294901760
    %2733 = vmatpush1.msra.mxu0 %v2732
    %2734 = vmatprep.subr.mxu0 0.0
    %v2735 = vand.u32 %v53, 4294901760
    %2736 = vmatpush1.msra.mxu0 %v2735
    %2737 = vmatprep.subr.mxu0 0.0
    %v2738 = vand.u32 %v54, 4294901760
    %2739 = vmatpush1.msra.mxu0 %v2738
    %2740 = vmatprep.subr.mxu0 0.0
    %v2741 = vand.u32 %v55, 4294901760
    %2742 = vmatpush1.msra.mxu0 %v2741
    %2743 = vmatprep.subr.mxu0 0.0
    %v2744 = vand.u32 %v56, 4294901760
    %2745 = vmatpush1.msra.mxu0 %v2744
    %2746 = vmatprep.subr.mxu0 0.0
    %v2747 = vand.u32 %v57, 4294901760
    %2748 = vmatpush1.msra.mxu0 %v2747
    %2749 = vmatprep.subr.mxu0 0.0
    %v2750 = vand.u32 %v58, 4294901760
    %2751 = vmatpush1.msra.mxu0 %v2750
    %2752 = vmatprep.subr.mxu0 0.0
    %v2753 = vand.u32 %v59, 4294901760
    %2754 = vmatpush1.msra.mxu0 %v2753
    %2755 = vmatprep.subr.mxu0 0.0
    %v2756 = vand.u32 %v60, 4294901760
    %2757 = vmatpush1.msra.mxu0 %v2756
    %2758 = vmatprep.subr.mxu0 0.0
    %v2759 = vand.u32 %v61, 4294901760
    %2760 = vmatpush1.msra.mxu0 %v2759
    %2761 = vmatprep.subr.mxu0 0.0
    %v2762 = vand.u32 %v62, 4294901760
    %2763 = vmatpush1.msra.mxu0 %v2762
    %2764 = vmatprep.subr.mxu0 0.0
    %v2765 = vand.u32 %v63, 4294901760
    %2766 = vmatpush1.msra.mxu0 %v2765
    %2767 = vmatprep.subr.mxu0 0.0
    %v2768 = vand.u32 %v64, 4294901760
    %2769 = vmatpush1.msra.mxu0 %v2768
    %2770 = vmatprep.subr.mxu0 0.0
    %v2771 = vand.u32 %v65, 4294901760
    %2772 = vmatpush1.msra.mxu0 %v2771
    %2773 = vmatprep.subr.mxu0 0.0
    %v2774 = vand.u32 %v66, 4294901760
    %2775 = vmatpush1.msra.mxu0 %v2774
    %2776 = vmatprep.subr.mxu0 0.0
    %v2777 = vand.u32 %v67, 4294901760
    %2778 = vmatpush1.msra.mxu0 %v2777
    %2779 = vmatprep.subr.mxu0 0.0
    %v2780 = vand.u32 %v68, 4294901760
    %2781 = vmatpush1.msra.mxu0 %v2780
    %2782 = vmatprep.subr.mxu0 0.0
    %v2783 = vand.u32 %v69, 4294901760
    %2784 = vmatpush1.msra.mxu0 %v2783
    %2785 = vmatprep.subr.mxu0 0.0
    %v2786 = vand.u32 %v70, 4294901760
    %2787 = vmatpush1.msra.mxu0 %v2786
    %2788 = vmatprep.subr.mxu0 0.0
    %v2789 = vand.u32 %v71, 4294901760
    %2790 = vmatpush1.msra.mxu0 %v2789
    %2791 = vmatprep.subr.mxu0 0.0
    %v2792 = vand.u32 %v72, 4294901760
    %2793 = vmatpush1.msra.mxu0 %v2792
    %2794 = vmatprep.subr.mxu0 0.0
    %v2795 = vand.u32 %v73, 4294901760
    %2796 = vmatpush1.msra.mxu0 %v2795
    %2797 = vmatprep.subr.mxu0 0.0
    %v2798 = vand.u32 %v74, 4294901760
    %2799 = vmatpush1.msra.mxu0 %v2798
    %2800 = vmatprep.subr.mxu0 0.0
    %v2801 = vand.u32 %v75, 4294901760
    %2802 = vmatpush1.msra.mxu0 %v2801
    %2803 = vmatprep.subr.mxu0 0.0
    %v2804 = vand.u32 %v76, 4294901760
    %2805 = vmatpush1.msra.mxu0 %v2804
    %2806 = vmatprep.subr.mxu0 0.0
    %v2807 = vand.u32 %v77, 4294901760
    %2808 = vmatpush1.msra.mxu0 %v2807
    %2809 = vmatprep.subr.mxu0 0.0
    %v2810 = vand.u32 %v78, 4294901760
    %2811 = vmatpush1.msra.mxu0 %v2810
    %2812 = vmatprep.subr.mxu0 0.0
    %v2813 = vand.u32 %v79, 4294901760
    %2814 = vmatpush1.msra.mxu0 %v2813
    %v2815 = vand.u32 %v1856, 4294901760
    %v2816 = vsub.f32 %v1856, %v2815
    %v2817 = vand.u32 %v2816, 4294901760
    %v2818 = vsub.f32 %v2816, %v2817
    %v2819 = vand.u32 %v2818, 4294901760
    %2820 = vmatprep.mubr.f32.mxu0 %v2819
    %v2821 = vand.u32 %v1855, 4294901760
    %v2822 = vsub.f32 %v1855, %v2821
    %v2823 = vand.u32 %v2822, 4294901760
    %v2824 = vsub.f32 %v2822, %v2823
    %v2825 = vand.u32 %v2824, 4294901760
    %2826 = vmatmul.mubr.f32.gmra.mrb[0].mxu0 %v2825
    %v2827 = vpop.f32.mrb[0].mxu0
    %v2828 = vadd.f32 %v2716, %v2827
    %v2829 = vpop.f32.mrb[0].mxu0
    %2830 = vdwg.mxu0
    %2831 = vmatprep.subr.mxu0 0.0
    %v2832 = vand.u32 %v48, 4294901760
    %v2833 = vsub.f32 %v48, %v2832
    %v2834 = vand.u32 %v2833, 4294901760
    %v2835 = vsub.f32 %v2833, %v2834
    %v2836 = vand.u32 %v2835, 4294901760
    %2837 = vmatpush1.msra.mxu0 %v2836
    %2838 = vmatprep.subr.mxu0 0.0
    %v2839 = vand.u32 %v49, 4294901760
    %v2840 = vsub.f32 %v49, %v2839
    %v2841 = vand.u32 %v2840, 4294901760
    %v2842 = vsub.f32 %v2840, %v2841
    %v2843 = vand.u32 %v2842, 4294901760
    %2844 = vmatpush1.msra.mxu0 %v2843
    %2845 = vmatprep.subr.mxu0 0.0
    %v2846 = vand.u32 %v50, 4294901760
    %v2847 = vsub.f32 %v50, %v2846
    %v2848 = vand.u32 %v2847, 4294901760
    %v2849 = vsub.f32 %v2847, %v2848
    %v2850 = vand.u32 %v2849, 4294901760
    %2851 = vmatpush1.msra.mxu0 %v2850
    %2852 = vmatprep.subr.mxu0 0.0
    %v2853 = vand.u32 %v51, 4294901760
    %v2854 = vsub.f32 %v51, %v2853
    %v2855 = vand.u32 %v2854, 4294901760
    %v2856 = vsub.f32 %v2854, %v2855
    %v2857 = vand.u32 %v2856, 4294901760
    %2858 = vmatpush1.msra.mxu0 %v2857
    %2859 = vmatprep.subr.mxu0 0.0
    %v2860 = vand.u32 %v52, 4294901760
    %v2861 = vsub.f32 %v52, %v2860
    %v2862 = vand.u32 %v2861, 4294901760
    %v2863 = vsub.f32 %v2861, %v2862
    %v2864 = vand.u32 %v2863, 4294901760
    %2865 = vmatpush1.msra.mxu0 %v2864
    %2866 = vmatprep.subr.mxu0 0.0
    %v2867 = vand.u32 %v53, 4294901760
    %v2868 = vsub.f32 %v53, %v2867
    %v2869 = vand.u32 %v2868, 4294901760
    %v2870 = vsub.f32 %v2868, %v2869
    %v2871 = vand.u32 %v2870, 4294901760
    %2872 = vmatpush1.msra.mxu0 %v2871
    %2873 = vmatprep.subr.mxu0 0.0
    %v2874 = vand.u32 %v54, 4294901760
    %v2875 = vsub.f32 %v54, %v2874
    %v2876 = vand.u32 %v2875, 4294901760
    %v2877 = vsub.f32 %v2875, %v2876
    %v2878 = vand.u32 %v2877, 4294901760
    %2879 = vmatpush1.msra.mxu0 %v2878
    %2880 = vmatprep.subr.mxu0 0.0
    %v2881 = vand.u32 %v55, 4294901760
    %v2882 = vsub.f32 %v55, %v2881
    %v2883 = vand.u32 %v2882, 4294901760
    %v2884 = vsub.f32 %v2882, %v2883
    %v2885 = vand.u32 %v2884, 4294901760
    %2886 = vmatpush1.msra.mxu0 %v2885
    %2887 = vmatprep.subr.mxu0 0.0
    %v2888 = vand.u32 %v56, 4294901760
    %v2889 = vsub.f32 %v56, %v2888
    %v2890 = vand.u32 %v2889, 4294901760
    %v2891 = vsub.f32 %v2889, %v2890
    %v2892 = vand.u32 %v2891, 4294901760
    %2893 = vmatpush1.msra.mxu0 %v2892
    %2894 = vmatprep.subr.mxu0 0.0
    %v2895 = vand.u32 %v57, 4294901760
    %v2896 = vsub.f32 %v57, %v2895
    %v2897 = vand.u32 %v2896, 4294901760
    %v2898 = vsub.f32 %v2896, %v2897
    %v2899 = vand.u32 %v2898, 4294901760
    %2900 = vmatpush1.msra.mxu0 %v2899
    %2901 = vmatprep.subr.mxu0 0.0
    %v2902 = vand.u32 %v58, 4294901760
    %v2903 = vsub.f32 %v58, %v2902
    %v2904 = vand.u32 %v2903, 4294901760
    %v2905 = vsub.f32 %v2903, %v2904
    %v2906 = vand.u32 %v2905, 4294901760
    %2907 = vmatpush1.msra.mxu0 %v2906
    %2908 = vmatprep.subr.mxu0 0.0
    %v2909 = vand.u32 %v59, 4294901760
    %v2910 = vsub.f32 %v59, %v2909
    %v2911 = vand.u32 %v2910, 4294901760
    %v2912 = vsub.f32 %v2910, %v2911
    %v2913 = vand.u32 %v2912, 4294901760
    %2914 = vmatpush1.msra.mxu0 %v2913
    %2915 = vmatprep.subr.mxu0 0.0
    %v2916 = vand.u32 %v60, 4294901760
    %v2917 = vsub.f32 %v60, %v2916
    %v2918 = vand.u32 %v2917, 4294901760
    %v2919 = vsub.f32 %v2917, %v2918
    %v2920 = vand.u32 %v2919, 4294901760
    %2921 = vmatpush1.msra.mxu0 %v2920
    %2922 = vmatprep.subr.mxu0 0.0
    %v2923 = vand.u32 %v61, 4294901760
    %v2924 = vsub.f32 %v61, %v2923
    %v2925 = vand.u32 %v2924, 4294901760
    %v2926 = vsub.f32 %v2924, %v2925
    %v2927 = vand.u32 %v2926, 4294901760
    %2928 = vmatpush1.msra.mxu0 %v2927
    %2929 = vmatprep.subr.mxu0 0.0
    %v2930 = vand.u32 %v62, 4294901760
    %v2931 = vsub.f32 %v62, %v2930
    %v2932 = vand.u32 %v2931, 4294901760
    %v2933 = vsub.f32 %v2931, %v2932
    %v2934 = vand.u32 %v2933, 4294901760
    %2935 = vmatpush1.msra.mxu0 %v2934
    %2936 = vmatprep.subr.mxu0 0.0
    %v2937 = vand.u32 %v63, 4294901760
    %v2938 = vsub.f32 %v63, %v2937
    %v2939 = vand.u32 %v2938, 4294901760
    %v2940 = vsub.f32 %v2938, %v2939
    %v2941 = vand.u32 %v2940, 4294901760
    %2942 = vmatpush1.msra.mxu0 %v2941
    %2943 = vmatprep.subr.mxu0 0.0
    %v2944 = vand.u32 %v64, 4294901760
    %v2945 = vsub.f32 %v64, %v2944
    %v2946 = vand.u32 %v2945, 4294901760
    %v2947 = vsub.f32 %v2945, %v2946
    %v2948 = vand.u32 %v2947, 4294901760
    %2949 = vmatpush1.msra.mxu0 %v2948
    %2950 = vmatprep.subr.mxu0 0.0
    %v2951 = vand.u32 %v65, 4294901760
    %v2952 = vsub.f32 %v65, %v2951
    %v2953 = vand.u32 %v2952, 4294901760
    %v2954 = vsub.f32 %v2952, %v2953
    %v2955 = vand.u32 %v2954, 4294901760
    %2956 = vmatpush1.msra.mxu0 %v2955
    %2957 = vmatprep.subr.mxu0 0.0
    %v2958 = vand.u32 %v66, 4294901760
    %v2959 = vsub.f32 %v66, %v2958
    %v2960 = vand.u32 %v2959, 4294901760
    %v2961 = vsub.f32 %v2959, %v2960
    %v2962 = vand.u32 %v2961, 4294901760
    %2963 = vmatpush1.msra.mxu0 %v2962
    %2964 = vmatprep.subr.mxu0 0.0
    %v2965 = vand.u32 %v67, 4294901760
    %v2966 = vsub.f32 %v67, %v2965
    %v2967 = vand.u32 %v2966, 4294901760
    %v2968 = vsub.f32 %v2966, %v2967
    %v2969 = vand.u32 %v2968, 4294901760
    %2970 = vmatpush1.msra.mxu0 %v2969
    %2971 = vmatprep.subr.mxu0 0.0
    %v2972 = vand.u32 %v68, 4294901760
    %v2973 = vsub.f32 %v68, %v2972
    %v2974 = vand.u32 %v2973, 4294901760
    %v2975 = vsub.f32 %v2973, %v2974
    %v2976 = vand.u32 %v2975, 4294901760
    %2977 = vmatpush1.msra.mxu0 %v2976
    %2978 = vmatprep.subr.mxu0 0.0
    %v2979 = vand.u32 %v69, 4294901760
    %v2980 = vsub.f32 %v69, %v2979
    %v2981 = vand.u32 %v2980, 4294901760
    %v2982 = vsub.f32 %v2980, %v2981
    %v2983 = vand.u32 %v2982, 4294901760
    %2984 = vmatpush1.msra.mxu0 %v2983
    %2985 = vmatprep.subr.mxu0 0.0
    %v2986 = vand.u32 %v70, 4294901760
    %v2987 = vsub.f32 %v70, %v2986
    %v2988 = vand.u32 %v2987, 4294901760
    %v2989 = vsub.f32 %v2987, %v2988
    %v2990 = vand.u32 %v2989, 4294901760
    %2991 = vmatpush1.msra.mxu0 %v2990
    %2992 = vmatprep.subr.mxu0 0.0
    %v2993 = vand.u32 %v71, 4294901760
    %v2994 = vsub.f32 %v71, %v2993
    %v2995 = vand.u32 %v2994, 4294901760
    %v2996 = vsub.f32 %v2994, %v2995
    %v2997 = vand.u32 %v2996, 4294901760
    %2998 = vmatpush1.msra.mxu0 %v2997
    %2999 = vmatprep.subr.mxu0 0.0
    %v3000 = vand.u32 %v72, 4294901760
    %v3001 = vsub.f32 %v72, %v3000
    %v3002 = vand.u32 %v3001, 4294901760
    %v3003 = vsub.f32 %v3001, %v3002
    %v3004 = vand.u32 %v3003, 4294901760
    %3005 = vmatpush1.msra.mxu0 %v3004
    %3006 = vmatprep.subr.mxu0 0.0
    %v3007 = vand.u32 %v73, 4294901760
    %v3008 = vsub.f32 %v73, %v3007
    %v3009 = vand.u32 %v3008, 4294901760
    %v3010 = vsub.f32 %v3008, %v3009
    %v3011 = vand.u32 %v3010, 4294901760
    %3012 = vmatpush1.msra.mxu0 %v3011
    %3013 = vmatprep.subr.mxu0 0.0
    %v3014 = vand.u32 %v74, 4294901760
    %v3015 = vsub.f32 %v74, %v3014
    %v3016 = vand.u32 %v3015, 4294901760
    %v3017 = vsub.f32 %v3015, %v3016
    %v3018 = vand.u32 %v3017, 4294901760
    %3019 = vmatpush1.msra.mxu0 %v3018
    %3020 = vmatprep.subr.mxu0 0.0
    %v3021 = vand.u32 %v75, 4294901760
    %v3022 = vsub.f32 %v75, %v3021
    %v3023 = vand.u32 %v3022, 4294901760
    %v3024 = vsub.f32 %v3022, %v3023
    %v3025 = vand.u32 %v3024, 4294901760
    %3026 = vmatpush1.msra.mxu0 %v3025
    %3027 = vmatprep.subr.mxu0 0.0
    %v3028 = vand.u32 %v76, 4294901760
    %v3029 = vsub.f32 %v76, %v3028
    %v3030 = vand.u32 %v3029, 4294901760
    %v3031 = vsub.f32 %v3029, %v3030
    %v3032 = vand.u32 %v3031, 4294901760
    %3033 = vmatpush1.msra.mxu0 %v3032
    %3034 = vmatprep.subr.mxu0 0.0
    %v3035 = vand.u32 %v77, 4294901760
    %v3036 = vsub.f32 %v77, %v3035
    %v3037 = vand.u32 %v3036, 4294901760
    %v3038 = vsub.f32 %v3036, %v3037
    %v3039 = vand.u32 %v3038, 4294901760
    %3040 = vmatpush1.msra.mxu0 %v3039
    %3041 = vmatprep.subr.mxu0 0.0
    %v3042 = vand.u32 %v78, 4294901760
    %v3043 = vsub.f32 %v78, %v3042
    %v3044 = vand.u32 %v3043, 4294901760
    %v3045 = vsub.f32 %v3043, %v3044
    %v3046 = vand.u32 %v3045, 4294901760
    %3047 = vmatpush1.msra.mxu0 %v3046
    %3048 = vmatprep.subr.mxu0 0.0
    %v3049 = vand.u32 %v79, 4294901760
    %v3050 = vsub.f32 %v79, %v3049
    %v3051 = vand.u32 %v3050, 4294901760
    %v3052 = vsub.f32 %v3050, %v3051
    %v3053 = vand.u32 %v3052, 4294901760
    %3054 = vmatpush1.msra.mxu0 %v3053
    %v3055 = vand.u32 %v1856, 4294901760
    %3056 = vmatprep.mubr.f32.mxu0 %v3055
    %v3057 = vand.u32 %v1855, 4294901760
    %3058 = vmatmul.mubr.f32.gmra.mrb[0].mxu0 %v3057
    %v3059 = vpop.f32.mrb[0].mxu0
    %v3060 = vadd.f32 %v2828, %v3059
    %v3061 = vpop.f32.mrb[0].mxu0
    %3062 = vdwg.mxu0
    %3063 = vmatprep.subr.mxu0 0.0
    %v3064 = vand.u32 %v48, 4294901760
    %v3065 = vsub.f32 %v48, %v3064
    %3066 = vmatpush1.msra.mxu0 %v3065
    %3067 = vmatprep.subr.mxu0 0.0
    %v3068 = vand.u32 %v49, 4294901760
    %v3069 = vsub.f32 %v49, %v3068
    %3070 = vmatpush1.msra.mxu0 %v3069
    %3071 = vmatprep.subr.mxu0 0.0
    %v3072 = vand.u32 %v50, 4294901760
    %v3073 = vsub.f32 %v50, %v3072
    %3074 = vmatpush1.msra.mxu0 %v3073
    %3075 = vmatprep.subr.mxu0 0.0
    %v3076 = vand.u32 %v51, 4294901760
    %v3077 = vsub.f32 %v51, %v3076
    %3078 = vmatpush1.msra.mxu0 %v3077
    %3079 = vmatprep.subr.mxu0 0.0
    %v3080 = vand.u32 %v52, 4294901760
    %v3081 = vsub.f32 %v52, %v3080
    %3082 = vmatpush1.msra.mxu0 %v3081
    %3083 = vmatprep.subr.mxu0 0.0
    %v3084 = vand.u32 %v53, 4294901760
    %v3085 = vsub.f32 %v53, %v3084
    %3086 = vmatpush1.msra.mxu0 %v3085
    %3087 = vmatprep.subr.mxu0 0.0
    %v3088 = vand.u32 %v54, 4294901760
    %v3089 = vsub.f32 %v54, %v3088
    %3090 = vmatpush1.msra.mxu0 %v3089
    %3091 = vmatprep.subr.mxu0 0.0
    %v3092 = vand.u32 %v55, 4294901760
    %v3093 = vsub.f32 %v55, %v3092
    %3094 = vmatpush1.msra.mxu0 %v3093
    %3095 = vmatprep.subr.mxu0 0.0
    %v3096 = vand.u32 %v56, 4294901760
    %v3097 = vsub.f32 %v56, %v3096
    %3098 = vmatpush1.msra.mxu0 %v3097
    %3099 = vmatprep.subr.mxu0 0.0
    %v3100 = vand.u32 %v57, 4294901760
    %v3101 = vsub.f32 %v57, %v3100
    %3102 = vmatpush1.msra.mxu0 %v3101
    %3103 = vmatprep.subr.mxu0 0.0
    %v3104 = vand.u32 %v58, 4294901760
    %v3105 = vsub.f32 %v58, %v3104
    %3106 = vmatpush1.msra.mxu0 %v3105
    %3107 = vmatprep.subr.mxu0 0.0
    %v3108 = vand.u32 %v59, 4294901760
    %v3109 = vsub.f32 %v59, %v3108
    %3110 = vmatpush1.msra.mxu0 %v3109
    %3111 = vmatprep.subr.mxu0 0.0
    %v3112 = vand.u32 %v60, 4294901760
    %v3113 = vsub.f32 %v60, %v3112
    %3114 = vmatpush1.msra.mxu0 %v3113
    %3115 = vmatprep.subr.mxu0 0.0
    %v3116 = vand.u32 %v61, 4294901760
    %v3117 = vsub.f32 %v61, %v3116
    %3118 = vmatpush1.msra.mxu0 %v3117
    %3119 = vmatprep.subr.mxu0 0.0
    %v3120 = vand.u32 %v62, 4294901760
    %v3121 = vsub.f32 %v62, %v3120
    %3122 = vmatpush1.msra.mxu0 %v3121
    %3123 = vmatprep.subr.mxu0 0.0
    %v3124 = vand.u32 %v63, 4294901760
    %v3125 = vsub.f32 %v63, %v3124
    %3126 = vmatpush1.msra.mxu0 %v3125
    %3127 = vmatprep.subr.mxu0 0.0
    %v3128 = vand.u32 %v64, 4294901760
    %v3129 = vsub.f32 %v64, %v3128
    %3130 = vmatpush1.msra.mxu0 %v3129
    %3131 = vmatprep.subr.mxu0 0.0
    %v3132 = vand.u32 %v65, 4294901760
    %v3133 = vsub.f32 %v65, %v3132
    %3134 = vmatpush1.msra.mxu0 %v3133
    %3135 = vmatprep.subr.mxu0 0.0
    %v3136 = vand.u32 %v66, 4294901760
    %v3137 = vsub.f32 %v66, %v3136
    %3138 = vmatpush1.msra.mxu0 %v3137
    %3139 = vmatprep.subr.mxu0 0.0
    %v3140 = vand.u32 %v67, 4294901760
    %v3141 = vsub.f32 %v67, %v3140
    %3142 = vmatpush1.msra.mxu0 %v3141
    %3143 = vmatprep.subr.mxu0 0.0
    %v3144 = vand.u32 %v68, 4294901760
    %v3145 = vsub.f32 %v68, %v3144
    %3146 = vmatpush1.msra.mxu0 %v3145
    %3147 = vmatprep.subr.mxu0 0.0
    %v3148 = vand.u32 %v69, 4294901760
    %v3149 = vsub.f32 %v69, %v3148
    %3150 = vmatpush1.msra.mxu0 %v3149
    %3151 = vmatprep.subr.mxu0 0.0
    %v3152 = vand.u32 %v70, 4294901760
    %v3153 = vsub.f32 %v70, %v3152
    %3154 = vmatpush1.msra.mxu0 %v3153
    %3155 = vmatprep.subr.mxu0 0.0
    %v3156 = vand.u32 %v71, 4294901760
    %v3157 = vsub.f32 %v71, %v3156
    %3158 = vmatpush1.msra.mxu0 %v3157
    %3159 = vmatprep.subr.mxu0 0.0
    %v3160 = vand.u32 %v72, 4294901760
    %v3161 = vsub.f32 %v72, %v3160
    %3162 = vmatpush1.msra.mxu0 %v3161
    %3163 = vmatprep.subr.mxu0 0.0
    %v3164 = vand.u32 %v73, 4294901760
    %v3165 = vsub.f32 %v73, %v3164
    %3166 = vmatpush1.msra.mxu0 %v3165
    %3167 = vmatprep.subr.mxu0 0.0
    %v3168 = vand.u32 %v74, 4294901760
    %v3169 = vsub.f32 %v74, %v3168
    %3170 = vmatpush1.msra.mxu0 %v3169
    %3171 = vmatprep.subr.mxu0 0.0
    %v3172 = vand.u32 %v75, 4294901760
    %v3173 = vsub.f32 %v75, %v3172
    %3174 = vmatpush1.msra.mxu0 %v3173
    %3175 = vmatprep.subr.mxu0 0.0
    %v3176 = vand.u32 %v76, 4294901760
    %v3177 = vsub.f32 %v76, %v3176
    %3178 = vmatpush1.msra.mxu0 %v3177
    %3179 = vmatprep.subr.mxu0 0.0
    %v3180 = vand.u32 %v77, 4294901760
    %v3181 = vsub.f32 %v77, %v3180
    %3182 = vmatpush1.msra.mxu0 %v3181
    %3183 = vmatprep.subr.mxu0 0.0
    %v3184 = vand.u32 %v78, 4294901760
    %v3185 = vsub.f32 %v78, %v3184
    %3186 = vmatpush1.msra.mxu0 %v3185
    %3187 = vmatprep.subr.mxu0 0.0
    %v3188 = vand.u32 %v79, 4294901760
    %v3189 = vsub.f32 %v79, %v3188
    %3190 = vmatpush1.msra.mxu0 %v3189
    %v3191 = vand.u32 %v1856, 4294901760
    %v3192 = vsub.f32 %v1856, %v3191
    %3193 = vmatprep.mubr.f32.mxu0 %v3192
    %v3194 = vand.u32 %v1855, 4294901760
    %v3195 = vsub.f32 %v1855, %v3194
    %3196 = vmatmul.mubr.f32.gmra.mrb[0].mxu0 %v3195
    %v3197 = vpop.f32.mrb[0].mxu0
    %v3198 = vadd.f32 %v3060, %v3197
    %v3199 = vpop.f32.mrb[0].mxu0
    %3200 = vdwg.mxu0
    %3201 = vmatprep.subr.mxu0 0.0
    %v3202 = vand.u32 %v48, 4294901760
    %3203 = vmatpush1.msra.mxu0 %v3202
    %3204 = vmatprep.subr.mxu0 0.0
    %v3205 = vand.u32 %v49, 4294901760
    %3206 = vmatpush1.msra.mxu0 %v3205
    %3207 = vmatprep.subr.mxu0 0.0
    %v3208 = vand.u32 %v50, 4294901760
    %3209 = vmatpush1.msra.mxu0 %v3208
    %3210 = vmatprep.subr.mxu0 0.0
    %v3211 = vand.u32 %v51, 4294901760
    %3212 = vmatpush1.msra.mxu0 %v3211
    %3213 = vmatprep.subr.mxu0 0.0
    %v3214 = vand.u32 %v52, 4294901760
    %3215 = vmatpush1.msra.mxu0 %v3214
    %3216 = vmatprep.subr.mxu0 0.0
    %v3217 = vand.u32 %v53, 4294901760
    %3218 = vmatpush1.msra.mxu0 %v3217
    %3219 = vmatprep.subr.mxu0 0.0
    %v3220 = vand.u32 %v54, 4294901760
    %3221 = vmatpush1.msra.mxu0 %v3220
    %3222 = vmatprep.subr.mxu0 0.0
    %v3223 = vand.u32 %v55, 4294901760
    %3224 = vmatpush1.msra.mxu0 %v3223
    %3225 = vmatprep.subr.mxu0 0.0
    %v3226 = vand.u32 %v56, 4294901760
    %3227 = vmatpush1.msra.mxu0 %v3226
    %3228 = vmatprep.subr.mxu0 0.0
    %v3229 = vand.u32 %v57, 4294901760
    %3230 = vmatpush1.msra.mxu0 %v3229
    %3231 = vmatprep.subr.mxu0 0.0
    %v3232 = vand.u32 %v58, 4294901760
    %3233 = vmatpush1.msra.mxu0 %v3232
    %3234 = vmatprep.subr.mxu0 0.0
    %v3235 = vand.u32 %v59, 4294901760
    %3236 = vmatpush1.msra.mxu0 %v3235
    %3237 = vmatprep.subr.mxu0 0.0
    %v3238 = vand.u32 %v60, 4294901760
    %3239 = vmatpush1.msra.mxu0 %v3238
    %3240 = vmatprep.subr.mxu0 0.0
    %v3241 = vand.u32 %v61, 4294901760
    %3242 = vmatpush1.msra.mxu0 %v3241
    %3243 = vmatprep.subr.mxu0 0.0
    %v3244 = vand.u32 %v62, 4294901760
    %3245 = vmatpush1.msra.mxu0 %v3244
    %3246 = vmatprep.subr.mxu0 0.0
    %v3247 = vand.u32 %v63, 4294901760
    %3248 = vmatpush1.msra.mxu0 %v3247
    %3249 = vmatprep.subr.mxu0 0.0
    %v3250 = vand.u32 %v64, 4294901760
    %3251 = vmatpush1.msra.mxu0 %v3250
    %3252 = vmatprep.subr.mxu0 0.0
    %v3253 = vand.u32 %v65, 4294901760
    %3254 = vmatpush1.msra.mxu0 %v3253
    %3255 = vmatprep.subr.mxu0 0.0
    %v3256 = vand.u32 %v66, 4294901760
    %3257 = vmatpush1.msra.mxu0 %v3256
    %3258 = vmatprep.subr.mxu0 0.0
    %v3259 = vand.u32 %v67, 4294901760
    %3260 = vmatpush1.msra.mxu0 %v3259
    %3261 = vmatprep.subr.mxu0 0.0
    %v3262 = vand.u32 %v68, 4294901760
    %3263 = vmatpush1.msra.mxu0 %v3262
    %3264 = vmatprep.subr.mxu0 0.0
    %v3265 = vand.u32 %v69, 4294901760
    %3266 = vmatpush1.msra.mxu0 %v3265
    %3267 = vmatprep.subr.mxu0 0.0
    %v3268 = vand.u32 %v70, 4294901760
    %3269 = vmatpush1.msra.mxu0 %v3268
    %3270 = vmatprep.subr.mxu0 0.0
    %v3271 = vand.u32 %v71, 4294901760
    %3272 = vmatpush1.msra.mxu0 %v3271
    %3273 = vmatprep.subr.mxu0 0.0
    %v3274 = vand.u32 %v72, 4294901760
    %3275 = vmatpush1.msra.mxu0 %v3274
    %3276 = vmatprep.subr.mxu0 0.0
    %v3277 = vand.u32 %v73, 4294901760
    %3278 = vmatpush1.msra.mxu0 %v3277
    %3279 = vmatprep.subr.mxu0 0.0
    %v3280 = vand.u32 %v74, 4294901760
    %3281 = vmatpush1.msra.mxu0 %v3280
    %3282 = vmatprep.subr.mxu0 0.0
    %v3283 = vand.u32 %v75, 4294901760
    %3284 = vmatpush1.msra.mxu0 %v3283
    %3285 = vmatprep.subr.mxu0 0.0
    %v3286 = vand.u32 %v76, 4294901760
    %3287 = vmatpush1.msra.mxu0 %v3286
    %3288 = vmatprep.subr.mxu0 0.0
    %v3289 = vand.u32 %v77, 4294901760
    %3290 = vmatpush1.msra.mxu0 %v3289
    %3291 = vmatprep.subr.mxu0 0.0
    %v3292 = vand.u32 %v78, 4294901760
    %3293 = vmatpush1.msra.mxu0 %v3292
    %3294 = vmatprep.subr.mxu0 0.0
    %v3295 = vand.u32 %v79, 4294901760
    %3296 = vmatpush1.msra.mxu0 %v3295
    %v3297 = vand.u32 %v1856, 4294901760
    %v3298 = vsub.f32 %v1856, %v3297
    %v3299 = vand.u32 %v3298, 4294901760
    %3300 = vmatprep.mubr.f32.mxu0 %v3299
    %v3301 = vand.u32 %v1855, 4294901760
    %v3302 = vsub.f32 %v1855, %v3301
    %v3303 = vand.u32 %v3302, 4294901760
    %3304 = vmatmul.mubr.f32.gmra.mrb[0].mxu0 %v3303
    %v3305 = vpop.f32.mrb[0].mxu0
    %v3306 = vadd.f32 %v3198, %v3305
    %v3307 = vpop.f32.mrb[0].mxu0
    %3308 = vdwg.mxu0
    %3309 = vmatprep.subr.mxu0 0.0
    %v3310 = vand.u32 %v48, 4294901760
    %v3311 = vsub.f32 %v48, %v3310
    %v3312 = vand.u32 %v3311, 4294901760
    %3313 = vmatpush1.msra.mxu0 %v3312
    %3314 = vmatprep.subr.mxu0 0.0
    %v3315 = vand.u32 %v49, 4294901760
    %v3316 = vsub.f32 %v49, %v3315
    %v3317 = vand.u32 %v3316, 4294901760
    %3318 = vmatpush1.msra.mxu0 %v3317
    %3319 = vmatprep.subr.mxu0 0.0
    %v3320 = vand.u32 %v50, 4294901760
    %v3321 = vsub.f32 %v50, %v3320
    %v3322 = vand.u32 %v3321, 4294901760
    %3323 = vmatpush1.msra.mxu0 %v3322
    %3324 = vmatprep.subr.mxu0 0.0
    %v3325 = vand.u32 %v51, 4294901760
    %v3326 = vsub.f32 %v51, %v3325
    %v3327 = vand.u32 %v3326, 4294901760
    %3328 = vmatpush1.msra.mxu0 %v3327
    %3329 = vmatprep.subr.mxu0 0.0
    %v3330 = vand.u32 %v52, 4294901760
    %v3331 = vsub.f32 %v52, %v3330
    %v3332 = vand.u32 %v3331, 4294901760
    %3333 = vmatpush1.msra.mxu0 %v3332
    %3334 = vmatprep.subr.mxu0 0.0
    %v3335 = vand.u32 %v53, 4294901760
    %v3336 = vsub.f32 %v53, %v3335
    %v3337 = vand.u32 %v3336, 4294901760
    %3338 = vmatpush1.msra.mxu0 %v3337
    %3339 = vmatprep.subr.mxu0 0.0
    %v3340 = vand.u32 %v54, 4294901760
    %v3341 = vsub.f32 %v54, %v3340
    %v3342 = vand.u32 %v3341, 4294901760
    %3343 = vmatpush1.msra.mxu0 %v3342
    %3344 = vmatprep.subr.mxu0 0.0
    %v3345 = vand.u32 %v55, 4294901760
    %v3346 = vsub.f32 %v55, %v3345
    %v3347 = vand.u32 %v3346, 4294901760
    %3348 = vmatpush1.msra.mxu0 %v3347
    %3349 = vmatprep.subr.mxu0 0.0
    %v3350 = vand.u32 %v56, 4294901760
    %v3351 = vsub.f32 %v56, %v3350
    %v3352 = vand.u32 %v3351, 4294901760
    %3353 = vmatpush1.msra.mxu0 %v3352
    %3354 = vmatprep.subr.mxu0 0.0
    %v3355 = vand.u32 %v57, 4294901760
    %v3356 = vsub.f32 %v57, %v3355
    %v3357 = vand.u32 %v3356, 4294901760
    %3358 = vmatpush1.msra.mxu0 %v3357
    %3359 = vmatprep.subr.mxu0 0.0
    %v3360 = vand.u32 %v58, 4294901760
    %v3361 = vsub.f32 %v58, %v3360
    %v3362 = vand.u32 %v3361, 4294901760
    %3363 = vmatpush1.msra.mxu0 %v3362
    %3364 = vmatprep.subr.mxu0 0.0
    %v3365 = vand.u32 %v59, 4294901760
    %v3366 = vsub.f32 %v59, %v3365
    %v3367 = vand.u32 %v3366, 4294901760
    %3368 = vmatpush1.msra.mxu0 %v3367
    %3369 = vmatprep.subr.mxu0 0.0
    %v3370 = vand.u32 %v60, 4294901760
    %v3371 = vsub.f32 %v60, %v3370
    %v3372 = vand.u32 %v3371, 4294901760
    %3373 = vmatpush1.msra.mxu0 %v3372
    %3374 = vmatprep.subr.mxu0 0.0
    %v3375 = vand.u32 %v61, 4294901760
    %v3376 = vsub.f32 %v61, %v3375
    %v3377 = vand.u32 %v3376, 4294901760
    %3378 = vmatpush1.msra.mxu0 %v3377
    %3379 = vmatprep.subr.mxu0 0.0
    %v3380 = vand.u32 %v62, 4294901760
    %v3381 = vsub.f32 %v62, %v3380
    %v3382 = vand.u32 %v3381, 4294901760
    %3383 = vmatpush1.msra.mxu0 %v3382
    %3384 = vmatprep.subr.mxu0 0.0
    %v3385 = vand.u32 %v63, 4294901760
    %v3386 = vsub.f32 %v63, %v3385
    %v3387 = vand.u32 %v3386, 4294901760
    %3388 = vmatpush1.msra.mxu0 %v3387
    %3389 = vmatprep.subr.mxu0 0.0
    %v3390 = vand.u32 %v64, 4294901760
    %v3391 = vsub.f32 %v64, %v3390
    %v3392 = vand.u32 %v3391, 4294901760
    %3393 = vmatpush1.msra.mxu0 %v3392
    %3394 = vmatprep.subr.mxu0 0.0
    %v3395 = vand.u32 %v65, 4294901760
    %v3396 = vsub.f32 %v65, %v3395
    %v3397 = vand.u32 %v3396, 4294901760
    %3398 = vmatpush1.msra.mxu0 %v3397
    %3399 = vmatprep.subr.mxu0 0.0
    %v3400 = vand.u32 %v66, 4294901760
    %v3401 = vsub.f32 %v66, %v3400
    %v3402 = vand.u32 %v3401, 4294901760
    %3403 = vmatpush1.msra.mxu0 %v3402
    %3404 = vmatprep.subr.mxu0 0.0
    %v3405 = vand.u32 %v67, 4294901760
    %v3406 = vsub.f32 %v67, %v3405
    %v3407 = vand.u32 %v3406, 4294901760
    %3408 = vmatpush1.msra.mxu0 %v3407
    %3409 = vmatprep.subr.mxu0 0.0
    %v3410 = vand.u32 %v68, 4294901760
    %v3411 = vsub.f32 %v68, %v3410
    %v3412 = vand.u32 %v3411, 4294901760
    %3413 = vmatpush1.msra.mxu0 %v3412
    %3414 = vmatprep.subr.mxu0 0.0
    %v3415 = vand.u32 %v69, 4294901760
    %v3416 = vsub.f32 %v69, %v3415
    %v3417 = vand.u32 %v3416, 4294901760
    %3418 = vmatpush1.msra.mxu0 %v3417
    %3419 = vmatprep.subr.mxu0 0.0
    %v3420 = vand.u32 %v70, 4294901760
    %v3421 = vsub.f32 %v70, %v3420
    %v3422 = vand.u32 %v3421, 4294901760
    %3423 = vmatpush1.msra.mxu0 %v3422
    %3424 = vmatprep.subr.mxu0 0.0
    %v3425 = vand.u32 %v71, 4294901760
    %v3426 = vsub.f32 %v71, %v3425
    %v3427 = vand.u32 %v3426, 4294901760
    %3428 = vmatpush1.msra.mxu0 %v3427
    %3429 = vmatprep.subr.mxu0 0.0
    %v3430 = vand.u32 %v72, 4294901760
    %v3431 = vsub.f32 %v72, %v3430
    %v3432 = vand.u32 %v3431, 4294901760
    %3433 = vmatpush1.msra.mxu0 %v3432
    %3434 = vmatprep.subr.mxu0 0.0
    %v3435 = vand.u32 %v73, 4294901760
    %v3436 = vsub.f32 %v73, %v3435
    %v3437 = vand.u32 %v3436, 4294901760
    %3438 = vmatpush1.msra.mxu0 %v3437
    %3439 = vmatprep.subr.mxu0 0.0
    %v3440 = vand.u32 %v74, 4294901760
    %v3441 = vsub.f32 %v74, %v3440
    %v3442 = vand.u32 %v3441, 4294901760
    %3443 = vmatpush1.msra.mxu0 %v3442
    %3444 = vmatprep.subr.mxu0 0.0
    %v3445 = vand.u32 %v75, 4294901760
    %v3446 = vsub.f32 %v75, %v3445
    %v3447 = vand.u32 %v3446, 4294901760
    %3448 = vmatpush1.msra.mxu0 %v3447
    %3449 = vmatprep.subr.mxu0 0.0
    %v3450 = vand.u32 %v76, 4294901760
    %v3451 = vsub.f32 %v76, %v3450
    %v3452 = vand.u32 %v3451, 4294901760
    %3453 = vmatpush1.msra.mxu0 %v3452
    %3454 = vmatprep.subr.mxu0 0.0
    %v3455 = vand.u32 %v77, 4294901760
    %v3456 = vsub.f32 %v77, %v3455
    %v3457 = vand.u32 %v3456, 4294901760
    %3458 = vmatpush1.msra.mxu0 %v3457
    %3459 = vmatprep.subr.mxu0 0.0
    %v3460 = vand.u32 %v78, 4294901760
    %v3461 = vsub.f32 %v78, %v3460
    %v3462 = vand.u32 %v3461, 4294901760
    %3463 = vmatpush1.msra.mxu0 %v3462
    %3464 = vmatprep.subr.mxu0 0.0
    %v3465 = vand.u32 %v79, 4294901760
    %v3466 = vsub.f32 %v79, %v3465
    %v3467 = vand.u32 %v3466, 4294901760
    %3468 = vmatpush1.msra.mxu0 %v3467
    %v3469 = vand.u32 %v1856, 4294901760
    %3470 = vmatprep.mubr.f32.mxu0 %v3469
    %v3471 = vand.u32 %v1855, 4294901760
    %3472 = vmatmul.mubr.f32.gmra.mrb[0].mxu0 %v3471
    %v3473 = vpop.f32.mrb[0].mxu0
    %v3474 = vadd.f32 %v3306, %v3473
    %v3475 = vpop.f32.mrb[0].mxu0
    %3476 = vdwg.mxu0
    %3477 = vmatprep.subr.mxu0 0.0
    %v3478 = vand.u32 %v48, 4294901760
    %3479 = vmatpush1.msra.mxu0 %v3478
    %3480 = vmatprep.subr.mxu0 0.0
    %v3481 = vand.u32 %v49, 4294901760
    %3482 = vmatpush1.msra.mxu0 %v3481
    %3483 = vmatprep.subr.mxu0 0.0
    %v3484 = vand.u32 %v50, 4294901760
    %3485 = vmatpush1.msra.mxu0 %v3484
    %3486 = vmatprep.subr.mxu0 0.0
    %v3487 = vand.u32 %v51, 4294901760
    %3488 = vmatpush1.msra.mxu0 %v3487
    %3489 = vmatprep.subr.mxu0 0.0
    %v3490 = vand.u32 %v52, 4294901760
    %3491 = vmatpush1.msra.mxu0 %v3490
    %3492 = vmatprep.subr.mxu0 0.0
    %v3493 = vand.u32 %v53, 4294901760
    %3494 = vmatpush1.msra.mxu0 %v3493
    %3495 = vmatprep.subr.mxu0 0.0
    %v3496 = vand.u32 %v54, 4294901760
    %3497 = vmatpush1.msra.mxu0 %v3496
    %3498 = vmatprep.subr.mxu0 0.0
    %v3499 = vand.u32 %v55, 4294901760
    %3500 = vmatpush1.msra.mxu0 %v3499
    %3501 = vmatprep.subr.mxu0 0.0
    %v3502 = vand.u32 %v56, 4294901760
    %3503 = vmatpush1.msra.mxu0 %v3502
    %3504 = vmatprep.subr.mxu0 0.0
    %v3505 = vand.u32 %v57, 4294901760
    %3506 = vmatpush1.msra.mxu0 %v3505
    %3507 = vmatprep.subr.mxu0 0.0
    %v3508 = vand.u32 %v58, 4294901760
    %3509 = vmatpush1.msra.mxu0 %v3508
    %3510 = vmatprep.subr.mxu0 0.0
    %v3511 = vand.u32 %v59, 4294901760
    %3512 = vmatpush1.msra.mxu0 %v3511
    %3513 = vmatprep.subr.mxu0 0.0
    %v3514 = vand.u32 %v60, 4294901760
    %3515 = vmatpush1.msra.mxu0 %v3514
    %3516 = vmatprep.subr.mxu0 0.0
    %v3517 = vand.u32 %v61, 4294901760
    %3518 = vmatpush1.msra.mxu0 %v3517
    %3519 = vmatprep.subr.mxu0 0.0
    %v3520 = vand.u32 %v62, 4294901760
    %3521 = vmatpush1.msra.mxu0 %v3520
    %3522 = vmatprep.subr.mxu0 0.0
    %v3523 = vand.u32 %v63, 4294901760
    %3524 = vmatpush1.msra.mxu0 %v3523
    %3525 = vmatprep.subr.mxu0 0.0
    %v3526 = vand.u32 %v64, 4294901760
    %3527 = vmatpush1.msra.mxu0 %v3526
    %3528 = vmatprep.subr.mxu0 0.0
    %v3529 = vand.u32 %v65, 4294901760
    %3530 = vmatpush1.msra.mxu0 %v3529
    %3531 = vmatprep.subr.mxu0 0.0
    %v3532 = vand.u32 %v66, 4294901760
    %3533 = vmatpush1.msra.mxu0 %v3532
    %3534 = vmatprep.subr.mxu0 0.0
    %v3535 = vand.u32 %v67, 4294901760
    %3536 = vmatpush1.msra.mxu0 %v3535
    %3537 = vmatprep.subr.mxu0 0.0
    %v3538 = vand.u32 %v68, 4294901760
    %3539 = vmatpush1.msra.mxu0 %v3538
    %3540 = vmatprep.subr.mxu0 0.0
    %v3541 = vand.u32 %v69, 4294901760
    %3542 = vmatpush1.msra.mxu0 %v3541
    %3543 = vmatprep.subr.mxu0 0.0
    %v3544 = vand.u32 %v70, 4294901760
    %3545 = vmatpush1.msra.mxu0 %v3544
    %3546 = vmatprep.subr.mxu0 0.0
    %v3547 = vand.u32 %v71, 4294901760
    %3548 = vmatpush1.msra.mxu0 %v3547
    %3549 = vmatprep.subr.mxu0 0.0
    %v3550 = vand.u32 %v72, 4294901760
    %3551 = vmatpush1.msra.mxu0 %v3550
    %3552 = vmatprep.subr.mxu0 0.0
    %v3553 = vand.u32 %v73, 4294901760
    %3554 = vmatpush1.msra.mxu0 %v3553
    %3555 = vmatprep.subr.mxu0 0.0
    %v3556 = vand.u32 %v74, 4294901760
    %3557 = vmatpush1.msra.mxu0 %v3556
    %3558 = vmatprep.subr.mxu0 0.0
    %v3559 = vand.u32 %v75, 4294901760
    %3560 = vmatpush1.msra.mxu0 %v3559
    %3561 = vmatprep.subr.mxu0 0.0
    %v3562 = vand.u32 %v76, 4294901760
    %3563 = vmatpush1.msra.mxu0 %v3562
    %3564 = vmatprep.subr.mxu0 0.0
    %v3565 = vand.u32 %v77, 4294901760
    %3566 = vmatpush1.msra.mxu0 %v3565
    %3567 = vmatprep.subr.mxu0 0.0
    %v3568 = vand.u32 %v78, 4294901760
    %3569 = vmatpush1.msra.mxu0 %v3568
    %3570 = vmatprep.subr.mxu0 0.0
    %v3571 = vand.u32 %v79, 4294901760
    %3572 = vmatpush1.msra.mxu0 %v3571
    %v3573 = vand.u32 %v1856, 4294901760
    %3574 = vmatprep.mubr.f32.mxu0 %v3573
    %v3575 = vand.u32 %v1855, 4294901760
    %3576 = vmatmul.mubr.f32.gmra.mrb[0].mxu0 %v3575
    %v3577 = vpop.f32.mrb[0].mxu0
    %v3578 = vadd.f32 %v3474, %v3577
    %v3579 = vpop.f32.mrb[0].mxu0
    %3580 = vdwg.mxu0
    %v3581 = vmul.f32 %v3578, 1.442695
    %v3582 = vpow.pop %v3581
    %v3583 = vadd.f32 %v1831, %v3582
    %vm3584 = vcmask 523264
    %3585 = vst.msk [vmem:[#allocation2] sm:$0xff] %vm3584, %v3583
    // Predicated region
    $region14: #{tpu_custom_call.1} parent=1 // pred_check
      _
    $region15: #{tpu_custom_call.1} parent=1 // pred_check_branch
      %3587 = sbr.rel (0) target = $region17
    $region16: #{tpu_custom_call.1} parent=1 // pred_region
      %s3589 = ssub.s32 128, 128
      %3590 = vsyncadd [#allocation3], %s3589
      %s3592 = sshll.u32 [#allocation2], 4
      %s3593 = int_to_ptr.vmem [resolvable:$true] %s3592
      %3595 = dma.vmem_to_hbm [thread:$0]  %s3593, 128, %s3, [#allocation3]
    $region17: #{tpu_custom_call.1} parent=1 // pred_fallthru
      _
    // Predicated region
    $region18: #{tpu_custom_call.1} parent=1 // pred_check
      _
    $region19: #{tpu_custom_call.1} parent=1 // pred_check_branch
      %3597 = sbr.rel (0) target = $region21
    $region20: #{tpu_custom_call.1} parent=1 // pred_region
      %3598 = dma.done [#allocation3], 128
    $region21: #{tpu_custom_call.1} parent=1 // pred_fallthru
      _
    %3599 = vsyncpa [#allocation3], 1

</llo_original>
